<compile_context>
chip_gen: v5e
topology: v5e:2x2
jax: 0.10.0
libtpu: 0.0.40
codegen_flags: <defaults>
</compile_context>

<pallas_src>
import functools

import jax
import jax.numpy as jnp
from jax.experimental import pallas as pl
from jax.experimental.pallas import tpu as pltpu


# ----------------------------------------------------------------------------
# Kernel
# ----------------------------------------------------------------------------
def _layer_norm(x, gamma, beta, eps=1e-5):
    mu = jnp.mean(x, axis=-1, keepdims=True)
    var = jnp.mean((x - mu) ** 2, axis=-1, keepdims=True)
    return (x - mu) * jax.lax.rsqrt(var + eps) * gamma + beta


def fused_encoder_kernel(
    x_ref,       # (Bt, L, D)       activation tile (f32)
    wqkv_ref,    # (NL, D, 3D)      packed Wq|Wk|Wv (bf16)
    bqkv_ref,    # (NL, 1, 3D)      packed bq|bk|bv (f32)
    wo_ref,      # (NL, D, D)       (bf16)
    w1_ref,      # (NL, D, d_ff)    (bf16)
    b1_ref,      # (NL, 1, d_ff)    (f32)
    w2_ref,      # (NL, d_ff, D)    (bf16)
    vec_ref,     # (NL, 6, D)       [bo, b2, g1, be1, g2, be2] (f32)
    fnorm_ref,   # (2, D)           [gamma_f, beta_f] (f32)
    *out_refs,   # o_ref (Bt, L, D) [, attn_ref (NL, H, Bt, L, L)]
    n_heads, n_layers, output_attention,
):
    """Fused: layer0 -> layer1 -> final LayerNorm for one batch tile.

    Each EncoderLayer:
        new_x, A = MultiHeadSelfAttention(x)
        x        = norm1(x + new_x)
        y        = conv2(relu(conv1(x)))     # kernel_size=1 convs == linears
        x        = norm2(x + y)
    """
    o_ref = out_refs[0]
    attn_ref = out_refs[1] if output_attention else None

    Bt, L, D = x_ref.shape
    H = n_heads
    E = D // H
    M = Bt * L
    scale = 1.0 / (float(E) ** 0.5)

    # Rows folded to M = Bt*L so every projection fills the MXU M dimension.
    x = x_ref[...].astype(jnp.float32).reshape(M, D)

    for l in range(n_layers):                       # n_layers is small: unroll
        vecs = vec_ref[l]                           # (6, D)
        bo, b2 = vecs[0:1, :], vecs[1:2, :]
        g1, be1 = vecs[2:3, :], vecs[3:4, :]
        g2, be2 = vecs[4:5, :], vecs[5:6, :]

        # --- fused QKV projection: one (M, D) x (D, 3D) bf16 MXU matmul ------
        qkv = jnp.dot(x.astype(jnp.bfloat16), wqkv_ref[l],
                      preferred_element_type=jnp.float32) + bqkv_ref[l]

        # --- head-batched attention ------------------------------------------
        # Build (H*Bt, L, E) operands with static lane slices + leading-dim
        # reshapes only (no lane-splitting reshape, no masked stores).
        q_hs = [qkv[:, h * E:(h + 1) * E] for h in range(H)]
        k_hs = [qkv[:, D + h * E:D + (h + 1) * E] for h in range(H)]
        v_hs = [qkv[:, 2 * D + h * E:2 * D + (h + 1) * E] for h in range(H)]
        qs = jnp.concatenate(q_hs, axis=0).reshape(H * Bt, L, E).astype(jnp.bfloat16)
        ks = jnp.concatenate(k_hs, axis=0).reshape(H * Bt, L, E).astype(jnp.bfloat16)
        vs = jnp.concatenate(v_hs, axis=0).reshape(H * Bt, L, E).astype(jnp.bfloat16)

        s = jnp.einsum("ble,bme->blm", qs, ks,
                       preferred_element_type=jnp.float32) * scale  # (HB, L, L)
        s = s - jnp.max(s, axis=-1, keepdims=True)
        p = jnp.exp(s)
        denom = jnp.sum(p, axis=-1, keepdims=True)
        if output_attention:
            a = p / denom                       # exact softmax: values returned
            attn_ref[l] = a.reshape(H, Bt, L, L).astype(attn_ref.dtype)
        else:
            a = p * pl.reciprocal(denom, approx=True)   # EUP slot, frees VALU

        ctx = jnp.einsum("blm,bme->ble", a.astype(jnp.bfloat16), vs,
                         preferred_element_type=jnp.float32)         # (HB, L, E)
        ctx_heads = ctx.reshape(H, M, E)        # leading-dim regroup only

        # --- Wo folded per head (no ctx scratch / lane reassembly) -----------
        wo_l = wo_ref[l]                        # (D, D), bf16
        new_x = jnp.zeros((M, D), jnp.float32)
        for h in range(H):
            new_x = new_x + jnp.dot(
                ctx_heads[h].astype(jnp.bfloat16),
                wo_l[h * E:(h + 1) * E, :],
                preferred_element_type=jnp.float32)

        # --- residual + norm1 (f32) ------------------------------------------
        x1 = _layer_norm(x + new_x + bo, g1, be1)

        # --- FFN (Conv1d kernel_size=1 == position-wise linear) + relu -------
        y = jnp.dot(x1.astype(jnp.bfloat16), w1_ref[l],
                    preferred_element_type=jnp.float32) + b1_ref[l]
        y = jnp.maximum(y, 0.0)
        y = jnp.dot(y.astype(jnp.bfloat16), w2_ref[l],
                    preferred_element_type=jnp.float32) + b2

        # --- residual + norm2 (f32) ------------------------------------------
        x = _layer_norm(x1 + y, g2, be2)

    # --- final Encoder LayerNorm ----------------------------------------------
    out = _layer_norm(x, fnorm_ref[0:1, :], fnorm_ref[1:2, :])
    o_ref[...] = out.reshape(Bt, L, D).astype(o_ref.dtype)


# ----------------------------------------------------------------------------
# Wrapper
# ----------------------------------------------------------------------------
def _vmem_limit_bytes():
    cap = None
    try:
        info = pltpu.get_tpu_info()
        for name in ("vmem_capacity_bytes", "vmem_size_bytes", "vmem_bytes"):
            cap = getattr(info, name, None)
            if cap:
                break
    except Exception:
        cap = None
    if not cap:
        cap = 64 * 1024 * 1024          # conservative: v7x physical VMEM
    # 75% of physical (fits v7x 64 MiB), never above ~100 MiB on 128 MiB parts.
    return int(min(0.75 * cap, 100 * 1024 * 1024))


def _choose_batch_tile(B, L, target_rows=256):
    """Batch rows folded into the matmul M dimension (target >=256 MXU rows)."""
    divisors = [d for d in range(1, B + 1) if B % d == 0]
    good = [d for d in divisors if d * L >= target_rows]
    return min(good) if good else B


def encoder_forward(x, params, n_heads, *, output_attention=True,
                    attn_dtype=jnp.float32):
    """Encoder2.forward(x) for conv_layers=None (attn_mask=tau=delta=None).

    Returns (x_out, [attn_0, ..., attn_{NL-1}]) like the PyTorch module
    (attns is empty when output_attention=False).
    """
    B, L, D = x.shape
    n_layers = params["wqkv"].shape[0]
    bt = _choose_batch_tile(B, L)
    grid = (B // bt,)

    weights = [params["wqkv"], params["bqkv"], params["wo"], params["w1"],
               params["b1"], params["w2"], params["vec"], params["fnorm"]]

    kernel = functools.partial(
        fused_encoder_kernel, n_heads=n_heads, n_layers=n_layers,
        output_attention=output_attention)

    out_shape = [jax.ShapeDtypeStruct((B, L, D), x.dtype)]
    out_specs = [pl.BlockSpec((bt, L, D), lambda b: (b, 0, 0))]
    if output_attention:
        # Layer/head-major layout lets the kernel write without transposes;
        # the (cheap, wrapper-side) transpose to (B, H, L, L) happens below.
        out_shape.append(jax.ShapeDtypeStruct(
            (n_layers, n_heads, B, L, L), attn_dtype))
        out_specs.append(pl.BlockSpec((n_layers, n_heads, bt, L, L),
                                      lambda b: (0, 0, b, 0, 0)))

    def run(single_buffer_weights):
        if single_buffer_weights:
            # Constant-index_map weights: single-buffered, VMEM-resident.
            def w_spec(shape):
                nd = len(shape)
                return pl.BlockSpec(shape, lambda b, _nd=nd: (0,) * _nd,
                                    pipeline_mode=pl.Buffered(1))
        else:
            def w_spec(shape):
                nd = len(shape)
                return pl.BlockSpec(shape, lambda b, _nd=nd: (0,) * _nd)

        in_specs = [pl.BlockSpec((bt, L, D), lambda b: (b, 0, 0))]
        in_specs += [w_spec(w.shape) for w in weights]

        fn = pl.pallas_call(
            kernel,
            out_shape=tuple(out_shape),
            grid_spec=pltpu.PrefetchScalarGridSpec(
                num_scalar_prefetch=0,
                grid=grid,
                in_specs=in_specs,
                out_specs=tuple(out_specs),
            ),
            compiler_params=pltpu.CompilerParams(
                dimension_semantics=("parallel",),
                vmem_limit_bytes=_vmem_limit_bytes(),
            ),
        )
        return jax.block_until_ready(fn(x, *weights))

    try:
        results = run(True)
    except Exception:
        # pipeline_mode=pl.Buffered(1) unsupported on this jax version:
        # fall back to default double-buffered weight windows.
        results = run(False)

    if output_attention:
        out, attn_all = results
        attns = [jnp.transpose(attn_all[l], (1, 0, 2, 3))  # -> (B, H, L, L)
                 for l in range(n_layers)]
        return out, attns
    out = results[0] if isinstance(results, (tuple, list)) else results
    return out, []


# ----------------------------------------------------------------------------
# Deterministic parameter construction (packed layout; matmul weights in bf16)
# ----------------------------------------------------------------------------
def make_encoder_params(key, d_model, d_ff, n_layers):
    s = 0.1
    wqkv, bqkv, wo, w1, b1, w2, vec = [], [], [], [], [], [], []
    keys = jax.random.split(key, n_layers)
    for k in keys:
        ks = jax.random.split(k, 6)
        wq = s * jax.random.normal(ks[0], (d_model, d_model), jnp.float32)
        wk = s * jax.random.normal(ks[1], (d_model, d_model), jnp.float32)
        wv = s * jax.random.normal(ks[2], (d_model, d_model), jnp.float32)
        wqkv.append(jnp.concatenate([wq, wk, wv], axis=1).astype(jnp.bfloat16))
        bqkv.append(jnp.zeros((1, 3 * d_model), jnp.float32))
        wo.append((s * jax.random.normal(ks[3], (d_model, d_model),
                                         jnp.float32)).astype(jnp.bfloat16))
        w1.append((s * jax.random.normal(ks[4], (d_model, d_ff),
                                         jnp.float32)).astype(jnp.bfloat16))
        b1.append(jnp.zeros((1, d_ff), jnp.float32))
        w2.append((s * jax.random.normal(ks[5], (d_ff, d_model),
                                         jnp.float32)).astype(jnp.bfloat16))
        # packed small vectors: [bo, b2, g1, be1, g2, be2]
        vec.append(jnp.stack([
            jnp.zeros((d_model,), jnp.float32),   # bo
            jnp.zeros((d_model,), jnp.float32),   # b2
            jnp.ones((d_model,), jnp.float32),    # g1
            jnp.zeros((d_model,), jnp.float32),   # be1
            jnp.ones((d_model,), jnp.float32),    # g2
            jnp.zeros((d_model,), jnp.float32),   # be2
        ], axis=0))
    return {
        "wqkv": jnp.stack(wqkv), "bqkv": jnp.stack(bqkv),
        "wo": jnp.stack(wo), "w1": jnp.stack(w1), "b1": jnp.stack(b1),
        "w2": jnp.stack(w2), "vec": jnp.stack(vec),
        "fnorm": jnp.stack([jnp.ones((d_model,), jnp.float32),
                            jnp.zeros((d_model,), jnp.float32)], axis=0),
    }


# ----------------------------------------------------------------------------
# Pure-JAX reference (for correctness checking only)
# ----------------------------------------------------------------------------
def encoder_reference(x, params, n_heads):
    def ln(v, g, b, eps=1e-5):
        mu = v.mean(-1, keepdims=True)
        var = ((v - mu) ** 2).mean(-1, keepdims=True)
        return (v - mu) / jnp.sqrt(var + eps) * g + b

    B, L, D = x.shape
    E = D // n_heads
    n_layers = params["wqkv"].shape[0]
    attns = []
    for l in range(n_layers):
        vec = params["vec"][l]
        bo, b2, g1, be1, g2, be2 = (vec[i] for i in range(6))
        qkv = x @ params["wqkv"][l].astype(jnp.float32) + params["bqkv"][l]
        q, k, v = qkv[..., :D], qkv[..., D:2 * D], qkv[..., 2 * D:]
        q = q.reshape(B, L, n_heads, E)
        k = k.reshape(B, L, n_heads, E)
        v = v.reshape(B, L, n_heads, E)
        s = jnp.einsum("blhe,bmhe->bhlm", q, k) / jnp.sqrt(jnp.float32(E))
        a = jax.nn.softmax(s, axis=-1)
        attns.append(a)
        ctx = jnp.einsum("bhlm,bmhe->blhe", a, v).reshape(B, L, D)
        new_x = ctx @ params["wo"][l].astype(jnp.float32) + bo
        x1 = ln(x + new_x, g1, be1)
        y = jnp.maximum(x1 @ params["w1"][l].astype(jnp.float32)
                        + params["b1"][l], 0.0)
        y = y @ params["w2"][l].astype(jnp.float32) + b2
        x = ln(x1 + y, g2, be2)
    x = ln(x, params["fnorm"][0], params["fnorm"][1])
    return x, attns


if __name__ == "__main__":
    B, L, d_model, n_heads, d_ff, n_layers = 2, 8, 32, 4, 64, 2

    root = jax.random.PRNGKey(0)
    kx, kp = jax.random.split(root, 2)

    x = jax.random.normal(kx, (B, L, d_model), jnp.float32)
    params = make_encoder_params(kp, d_model, d_ff, n_layers)

    out, attns = encoder_forward(x, params, n_heads)
    out = jax.block_until_ready(out)
    attns = [jax.block_until_ready(a) for a in attns]

    assert out.shape == (B, L, d_model)
    assert all(a.shape == (B, n_heads, L, L) for a in attns)
    assert bool(jnp.all(jnp.isfinite(out)))
    # exact softmax rows sum to ~1
    assert bool(jnp.allclose(attns[0].sum(-1), 1.0, atol=1e-3))

    # check against pure-JAX reference (bf16 matmul operands -> loose-ish tol)
    ref_out, ref_attns = encoder_reference(x, params, n_heads)
    assert bool(jnp.allclose(out, ref_out, atol=4e-2, rtol=4e-2))
    assert bool(jnp.allclose(attns[0], ref_attns[0], atol=2e-2))
    assert bool(jnp.allclose(attns[1], ref_attns[1], atol=2e-2))

    print("KERNEL_OK")
</pallas_src>

<mosaic_0001>
module attributes {stable_mosaic.version = 11 : i64} {
  func.func @fused_encoder_kernel(%arg0: i32, %arg1: memref<2x8x32xf32, #tpu.memory_space<vmem>>, %arg2: memref<2x32x96xbf16, #tpu.memory_space<vmem>>, %arg3: memref<2x1x96xf32, #tpu.memory_space<vmem>>, %arg4: memref<2x32x32xbf16, #tpu.memory_space<vmem>>, %arg5: memref<2x32x64xbf16, #tpu.memory_space<vmem>>, %arg6: memref<2x1x64xf32, #tpu.memory_space<vmem>>, %arg7: memref<2x64x32xbf16, #tpu.memory_space<vmem>>, %arg8: memref<2x6x32xf32, #tpu.memory_space<vmem>>, %arg9: memref<2x32xf32, #tpu.memory_space<vmem>>, %arg10: memref<2x8x32xf32, #tpu.memory_space<vmem>>, %arg11: memref<2x4x2x8x8xf32, #tpu.memory_space<vmem>>) attributes {dimension_semantics = [#tpu.dimension_semantics<parallel>], iteration_bounds = array<i64: 1>, scalar_prefetch = 0 : i64, scratch_operands = 0 : i64, tpu.core_type = #tpu.core_type<tc>, window_params = [{transform_indices = @transform_0, window_bounds = array<i64: 2, 8, 32>}, {pipeline_mode = #tpu.pipeline_mode<synchronous>, transform_indices = @transform_1, window_bounds = array<i64: 2, 32, 96>}, {pipeline_mode = #tpu.pipeline_mode<synchronous>, transform_indices = @transform_2, window_bounds = array<i64: 2, 1, 96>}, {pipeline_mode = #tpu.pipeline_mode<synchronous>, transform_indices = @transform_3, window_bounds = array<i64: 2, 32, 32>}, {pipeline_mode = #tpu.pipeline_mode<synchronous>, transform_indices = @transform_4, window_bounds = array<i64: 2, 32, 64>}, {pipeline_mode = #tpu.pipeline_mode<synchronous>, transform_indices = @transform_5, window_bounds = array<i64: 2, 1, 64>}, {pipeline_mode = #tpu.pipeline_mode<synchronous>, transform_indices = @transform_6, window_bounds = array<i64: 2, 64, 32>}, {pipeline_mode = #tpu.pipeline_mode<synchronous>, transform_indices = @transform_7, window_bounds = array<i64: 2, 6, 32>}, {pipeline_mode = #tpu.pipeline_mode<synchronous>, transform_indices = @transform_8, window_bounds = array<i64: 2, 32>}, {transform_indices = @transform_9, window_bounds = array<i64: 2, 8, 32>}, {transform_indices = @transform_10, window_bounds = array<i64: 2, 4, 2, 8, 8>}]} {
    %c0 = arith.constant 0 : index
    %c0_0 = arith.constant 0 : index
    %c0_1 = arith.constant 0 : index
    %0 = vector.load %arg1[%c0, %c0_0, %c0_1] : memref<2x8x32xf32, #tpu.memory_space<vmem>>, vector<2x8x32xf32>
    %1 = vector.shape_cast %0 : vector<2x8x32xf32> to vector<16x32xf32>
    %c0_2 = arith.constant 0 : index
    %c0_3 = arith.constant 0 : index
    %c0_4 = arith.constant 0 : index
    %2 = vector.load %arg8[%c0_2, %c0_3, %c0_4] : memref<2x6x32xf32, #tpu.memory_space<vmem>>, vector<1x6x32xf32>
    %3 = vector.shape_cast %2 : vector<1x6x32xf32> to vector<6x32xf32>
    %4 = vector.extract_strided_slice %3 {offsets = [0, 0], sizes = [1, 32], strides = [1, 1]} : vector<6x32xf32> to vector<1x32xf32>
    %5 = vector.extract_strided_slice %3 {offsets = [1, 0], sizes = [1, 32], strides = [1, 1]} : vector<6x32xf32> to vector<1x32xf32>
    %6 = vector.extract_strided_slice %3 {offsets = [2, 0], sizes = [1, 32], strides = [1, 1]} : vector<6x32xf32> to vector<1x32xf32>
    %7 = vector.extract_strided_slice %3 {offsets = [3, 0], sizes = [1, 32], strides = [1, 1]} : vector<6x32xf32> to vector<1x32xf32>
    %8 = vector.extract_strided_slice %3 {offsets = [4, 0], sizes = [1, 32], strides = [1, 1]} : vector<6x32xf32> to vector<1x32xf32>
    %9 = vector.extract_strided_slice %3 {offsets = [5, 0], sizes = [1, 32], strides = [1, 1]} : vector<6x32xf32> to vector<1x32xf32>
    %10 = arith.truncf %1 : vector<16x32xf32> to vector<16x32xbf16>
    %c0_5 = arith.constant 0 : index
    %c0_6 = arith.constant 0 : index
    %c0_7 = arith.constant 0 : index
    %11 = vector.load %arg2[%c0_5, %c0_6, %c0_7] : memref<2x32x96xbf16, #tpu.memory_space<vmem>>, vector<1x32x96xbf16>
    %12 = vector.shape_cast %11 : vector<1x32x96xbf16> to vector<32x96xbf16>
    %cst = arith.constant dense<0.000000e+00> : vector<16x96xf32>
    %13 = tpu.matmul %10, %12, %cst {dimension_numbers = #tpu.dot_dimension_numbers<[1], [0], [0], [1], [0, 0, 1, 1], [], []>} : vector<16x32xbf16>, vector<32x96xbf16>, vector<16x96xf32> -> vector<16x96xf32>
    %c0_8 = arith.constant 0 : index
    %c0_9 = arith.constant 0 : index
    %c0_10 = arith.constant 0 : index
    %14 = vector.load %arg3[%c0_8, %c0_9, %c0_10] : memref<2x1x96xf32, #tpu.memory_space<vmem>>, vector<1x1x96xf32>
    %15 = vector.shape_cast %14 : vector<1x1x96xf32> to vector<1x96xf32>
    %16 = vector.broadcast %15 : vector<1x96xf32> to vector<16x96xf32>
    %17 = arith.addf %13, %16 : vector<16x96xf32>
    %18 = vector.extract_strided_slice %17 {offsets = [0, 0], sizes = [16, 8], strides = [1, 1]} : vector<16x96xf32> to vector<16x8xf32>
    %19 = vector.extract_strided_slice %17 {offsets = [0, 8], sizes = [16, 8], strides = [1, 1]} : vector<16x96xf32> to vector<16x8xf32>
    %20 = vector.extract_strided_slice %17 {offsets = [0, 16], sizes = [16, 8], strides = [1, 1]} : vector<16x96xf32> to vector<16x8xf32>
    %21 = vector.extract_strided_slice %17 {offsets = [0, 24], sizes = [16, 8], strides = [1, 1]} : vector<16x96xf32> to vector<16x8xf32>
    %22 = vector.extract_strided_slice %17 {offsets = [0, 32], sizes = [16, 8], strides = [1, 1]} : vector<16x96xf32> to vector<16x8xf32>
    %23 = vector.extract_strided_slice %17 {offsets = [0, 40], sizes = [16, 8], strides = [1, 1]} : vector<16x96xf32> to vector<16x8xf32>
    %24 = vector.extract_strided_slice %17 {offsets = [0, 48], sizes = [16, 8], strides = [1, 1]} : vector<16x96xf32> to vector<16x8xf32>
    %25 = vector.extract_strided_slice %17 {offsets = [0, 56], sizes = [16, 8], strides = [1, 1]} : vector<16x96xf32> to vector<16x8xf32>
    %26 = vector.extract_strided_slice %17 {offsets = [0, 64], sizes = [16, 8], strides = [1, 1]} : vector<16x96xf32> to vector<16x8xf32>
    %27 = vector.extract_strided_slice %17 {offsets = [0, 72], sizes = [16, 8], strides = [1, 1]} : vector<16x96xf32> to vector<16x8xf32>
    %28 = vector.extract_strided_slice %17 {offsets = [0, 80], sizes = [16, 8], strides = [1, 1]} : vector<16x96xf32> to vector<16x8xf32>
    %29 = vector.extract_strided_slice %17 {offsets = [0, 88], sizes = [16, 8], strides = [1, 1]} : vector<16x96xf32> to vector<16x8xf32>
    %30 = tpu.concatenate %18, %19, %20, %21 in 0 : vector<16x8xf32>, vector<16x8xf32>, vector<16x8xf32>, vector<16x8xf32> -> vector<64x8xf32>
    %31 = vector.shape_cast %30 : vector<64x8xf32> to vector<8x8x8xf32>
    %32 = arith.truncf %31 : vector<8x8x8xf32> to vector<8x8x8xbf16>
    %33 = tpu.concatenate %22, %23, %24, %25 in 0 : vector<16x8xf32>, vector<16x8xf32>, vector<16x8xf32>, vector<16x8xf32> -> vector<64x8xf32>
    %34 = vector.shape_cast %33 : vector<64x8xf32> to vector<8x8x8xf32>
    %35 = arith.truncf %34 : vector<8x8x8xf32> to vector<8x8x8xbf16>
    %36 = tpu.concatenate %26, %27, %28, %29 in 0 : vector<16x8xf32>, vector<16x8xf32>, vector<16x8xf32>, vector<16x8xf32> -> vector<64x8xf32>
    %37 = vector.shape_cast %36 : vector<64x8xf32> to vector<8x8x8xf32>
    %38 = arith.truncf %37 : vector<8x8x8xf32> to vector<8x8x8xbf16>
    "tpu.trace_start"() <{level = 10 : i32, message = "ble,bme->blm"}> : () -> ()
    %cst_11 = arith.constant dense<0.000000e+00> : vector<8x8x8xf32>
    %39 = tpu.matmul %32, %35, %cst_11 {dimension_numbers = #tpu.dot_dimension_numbers<[2], [2], [1], [1], [0, 0, 0, 1, 1, 1], [0], [0]>} : vector<8x8x8xbf16>, vector<8x8x8xbf16>, vector<8x8x8xf32> -> vector<8x8x8xf32>
    "tpu.trace_stop"() : () -> ()
    %cst_12 = arith.constant 0.353553385 : f32
    %40 = vector.broadcast %cst_12 : f32 to vector<8x8x8xf32>
    %41 = arith.mulf %39, %40 : vector<8x8x8xf32>
    %cst_13 = arith.constant dense<0xFF800000> : vector<8x8xf32>
    %42 = vector.multi_reduction <maximumf>, %41, %cst_13 [2] : vector<8x8x8xf32> to vector<8x8xf32>
    %43 = vector.shape_cast %42 : vector<8x8xf32> to vector<8x8x1xf32>
    %44 = vector.broadcast %43 : vector<8x8x1xf32> to vector<8x8x8xf32>
    %45 = arith.subf %41, %44 : vector<8x8x8xf32>
    %46 = math.exp %45 : vector<8x8x8xf32>
    %cst_14 = arith.constant dense<0.000000e+00> : vector<8x8xf32>
    %47 = vector.multi_reduction <add>, %46, %cst_14 [2] : vector<8x8x8xf32> to vector<8x8xf32>
    %48 = vector.shape_cast %47 : vector<8x8xf32> to vector<8x8x1xf32>
    %49 = vector.broadcast %48 : vector<8x8x1xf32> to vector<8x8x8xf32>
    %50 = arith.divf %46, %49 : vector<8x8x8xf32>
    %51 = vector.shape_cast %50 : vector<8x8x8xf32> to vector<4x2x8x8xf32>
    %c0_15 = arith.constant 0 : index
    %c0_16 = arith.constant 0 : index
    %c0_17 = arith.constant 0 : index
    %c0_18 = arith.constant 0 : index
    %c0_19 = arith.constant 0 : index
    %52 = vector.load %arg11[%c0_15, %c0_16, %c0_17, %c0_18, %c0_19] : memref<2x4x2x8x8xf32, #tpu.memory_space<vmem>>, vector<1x4x2x8x8xf32>
    %53 = vector.shape_cast %52 : vector<1x4x2x8x8xf32> to vector<4x2x8x8xf32>
    %54 = vector.shape_cast %51 : vector<4x2x8x8xf32> to vector<1x4x2x8x8xf32>
    tpu.vector_store %arg11[%c0_15, %c0_16, %c0_17, %c0_18, %c0_19], %54 {strides = array<i32>} : memref<2x4x2x8x8xf32, #tpu.memory_space<vmem>>, vector<1x4x2x8x8xf32>,
    %55 = arith.truncf %50 : vector<8x8x8xf32> to vector<8x8x8xbf16>
    "tpu.trace_start"() <{level = 10 : i32, message = "blm,bme->ble"}> : () -> ()
    %cst_20 = arith.constant dense<0.000000e+00> : vector<8x8x8xf32>
    %56 = tpu.matmul %55, %38, %cst_20 {dimension_numbers = #tpu.dot_dimension_numbers<[2], [1], [1], [2], [0, 0, 0, 1, 1, 2], [0], [0]>} : vector<8x8x8xbf16>, vector<8x8x8xbf16>, vector<8x8x8xf32> -> vector<8x8x8xf32>
    "tpu.trace_stop"() : () -> ()
    %57 = vector.shape_cast %56 : vector<8x8x8xf32> to vector<4x16x8xf32>
    %c0_21 = arith.constant 0 : index
    %c0_22 = arith.constant 0 : index
    %c0_23 = arith.constant 0 : index
    %58 = vector.load %arg4[%c0_21, %c0_22, %c0_23] : memref<2x32x32xbf16, #tpu.memory_space<vmem>>, vector<1x32x32xbf16>
    %59 = vector.shape_cast %58 : vector<1x32x32xbf16> to vector<32x32xbf16>
    %cst_24 = arith.constant 0.000000e+00 : f32
    %60 = vector.broadcast %cst_24 : f32 to vector<16x32xf32>
    %61 = vector.extract_strided_slice %57 {offsets = [0, 0, 0], sizes = [1, 16, 8], strides = [1, 1, 1]} : vector<4x16x8xf32> to vector<1x16x8xf32>
    %62 = vector.shape_cast %61 : vector<1x16x8xf32> to vector<16x8xf32>
    %63 = arith.truncf %62 : vector<16x8xf32> to vector<16x8xbf16>
    %64 = vector.extract_strided_slice %59 {offsets = [0, 0], sizes = [8, 32], strides = [1, 1]} : vector<32x32xbf16> to vector<8x32xbf16>
    %cst_25 = arith.constant dense<0.000000e+00> : vector<16x32xf32>
    %65 = tpu.matmul %63, %64, %cst_25 {dimension_numbers = #tpu.dot_dimension_numbers<[1], [0], [0], [1], [0, 0, 1, 1], [], []>} : vector<16x8xbf16>, vector<8x32xbf16>, vector<16x32xf32> -> vector<16x32xf32>
    %66 = arith.addf %60, %65 : vector<16x32xf32>
    %67 = vector.extract_strided_slice %57 {offsets = [1, 0, 0], sizes = [1, 16, 8], strides = [1, 1, 1]} : vector<4x16x8xf32> to vector<1x16x8xf32>
    %68 = vector.shape_cast %67 : vector<1x16x8xf32> to vector<16x8xf32>
    %69 = arith.truncf %68 : vector<16x8xf32> to vector<16x8xbf16>
    %70 = vector.extract_strided_slice %59 {offsets = [8, 0], sizes = [8, 32], strides = [1, 1]} : vector<32x32xbf16> to vector<8x32xbf16>
    %cst_26 = arith.constant dense<0.000000e+00> : vector<16x32xf32>
    %71 = tpu.matmul %69, %70, %cst_26 {dimension_numbers = #tpu.dot_dimension_numbers<[1], [0], [0], [1], [0, 0, 1, 1], [], []>} : vector<16x8xbf16>, vector<8x32xbf16>, vector<16x32xf32> -> vector<16x32xf32>
    %72 = arith.addf %66, %71 : vector<16x32xf32>
    %73 = vector.extract_strided_slice %57 {offsets = [2, 0, 0], sizes = [1, 16, 8], strides = [1, 1, 1]} : vector<4x16x8xf32> to vector<1x16x8xf32>
    %74 = vector.shape_cast %73 : vector<1x16x8xf32> to vector<16x8xf32>
    %75 = arith.truncf %74 : vector<16x8xf32> to vector<16x8xbf16>
    %76 = vector.extract_strided_slice %59 {offsets = [16, 0], sizes = [8, 32], strides = [1, 1]} : vector<32x32xbf16> to vector<8x32xbf16>
    %cst_27 = arith.constant dense<0.000000e+00> : vector<16x32xf32>
    %77 = tpu.matmul %75, %76, %cst_27 {dimension_numbers = #tpu.dot_dimension_numbers<[1], [0], [0], [1], [0, 0, 1, 1], [], []>} : vector<16x8xbf16>, vector<8x32xbf16>, vector<16x32xf32> -> vector<16x32xf32>
    %78 = arith.addf %72, %77 : vector<16x32xf32>
    %79 = vector.extract_strided_slice %57 {offsets = [3, 0, 0], sizes = [1, 16, 8], strides = [1, 1, 1]} : vector<4x16x8xf32> to vector<1x16x8xf32>
    %80 = vector.shape_cast %79 : vector<1x16x8xf32> to vector<16x8xf32>
    %81 = arith.truncf %80 : vector<16x8xf32> to vector<16x8xbf16>
    %82 = vector.extract_strided_slice %59 {offsets = [24, 0], sizes = [8, 32], strides = [1, 1]} : vector<32x32xbf16> to vector<8x32xbf16>
    %cst_28 = arith.constant dense<0.000000e+00> : vector<16x32xf32>
    %83 = tpu.matmul %81, %82, %cst_28 {dimension_numbers = #tpu.dot_dimension_numbers<[1], [0], [0], [1], [0, 0, 1, 1], [], []>} : vector<16x8xbf16>, vector<8x32xbf16>, vector<16x32xf32> -> vector<16x32xf32>
    %84 = arith.addf %78, %83 : vector<16x32xf32>
    %85 = arith.addf %1, %84 : vector<16x32xf32>
    %86 = vector.broadcast %4 : vector<1x32xf32> to vector<16x32xf32>
    %87 = arith.addf %85, %86 : vector<16x32xf32>
    %cst_29 = arith.constant dense<0.000000e+00> : vector<16xf32>
    %88 = vector.multi_reduction <add>, %87, %cst_29 [1] : vector<16x32xf32> to vector<16xf32>
    %89 = vector.shape_cast %88 : vector<16xf32> to vector<16x1xf32>
    %cst_30 = arith.constant 3.200000e+01 : f32
    %90 = vector.broadcast %cst_30 : f32 to vector<16x1xf32>
    %91 = arith.divf %89, %90 : vector<16x1xf32>
    %92 = vector.broadcast %91 : vector<16x1xf32> to vector<16x32xf32>
    %93 = arith.subf %87, %92 : vector<16x32xf32>
    %94 = arith.mulf %93, %93 : vector<16x32xf32>
    %cst_31 = arith.constant dense<0.000000e+00> : vector<16xf32>
    %95 = vector.multi_reduction <add>, %94, %cst_31 [1] : vector<16x32xf32> to vector<16xf32>
    %96 = vector.shape_cast %95 : vector<16xf32> to vector<16x1xf32>
    %cst_32 = arith.constant 3.200000e+01 : f32
    %97 = vector.broadcast %cst_32 : f32 to vector<16x1xf32>
    %98 = arith.divf %96, %97 : vector<16x1xf32>
    %99 = vector.broadcast %91 : vector<16x1xf32> to vector<16x32xf32>
    %100 = arith.subf %87, %99 : vector<16x32xf32>
    %cst_33 = arith.constant 9.99999974E-6 : f32
    %101 = vector.broadcast %cst_33 : f32 to vector<16x1xf32>
    %102 = arith.addf %98, %101 : vector<16x1xf32>
    %103 = math.rsqrt %102 : vector<16x1xf32>
    %104 = vector.broadcast %103 : vector<16x1xf32> to vector<16x32xf32>
    %105 = arith.mulf %100, %104 : vector<16x32xf32>
    %106 = vector.broadcast %6 : vector<1x32xf32> to vector<16x32xf32>
    %107 = arith.mulf %105, %106 : vector<16x32xf32>
    %108 = vector.broadcast %7 : vector<1x32xf32> to vector<16x32xf32>
    %109 = arith.addf %107, %108 : vector<16x32xf32>
    %110 = arith.truncf %109 : vector<16x32xf32> to vector<16x32xbf16>
    %c0_34 = arith.constant 0 : index
    %c0_35 = arith.constant 0 : index
    %c0_36 = arith.constant 0 : index
    %111 = vector.load %arg5[%c0_34, %c0_35, %c0_36] : memref<2x32x64xbf16, #tpu.memory_space<vmem>>, vector<1x32x64xbf16>
    %112 = vector.shape_cast %111 : vector<1x32x64xbf16> to vector<32x64xbf16>
    %cst_37 = arith.constant dense<0.000000e+00> : vector<16x64xf32>
    %113 = tpu.matmul %110, %112, %cst_37 {dimension_numbers = #tpu.dot_dimension_numbers<[1], [0], [0], [1], [0, 0, 1, 1], [], []>} : vector<16x32xbf16>, vector<32x64xbf16>, vector<16x64xf32> -> vector<16x64xf32>
    %c0_38 = arith.constant 0 : index
    %c0_39 = arith.constant 0 : index
    %c0_40 = arith.constant 0 : index
    %114 = vector.load %arg6[%c0_38, %c0_39, %c0_40] : memref<2x1x64xf32, #tpu.memory_space<vmem>>, vector<1x1x64xf32>
    %115 = vector.shape_cast %114 : vector<1x1x64xf32> to vector<1x64xf32>
    %116 = vector.broadcast %115 : vector<1x64xf32> to vector<16x64xf32>
    %117 = arith.addf %113, %116 : vector<16x64xf32>
    %cst_41 = arith.constant 0.000000e+00 : f32
    %118 = vector.broadcast %cst_41 : f32 to vector<16x64xf32>
    %119 = arith.maximumf %117, %118 : vector<16x64xf32>
    %120 = arith.truncf %119 : vector<16x64xf32> to vector<16x64xbf16>
    %c0_42 = arith.constant 0 : index
    %c0_43 = arith.constant 0 : index
    %c0_44 = arith.constant 0 : index
    %121 = vector.load %arg7[%c0_42, %c0_43, %c0_44] : memref<2x64x32xbf16, #tpu.memory_space<vmem>>, vector<1x64x32xbf16>
    %122 = vector.shape_cast %121 : vector<1x64x32xbf16> to vector<64x32xbf16>
    %cst_45 = arith.constant dense<0.000000e+00> : vector<16x32xf32>
    %123 = tpu.matmul %120, %122, %cst_45 {dimension_numbers = #tpu.dot_dimension_numbers<[1], [0], [0], [1], [0, 0, 1, 1], [], []>} : vector<16x64xbf16>, vector<64x32xbf16>, vector<16x32xf32> -> vector<16x32xf32>
    %124 = vector.broadcast %5 : vector<1x32xf32> to vector<16x32xf32>
    %125 = arith.addf %123, %124 : vector<16x32xf32>
    %126 = arith.addf %109, %125 : vector<16x32xf32>
    %cst_46 = arith.constant dense<0.000000e+00> : vector<16xf32>
    %127 = vector.multi_reduction <add>, %126, %cst_46 [1] : vector<16x32xf32> to vector<16xf32>
    %128 = vector.shape_cast %127 : vector<16xf32> to vector<16x1xf32>
    %cst_47 = arith.constant 3.200000e+01 : f32
    %129 = vector.broadcast %cst_47 : f32 to vector<16x1xf32>
    %130 = arith.divf %128, %129 : vector<16x1xf32>
    %131 = vector.broadcast %130 : vector<16x1xf32> to vector<16x32xf32>
    %132 = arith.subf %126, %131 : vector<16x32xf32>
    %133 = arith.mulf %132, %132 : vector<16x32xf32>
    %cst_48 = arith.constant dense<0.000000e+00> : vector<16xf32>
    %134 = vector.multi_reduction <add>, %133, %cst_48 [1] : vector<16x32xf32> to vector<16xf32>
    %135 = vector.shape_cast %134 : vector<16xf32> to vector<16x1xf32>
    %cst_49 = arith.constant 3.200000e+01 : f32
    %136 = vector.broadcast %cst_49 : f32 to vector<16x1xf32>
    %137 = arith.divf %135, %136 : vector<16x1xf32>
    %138 = vector.broadcast %130 : vector<16x1xf32> to vector<16x32xf32>
    %139 = arith.subf %126, %138 : vector<16x32xf32>
    %cst_50 = arith.constant 9.99999974E-6 : f32
    %140 = vector.broadcast %cst_50 : f32 to vector<16x1xf32>
    %141 = arith.addf %137, %140 : vector<16x1xf32>
    %142 = math.rsqrt %141 : vector<16x1xf32>
    %143 = vector.broadcast %142 : vector<16x1xf32> to vector<16x32xf32>
    %144 = arith.mulf %139, %143 : vector<16x32xf32>
    %145 = vector.broadcast %8 : vector<1x32xf32> to vector<16x32xf32>
    %146 = arith.mulf %144, %145 : vector<16x32xf32>
    %147 = vector.broadcast %9 : vector<1x32xf32> to vector<16x32xf32>
    %148 = arith.addf %146, %147 : vector<16x32xf32>
    %c1 = arith.constant 1 : index
    %c0_51 = arith.constant 0 : index
    %c0_52 = arith.constant 0 : index
    %149 = vector.load %arg8[%c1, %c0_51, %c0_52] : memref<2x6x32xf32, #tpu.memory_space<vmem>>, vector<1x6x32xf32>
    %150 = vector.shape_cast %149 : vector<1x6x32xf32> to vector<6x32xf32>
    %151 = vector.extract_strided_slice %150 {offsets = [0, 0], sizes = [1, 32], strides = [1, 1]} : vector<6x32xf32> to vector<1x32xf32>
    %152 = vector.extract_strided_slice %150 {offsets = [1, 0], sizes = [1, 32], strides = [1, 1]} : vector<6x32xf32> to vector<1x32xf32>
    %153 = vector.extract_strided_slice %150 {offsets = [2, 0], sizes = [1, 32], strides = [1, 1]} : vector<6x32xf32> to vector<1x32xf32>
    %154 = vector.extract_strided_slice %150 {offsets = [3, 0], sizes = [1, 32], strides = [1, 1]} : vector<6x32xf32> to vector<1x32xf32>
    %155 = vector.extract_strided_slice %150 {offsets = [4, 0], sizes = [1, 32], strides = [1, 1]} : vector<6x32xf32> to vector<1x32xf32>
    %156 = vector.extract_strided_slice %150 {offsets = [5, 0], sizes = [1, 32], strides = [1, 1]} : vector<6x32xf32> to vector<1x32xf32>
    %157 = arith.truncf %148 : vector<16x32xf32> to vector<16x32xbf16>
    %c1_53 = arith.constant 1 : index
    %c0_54 = arith.constant 0 : index
    %c0_55 = arith.constant 0 : index
    %158 = vector.load %arg2[%c1_53, %c0_54, %c0_55] : memref<2x32x96xbf16, #tpu.memory_space<vmem>>, vector<1x32x96xbf16>
    %159 = vector.shape_cast %158 : vector<1x32x96xbf16> to vector<32x96xbf16>
    %cst_56 = arith.constant dense<0.000000e+00> : vector<16x96xf32>
    %160 = tpu.matmul %157, %159, %cst_56 {dimension_numbers = #tpu.dot_dimension_numbers<[1], [0], [0], [1], [0, 0, 1, 1], [], []>} : vector<16x32xbf16>, vector<32x96xbf16>, vector<16x96xf32> -> vector<16x96xf32>
    %c1_57 = arith.constant 1 : index
    %c0_58 = arith.constant 0 : index
    %c0_59 = arith.constant 0 : index
    %161 = vector.load %arg3[%c1_57, %c0_58, %c0_59] : memref<2x1x96xf32, #tpu.memory_space<vmem>>, vector<1x1x96xf32>
    %162 = vector.shape_cast %161 : vector<1x1x96xf32> to vector<1x96xf32>
    %163 = vector.broadcast %162 : vector<1x96xf32> to vector<16x96xf32>
    %164 = arith.addf %160, %163 : vector<16x96xf32>
    %165 = vector.extract_strided_slice %164 {offsets = [0, 0], sizes = [16, 8], strides = [1, 1]} : vector<16x96xf32> to vector<16x8xf32>
    %166 = vector.extract_strided_slice %164 {offsets = [0, 8], sizes = [16, 8], strides = [1, 1]} : vector<16x96xf32> to vector<16x8xf32>
    %167 = vector.extract_strided_slice %164 {offsets = [0, 16], sizes = [16, 8], strides = [1, 1]} : vector<16x96xf32> to vector<16x8xf32>
    %168 = vector.extract_strided_slice %164 {offsets = [0, 24], sizes = [16, 8], strides = [1, 1]} : vector<16x96xf32> to vector<16x8xf32>
    %169 = vector.extract_strided_slice %164 {offsets = [0, 32], sizes = [16, 8], strides = [1, 1]} : vector<16x96xf32> to vector<16x8xf32>
    %170 = vector.extract_strided_slice %164 {offsets = [0, 40], sizes = [16, 8], strides = [1, 1]} : vector<16x96xf32> to vector<16x8xf32>
    %171 = vector.extract_strided_slice %164 {offsets = [0, 48], sizes = [16, 8], strides = [1, 1]} : vector<16x96xf32> to vector<16x8xf32>
    %172 = vector.extract_strided_slice %164 {offsets = [0, 56], sizes = [16, 8], strides = [1, 1]} : vector<16x96xf32> to vector<16x8xf32>
    %173 = vector.extract_strided_slice %164 {offsets = [0, 64], sizes = [16, 8], strides = [1, 1]} : vector<16x96xf32> to vector<16x8xf32>
    %174 = vector.extract_strided_slice %164 {offsets = [0, 72], sizes = [16, 8], strides = [1, 1]} : vector<16x96xf32> to vector<16x8xf32>
    %175 = vector.extract_strided_slice %164 {offsets = [0, 80], sizes = [16, 8], strides = [1, 1]} : vector<16x96xf32> to vector<16x8xf32>
    %176 = vector.extract_strided_slice %164 {offsets = [0, 88], sizes = [16, 8], strides = [1, 1]} : vector<16x96xf32> to vector<16x8xf32>
    %177 = tpu.concatenate %165, %166, %167, %168 in 0 : vector<16x8xf32>, vector<16x8xf32>, vector<16x8xf32>, vector<16x8xf32> -> vector<64x8xf32>
    %178 = vector.shape_cast %177 : vector<64x8xf32> to vector<8x8x8xf32>
    %179 = arith.truncf %178 : vector<8x8x8xf32> to vector<8x8x8xbf16>
    %180 = tpu.concatenate %169, %170, %171, %172 in 0 : vector<16x8xf32>, vector<16x8xf32>, vector<16x8xf32>, vector<16x8xf32> -> vector<64x8xf32>
    %181 = vector.shape_cast %180 : vector<64x8xf32> to vector<8x8x8xf32>
    %182 = arith.truncf %181 : vector<8x8x8xf32> to vector<8x8x8xbf16>
    %183 = tpu.concatenate %173, %174, %175, %176 in 0 : vector<16x8xf32>, vector<16x8xf32>, vector<16x8xf32>, vector<16x8xf32> -> vector<64x8xf32>
    %184 = vector.shape_cast %183 : vector<64x8xf32> to vector<8x8x8xf32>
    %185 = arith.truncf %184 : vector<8x8x8xf32> to vector<8x8x8xbf16>
    "tpu.trace_start"() <{level = 10 : i32, message = "ble,bme->blm"}> : () -> ()
    %cst_60 = arith.constant dense<0.000000e+00> : vector<8x8x8xf32>
    %186 = tpu.matmul %179, %182, %cst_60 {dimension_numbers = #tpu.dot_dimension_numbers<[2], [2], [1], [1], [0, 0, 0, 1, 1, 1], [0], [0]>} : vector<8x8x8xbf16>, vector<8x8x8xbf16>, vector<8x8x8xf32> -> vector<8x8x8xf32>
    "tpu.trace_stop"() : () -> ()
    %cst_61 = arith.constant 0.353553385 : f32
    %187 = vector.broadcast %cst_61 : f32 to vector<8x8x8xf32>
    %188 = arith.mulf %186, %187 : vector<8x8x8xf32>
    %cst_62 = arith.constant dense<0xFF800000> : vector<8x8xf32>
    %189 = vector.multi_reduction <maximumf>, %188, %cst_62 [2] : vector<8x8x8xf32> to vector<8x8xf32>
    %190 = vector.shape_cast %189 : vector<8x8xf32> to vector<8x8x1xf32>
    %191 = vector.broadcast %190 : vector<8x8x1xf32> to vector<8x8x8xf32>
    %192 = arith.subf %188, %191 : vector<8x8x8xf32>
    %193 = math.exp %192 : vector<8x8x8xf32>
    %cst_63 = arith.constant dense<0.000000e+00> : vector<8x8xf32>
    %194 = vector.multi_reduction <add>, %193, %cst_63 [2] : vector<8x8x8xf32> to vector<8x8xf32>
    %195 = vector.shape_cast %194 : vector<8x8xf32> to vector<8x8x1xf32>
    %196 = vector.broadcast %195 : vector<8x8x1xf32> to vector<8x8x8xf32>
    %197 = arith.divf %193, %196 : vector<8x8x8xf32>
    %198 = vector.shape_cast %197 : vector<8x8x8xf32> to vector<4x2x8x8xf32>
    %c1_64 = arith.constant 1 : index
    %c0_65 = arith.constant 0 : index
    %c0_66 = arith.constant 0 : index
    %c0_67 = arith.constant 0 : index
    %c0_68 = arith.constant 0 : index
    %199 = vector.load %arg11[%c1_64, %c0_65, %c0_66, %c0_67, %c0_68] : memref<2x4x2x8x8xf32, #tpu.memory_space<vmem>>, vector<1x4x2x8x8xf32>
    %200 = vector.shape_cast %199 : vector<1x4x2x8x8xf32> to vector<4x2x8x8xf32>
    %201 = vector.shape_cast %198 : vector<4x2x8x8xf32> to vector<1x4x2x8x8xf32>
    tpu.vector_store %arg11[%c1_64, %c0_65, %c0_66, %c0_67, %c0_68], %201 {strides = array<i32>} : memref<2x4x2x8x8xf32, #tpu.memory_space<vmem>>, vector<1x4x2x8x8xf32>,
    %202 = arith.truncf %197 : vector<8x8x8xf32> to vector<8x8x8xbf16>
    "tpu.trace_start"() <{level = 10 : i32, message = "blm,bme->ble"}> : () -> ()
    %cst_69 = arith.constant dense<0.000000e+00> : vector<8x8x8xf32>
    %203 = tpu.matmul %202, %185, %cst_69 {dimension_numbers = #tpu.dot_dimension_numbers<[2], [1], [1], [2], [0, 0, 0, 1, 1, 2], [0], [0]>} : vector<8x8x8xbf16>, vector<8x8x8xbf16>, vector<8x8x8xf32> -> vector<8x8x8xf32>
    "tpu.trace_stop"() : () -> ()
    %204 = vector.shape_cast %203 : vector<8x8x8xf32> to vector<4x16x8xf32>
    %c1_70 = arith.constant 1 : index
    %c0_71 = arith.constant 0 : index
    %c0_72 = arith.constant 0 : index
    %205 = vector.load %arg4[%c1_70, %c0_71, %c0_72] : memref<2x32x32xbf16, #tpu.memory_space<vmem>>, vector<1x32x32xbf16>
    %206 = vector.shape_cast %205 : vector<1x32x32xbf16> to vector<32x32xbf16>
    %cst_73 = arith.constant 0.000000e+00 : f32
    %207 = vector.broadcast %cst_73 : f32 to vector<16x32xf32>
    %208 = vector.extract_strided_slice %204 {offsets = [0, 0, 0], sizes = [1, 16, 8], strides = [1, 1, 1]} : vector<4x16x8xf32> to vector<1x16x8xf32>
    %209 = vector.shape_cast %208 : vector<1x16x8xf32> to vector<16x8xf32>
    %210 = arith.truncf %209 : vector<16x8xf32> to vector<16x8xbf16>
    %211 = vector.extract_strided_slice %206 {offsets = [0, 0], sizes = [8, 32], strides = [1, 1]} : vector<32x32xbf16> to vector<8x32xbf16>
    %cst_74 = arith.constant dense<0.000000e+00> : vector<16x32xf32>
    %212 = tpu.matmul %210, %211, %cst_74 {dimension_numbers = #tpu.dot_dimension_numbers<[1], [0], [0], [1], [0, 0, 1, 1], [], []>} : vector<16x8xbf16>, vector<8x32xbf16>, vector<16x32xf32> -> vector<16x32xf32>
    %213 = arith.addf %207, %212 : vector<16x32xf32>
    %214 = vector.extract_strided_slice %204 {offsets = [1, 0, 0], sizes = [1, 16, 8], strides = [1, 1, 1]} : vector<4x16x8xf32> to vector<1x16x8xf32>
    %215 = vector.shape_cast %214 : vector<1x16x8xf32> to vector<16x8xf32>
    %216 = arith.truncf %215 : vector<16x8xf32> to vector<16x8xbf16>
    %217 = vector.extract_strided_slice %206 {offsets = [8, 0], sizes = [8, 32], strides = [1, 1]} : vector<32x32xbf16> to vector<8x32xbf16>
    %cst_75 = arith.constant dense<0.000000e+00> : vector<16x32xf32>
    %218 = tpu.matmul %216, %217, %cst_75 {dimension_numbers = #tpu.dot_dimension_numbers<[1], [0], [0], [1], [0, 0, 1, 1], [], []>} : vector<16x8xbf16>, vector<8x32xbf16>, vector<16x32xf32> -> vector<16x32xf32>
    %219 = arith.addf %213, %218 : vector<16x32xf32>
    %220 = vector.extract_strided_slice %204 {offsets = [2, 0, 0], sizes = [1, 16, 8], strides = [1, 1, 1]} : vector<4x16x8xf32> to vector<1x16x8xf32>
    %221 = vector.shape_cast %220 : vector<1x16x8xf32> to vector<16x8xf32>
    %222 = arith.truncf %221 : vector<16x8xf32> to vector<16x8xbf16>
    %223 = vector.extract_strided_slice %206 {offsets = [16, 0], sizes = [8, 32], strides = [1, 1]} : vector<32x32xbf16> to vector<8x32xbf16>
    %cst_76 = arith.constant dense<0.000000e+00> : vector<16x32xf32>
    %224 = tpu.matmul %222, %223, %cst_76 {dimension_numbers = #tpu.dot_dimension_numbers<[1], [0], [0], [1], [0, 0, 1, 1], [], []>} : vector<16x8xbf16>, vector<8x32xbf16>, vector<16x32xf32> -> vector<16x32xf32>
    %225 = arith.addf %219, %224 : vector<16x32xf32>
    %226 = vector.extract_strided_slice %204 {offsets = [3, 0, 0], sizes = [1, 16, 8], strides = [1, 1, 1]} : vector<4x16x8xf32> to vector<1x16x8xf32>
    %227 = vector.shape_cast %226 : vector<1x16x8xf32> to vector<16x8xf32>
    %228 = arith.truncf %227 : vector<16x8xf32> to vector<16x8xbf16>
    %229 = vector.extract_strided_slice %206 {offsets = [24, 0], sizes = [8, 32], strides = [1, 1]} : vector<32x32xbf16> to vector<8x32xbf16>
    %cst_77 = arith.constant dense<0.000000e+00> : vector<16x32xf32>
    %230 = tpu.matmul %228, %229, %cst_77 {dimension_numbers = #tpu.dot_dimension_numbers<[1], [0], [0], [1], [0, 0, 1, 1], [], []>} : vector<16x8xbf16>, vector<8x32xbf16>, vector<16x32xf32> -> vector<16x32xf32>
    %231 = arith.addf %225, %230 : vector<16x32xf32>
    %232 = arith.addf %148, %231 : vector<16x32xf32>
    %233 = vector.broadcast %151 : vector<1x32xf32> to vector<16x32xf32>
    %234 = arith.addf %232, %233 : vector<16x32xf32>
    %cst_78 = arith.constant dense<0.000000e+00> : vector<16xf32>
    %235 = vector.multi_reduction <add>, %234, %cst_78 [1] : vector<16x32xf32> to vector<16xf32>
    %236 = vector.shape_cast %235 : vector<16xf32> to vector<16x1xf32>
    %cst_79 = arith.constant 3.200000e+01 : f32
    %237 = vector.broadcast %cst_79 : f32 to vector<16x1xf32>
    %238 = arith.divf %236, %237 : vector<16x1xf32>
    %239 = vector.broadcast %238 : vector<16x1xf32> to vector<16x32xf32>
    %240 = arith.subf %234, %239 : vector<16x32xf32>
    %241 = arith.mulf %240, %240 : vector<16x32xf32>
    %cst_80 = arith.constant dense<0.000000e+00> : vector<16xf32>
    %242 = vector.multi_reduction <add>, %241, %cst_80 [1] : vector<16x32xf32> to vector<16xf32>
    %243 = vector.shape_cast %242 : vector<16xf32> to vector<16x1xf32>
    %cst_81 = arith.constant 3.200000e+01 : f32
    %244 = vector.broadcast %cst_81 : f32 to vector<16x1xf32>
    %245 = arith.divf %243, %244 : vector<16x1xf32>
    %246 = vector.broadcast %238 : vector<16x1xf32> to vector<16x32xf32>
    %247 = arith.subf %234, %246 : vector<16x32xf32>
    %cst_82 = arith.constant 9.99999974E-6 : f32
    %248 = vector.broadcast %cst_82 : f32 to vector<16x1xf32>
    %249 = arith.addf %245, %248 : vector<16x1xf32>
    %250 = math.rsqrt %249 : vector<16x1xf32>
    %251 = vector.broadcast %250 : vector<16x1xf32> to vector<16x32xf32>
    %252 = arith.mulf %247, %251 : vector<16x32xf32>
    %253 = vector.broadcast %153 : vector<1x32xf32> to vector<16x32xf32>
    %254 = arith.mulf %252, %253 : vector<16x32xf32>
    %255 = vector.broadcast %154 : vector<1x32xf32> to vector<16x32xf32>
    %256 = arith.addf %254, %255 : vector<16x32xf32>
    %257 = arith.truncf %256 : vector<16x32xf32> to vector<16x32xbf16>
    %c1_83 = arith.constant 1 : index
    %c0_84 = arith.constant 0 : index
    %c0_85 = arith.constant 0 : index
    %258 = vector.load %arg5[%c1_83, %c0_84, %c0_85] : memref<2x32x64xbf16, #tpu.memory_space<vmem>>, vector<1x32x64xbf16>
    %259 = vector.shape_cast %258 : vector<1x32x64xbf16> to vector<32x64xbf16>
    %cst_86 = arith.constant dense<0.000000e+00> : vector<16x64xf32>
    %260 = tpu.matmul %257, %259, %cst_86 {dimension_numbers = #tpu.dot_dimension_numbers<[1], [0], [0], [1], [0, 0, 1, 1], [], []>} : vector<16x32xbf16>, vector<32x64xbf16>, vector<16x64xf32> -> vector<16x64xf32>
    %c1_87 = arith.constant 1 : index
    %c0_88 = arith.constant 0 : index
    %c0_89 = arith.constant 0 : index
    %261 = vector.load %arg6[%c1_87, %c0_88, %c0_89] : memref<2x1x64xf32, #tpu.memory_space<vmem>>, vector<1x1x64xf32>
    %262 = vector.shape_cast %261 : vector<1x1x64xf32> to vector<1x64xf32>
    %263 = vector.broadcast %262 : vector<1x64xf32> to vector<16x64xf32>
    %264 = arith.addf %260, %263 : vector<16x64xf32>
    %cst_90 = arith.constant 0.000000e+00 : f32
    %265 = vector.broadcast %cst_90 : f32 to vector<16x64xf32>
    %266 = arith.maximumf %264, %265 : vector<16x64xf32>
    %267 = arith.truncf %266 : vector<16x64xf32> to vector<16x64xbf16>
    %c1_91 = arith.constant 1 : index
    %c0_92 = arith.constant 0 : index
    %c0_93 = arith.constant 0 : index
    %268 = vector.load %arg7[%c1_91, %c0_92, %c0_93] : memref<2x64x32xbf16, #tpu.memory_space<vmem>>, vector<1x64x32xbf16>
    %269 = vector.shape_cast %268 : vector<1x64x32xbf16> to vector<64x32xbf16>
    %cst_94 = arith.constant dense<0.000000e+00> : vector<16x32xf32>
    %270 = tpu.matmul %267, %269, %cst_94 {dimension_numbers = #tpu.dot_dimension_numbers<[1], [0], [0], [1], [0, 0, 1, 1], [], []>} : vector<16x64xbf16>, vector<64x32xbf16>, vector<16x32xf32> -> vector<16x32xf32>
    %271 = vector.broadcast %152 : vector<1x32xf32> to vector<16x32xf32>
    %272 = arith.addf %270, %271 : vector<16x32xf32>
    %273 = arith.addf %256, %272 : vector<16x32xf32>
    %cst_95 = arith.constant dense<0.000000e+00> : vector<16xf32>
    %274 = vector.multi_reduction <add>, %273, %cst_95 [1] : vector<16x32xf32> to vector<16xf32>
    %275 = vector.shape_cast %274 : vector<16xf32> to vector<16x1xf32>
    %cst_96 = arith.constant 3.200000e+01 : f32
    %276 = vector.broadcast %cst_96 : f32 to vector<16x1xf32>
    %277 = arith.divf %275, %276 : vector<16x1xf32>
    %278 = vector.broadcast %277 : vector<16x1xf32> to vector<16x32xf32>
    %279 = arith.subf %273, %278 : vector<16x32xf32>
    %280 = arith.mulf %279, %279 : vector<16x32xf32>
    %cst_97 = arith.constant dense<0.000000e+00> : vector<16xf32>
    %281 = vector.multi_reduction <add>, %280, %cst_97 [1] : vector<16x32xf32> to vector<16xf32>
    %282 = vector.shape_cast %281 : vector<16xf32> to vector<16x1xf32>
    %cst_98 = arith.constant 3.200000e+01 : f32
    %283 = vector.broadcast %cst_98 : f32 to vector<16x1xf32>
    %284 = arith.divf %282, %283 : vector<16x1xf32>
    %285 = vector.broadcast %277 : vector<16x1xf32> to vector<16x32xf32>
    %286 = arith.subf %273, %285 : vector<16x32xf32>
    %cst_99 = arith.constant 9.99999974E-6 : f32
    %287 = vector.broadcast %cst_99 : f32 to vector<16x1xf32>
    %288 = arith.addf %284, %287 : vector<16x1xf32>
    %289 = math.rsqrt %288 : vector<16x1xf32>
    %290 = vector.broadcast %289 : vector<16x1xf32> to vector<16x32xf32>
    %291 = arith.mulf %286, %290 : vector<16x32xf32>
    %292 = vector.broadcast %155 : vector<1x32xf32> to vector<16x32xf32>
    %293 = arith.mulf %291, %292 : vector<16x32xf32>
    %294 = vector.broadcast %156 : vector<1x32xf32> to vector<16x32xf32>
    %295 = arith.addf %293, %294 : vector<16x32xf32>
    %c0_100 = arith.constant 0 : index
    %c0_101 = arith.constant 0 : index
    %296 = vector.load %arg9[%c0_100, %c0_101] : memref<2x32xf32, #tpu.memory_space<vmem>>, vector<1x32xf32>
    %c1_102 = arith.constant 1 : index
    %c0_103 = arith.constant 0 : index
    %297 = vector.load %arg9[%c1_102, %c0_103] : memref<2x32xf32, #tpu.memory_space<vmem>>, vector<1x32xf32>
    %cst_104 = arith.constant dense<0.000000e+00> : vector<16xf32>
    %298 = vector.multi_reduction <add>, %295, %cst_104 [1] : vector<16x32xf32> to vector<16xf32>
    %299 = vector.shape_cast %298 : vector<16xf32> to vector<16x1xf32>
    %cst_105 = arith.constant 3.200000e+01 : f32
    %300 = vector.broadcast %cst_105 : f32 to vector<16x1xf32>
    %301 = arith.divf %299, %300 : vector<16x1xf32>
    %302 = vector.broadcast %301 : vector<16x1xf32> to vector<16x32xf32>
    %303 = arith.subf %295, %302 : vector<16x32xf32>
    %304 = arith.mulf %303, %303 : vector<16x32xf32>
    %cst_106 = arith.constant dense<0.000000e+00> : vector<16xf32>
    %305 = vector.multi_reduction <add>, %304, %cst_106 [1] : vector<16x32xf32> to vector<16xf32>
    %306 = vector.shape_cast %305 : vector<16xf32> to vector<16x1xf32>
    %cst_107 = arith.constant 3.200000e+01 : f32
    %307 = vector.broadcast %cst_107 : f32 to vector<16x1xf32>
    %308 = arith.divf %306, %307 : vector<16x1xf32>
    %309 = vector.broadcast %301 : vector<16x1xf32> to vector<16x32xf32>
    %310 = arith.subf %295, %309 : vector<16x32xf32>
    %cst_108 = arith.constant 9.99999974E-6 : f32
    %311 = vector.broadcast %cst_108 : f32 to vector<16x1xf32>
    %312 = arith.addf %308, %311 : vector<16x1xf32>
    %313 = math.rsqrt %312 : vector<16x1xf32>
    %314 = vector.broadcast %313 : vector<16x1xf32> to vector<16x32xf32>
    %315 = arith.mulf %310, %314 : vector<16x32xf32>
    %316 = vector.broadcast %296 : vector<1x32xf32> to vector<16x32xf32>
    %317 = arith.mulf %315, %316 : vector<16x32xf32>
    %318 = vector.broadcast %297 : vector<1x32xf32> to vector<16x32xf32>
    %319 = arith.addf %317, %318 : vector<16x32xf32>
    %320 = vector.shape_cast %319 : vector<16x32xf32> to vector<2x8x32xf32>
    %c0_109 = arith.constant 0 : index
    %c0_110 = arith.constant 0 : index
    %c0_111 = arith.constant 0 : index
    %321 = vector.load %arg10[%c0_109, %c0_110, %c0_111] : memref<2x8x32xf32, #tpu.memory_space<vmem>>, vector<2x8x32xf32>
    tpu.vector_store %arg10[%c0_109, %c0_110, %c0_111], %320 {strides = array<i32>} : memref<2x8x32xf32, #tpu.memory_space<vmem>>, vector<2x8x32xf32>,
    return
  }
  func.func @transform_0(%arg0: i32) -> (i32, i32, i32) {
    %c0_i32 = arith.constant 0 : i32
    %c0_i32_0 = arith.constant 0 : i32
    %c0_i32_1 = arith.constant 0 : i32
    return %arg0, %c0_i32, %c0_i32_0 : i32, i32, i32
  }
  func.func @transform_1(%arg0: i32) -> (i32, i32, i32) {
    %c0_i32 = arith.constant 0 : i32
    %c0_i32_0 = arith.constant 0 : i32
    %c0_i32_1 = arith.constant 0 : i32
    %c0_i32_2 = arith.constant 0 : i32
    return %c0_i32, %c0_i32_0, %c0_i32_1 : i32, i32, i32
  }
  func.func @transform_2(%arg0: i32) -> (i32, i32, i32) {
    %c0_i32 = arith.constant 0 : i32
    %c0_i32_0 = arith.constant 0 : i32
    %c0_i32_1 = arith.constant 0 : i32
    %c0_i32_2 = arith.constant 0 : i32
    return %c0_i32, %c0_i32_0, %c0_i32_1 : i32, i32, i32
  }
  func.func @transform_3(%arg0: i32) -> (i32, i32, i32) {
    %c0_i32 = arith.constant 0 : i32
    %c0_i32_0 = arith.constant 0 : i32
    %c0_i32_1 = arith.constant 0 : i32
    %c0_i32_2 = arith.constant 0 : i32
    return %c0_i32, %c0_i32_0, %c0_i32_1 : i32, i32, i32
  }
  func.func @transform_4(%arg0: i32) -> (i32, i32, i32) {
    %c0_i32 = arith.constant 0 : i32
    %c0_i32_0 = arith.constant 0 : i32
    %c0_i32_1 = arith.constant 0 : i32
    %c0_i32_2 = arith.constant 0 : i32
    return %c0_i32, %c0_i32_0, %c0_i32_1 : i32, i32, i32
  }
  func.func @transform_5(%arg0: i32) -> (i32, i32, i32) {
    %c0_i32 = arith.constant 0 : i32
    %c0_i32_0 = arith.constant 0 : i32
    %c0_i32_1 = arith.constant 0 : i32
    %c0_i32_2 = arith.constant 0 : i32
    return %c0_i32, %c0_i32_0, %c0_i32_1 : i32, i32, i32
  }
  func.func @transform_6(%arg0: i32) -> (i32, i32, i32) {
    %c0_i32 = arith.constant 0 : i32
    %c0_i32_0 = arith.constant 0 : i32
    %c0_i32_1 = arith.constant 0 : i32
    %c0_i32_2 = arith.constant 0 : i32
    return %c0_i32, %c0_i32_0, %c0_i32_1 : i32, i32, i32
  }
  func.func @transform_7(%arg0: i32) -> (i32, i32, i32) {
    %c0_i32 = arith.constant 0 : i32
    %c0_i32_0 = arith.constant 0 : i32
    %c0_i32_1 = arith.constant 0 : i32
    %c0_i32_2 = arith.constant 0 : i32
    return %c0_i32, %c0_i32_0, %c0_i32_1 : i32, i32, i32
  }
  func.func @transform_8(%arg0: i32) -> (i32, i32) {
    %c0_i32 = arith.constant 0 : i32
    %c0_i32_0 = arith.constant 0 : i32
    %c0_i32_1 = arith.constant 0 : i32
    return %c0_i32, %c0_i32_0 : i32, i32
  }
  func.func @transform_9(%arg0: i32) -> (i32, i32, i32) {
    %c0_i32 = arith.constant 0 : i32
    %c0_i32_0 = arith.constant 0 : i32
    %c0_i32_1 = arith.constant 0 : i32
    return %arg0, %c0_i32, %c0_i32_0 : i32, i32, i32
  }
  func.func @transform_10(%arg0: i32) -> (i32, i32, i32, i32, i32) {
    %c0_i32 = arith.constant 0 : i32
    %c0_i32_0 = arith.constant 0 : i32
    %c0_i32_1 = arith.constant 0 : i32
    %c0_i32_2 = arith.constant 0 : i32
    %c0_i32_3 = arith.constant 0 : i32
    return %c0_i32, %c0_i32_0, %arg0, %c0_i32_1, %c0_i32_2 : i32, i32, i32, i32, i32
  }
}

module attributes {stable_mosaic.version = 11 : i64} {
  func.func @fused_encoder_kernel(%arg0: i32, %arg1: memref<2x8x32xf32, #tpu.memory_space<vmem>>, %arg2: memref<2x32x96xbf16, #tpu.memory_space<vmem>>, %arg3: memref<2x1x96xf32, #tpu.memory_space<vmem>>, %arg4: memref<2x32x32xbf16, #tpu.memory_space<vmem>>, %arg5: memref<2x32x64xbf16, #tpu.memory_space<vmem>>, %arg6: memref<2x1x64xf32, #tpu.memory_space<vmem>>, %arg7: memref<2x64x32xbf16, #tpu.memory_space<vmem>>, %arg8: memref<2x6x32xf32, #tpu.memory_space<vmem>>, %arg9: memref<2x32xf32, #tpu.memory_space<vmem>>, %arg10: memref<2x8x32xf32, #tpu.memory_space<vmem>>, %arg11: memref<2x4x2x8x8xf32, #tpu.memory_space<vmem>>) attributes {dimension_semantics = [#tpu.dimension_semantics<parallel>], iteration_bounds = array<i64: 1>, scalar_prefetch = 0 : i64, scratch_operands = 0 : i64, tpu.core_type = #tpu.core_type<tc>, window_params = [{transform_indices = @transform_0, window_bounds = array<i64: 2, 8, 32>}, {pipeline_mode = #tpu.pipeline_mode<synchronous>, transform_indices = @transform_1, window_bounds = array<i64: 2, 32, 96>}, {pipeline_mode = #tpu.pipeline_mode<synchronous>, transform_indices = @transform_2, window_bounds = array<i64: 2, 1, 96>}, {pipeline_mode = #tpu.pipeline_mode<synchronous>, transform_indices = @transform_3, window_bounds = array<i64: 2, 32, 32>}, {pipeline_mode = #tpu.pipeline_mode<synchronous>, transform_indices = @transform_4, window_bounds = array<i64: 2, 32, 64>}, {pipeline_mode = #tpu.pipeline_mode<synchronous>, transform_indices = @transform_5, window_bounds = array<i64: 2, 1, 64>}, {pipeline_mode = #tpu.pipeline_mode<synchronous>, transform_indices = @transform_6, window_bounds = array<i64: 2, 64, 32>}, {pipeline_mode = #tpu.pipeline_mode<synchronous>, transform_indices = @transform_7, window_bounds = array<i64: 2, 6, 32>}, {pipeline_mode = #tpu.pipeline_mode<synchronous>, transform_indices = @transform_8, window_bounds = array<i64: 2, 32>}, {transform_indices = @transform_9, window_bounds = array<i64: 2, 8, 32>}, {transform_indices = @transform_10, window_bounds = array<i64: 2, 4, 2, 8, 8>}]} {
    %c0 = arith.constant 0 : index
    %c0_0 = arith.constant 0 : index
    %c0_1 = arith.constant 0 : index
    %0 = vector.load %arg1[%c0, %c0_0, %c0_1] : memref<2x8x32xf32, #tpu.memory_space<vmem>>, vector<2x8x32xf32>
    %1 = vector.shape_cast %0 : vector<2x8x32xf32> to vector<16x32xf32>
    %c0_2 = arith.constant 0 : index
    %c0_3 = arith.constant 0 : index
    %c0_4 = arith.constant 0 : index
    %2 = vector.load %arg8[%c0_2, %c0_3, %c0_4] : memref<2x6x32xf32, #tpu.memory_space<vmem>>, vector<1x6x32xf32>
    %3 = vector.shape_cast %2 : vector<1x6x32xf32> to vector<6x32xf32>
    %4 = vector.extract_strided_slice %3 {offsets = [0, 0], sizes = [1, 32], strides = [1, 1]} : vector<6x32xf32> to vector<1x32xf32>
    %5 = vector.extract_strided_slice %3 {offsets = [1, 0], sizes = [1, 32], strides = [1, 1]} : vector<6x32xf32> to vector<1x32xf32>
    %6 = vector.extract_strided_slice %3 {offsets = [2, 0], sizes = [1, 32], strides = [1, 1]} : vector<6x32xf32> to vector<1x32xf32>
    %7 = vector.extract_strided_slice %3 {offsets = [3, 0], sizes = [1, 32], strides = [1, 1]} : vector<6x32xf32> to vector<1x32xf32>
    %8 = vector.extract_strided_slice %3 {offsets = [4, 0], sizes = [1, 32], strides = [1, 1]} : vector<6x32xf32> to vector<1x32xf32>
    %9 = vector.extract_strided_slice %3 {offsets = [5, 0], sizes = [1, 32], strides = [1, 1]} : vector<6x32xf32> to vector<1x32xf32>
    %10 = arith.truncf %1 : vector<16x32xf32> to vector<16x32xbf16>
    %c0_5 = arith.constant 0 : index
    %c0_6 = arith.constant 0 : index
    %c0_7 = arith.constant 0 : index
    %11 = vector.load %arg2[%c0_5, %c0_6, %c0_7] : memref<2x32x96xbf16, #tpu.memory_space<vmem>>, vector<1x32x96xbf16>
    %12 = vector.shape_cast %11 : vector<1x32x96xbf16> to vector<32x96xbf16>
    %cst = arith.constant dense<0.000000e+00> : vector<16x96xf32>
    %13 = tpu.matmul %10, %12, %cst {dimension_numbers = #tpu.dot_dimension_numbers<[1], [0], [0], [1], [0, 0, 1, 1], [], []>} : vector<16x32xbf16>, vector<32x96xbf16>, vector<16x96xf32> -> vector<16x96xf32>
    %c0_8 = arith.constant 0 : index
    %c0_9 = arith.constant 0 : index
    %c0_10 = arith.constant 0 : index
    %14 = vector.load %arg3[%c0_8, %c0_9, %c0_10] : memref<2x1x96xf32, #tpu.memory_space<vmem>>, vector<1x1x96xf32>
    %15 = vector.shape_cast %14 : vector<1x1x96xf32> to vector<1x96xf32>
    %16 = vector.broadcast %15 : vector<1x96xf32> to vector<16x96xf32>
    %17 = arith.addf %13, %16 : vector<16x96xf32>
    %18 = vector.extract_strided_slice %17 {offsets = [0, 0], sizes = [16, 8], strides = [1, 1]} : vector<16x96xf32> to vector<16x8xf32>
    %19 = vector.extract_strided_slice %17 {offsets = [0, 8], sizes = [16, 8], strides = [1, 1]} : vector<16x96xf32> to vector<16x8xf32>
    %20 = vector.extract_strided_slice %17 {offsets = [0, 16], sizes = [16, 8], strides = [1, 1]} : vector<16x96xf32> to vector<16x8xf32>
    %21 = vector.extract_strided_slice %17 {offsets = [0, 24], sizes = [16, 8], strides = [1, 1]} : vector<16x96xf32> to vector<16x8xf32>
    %22 = vector.extract_strided_slice %17 {offsets = [0, 32], sizes = [16, 8], strides = [1, 1]} : vector<16x96xf32> to vector<16x8xf32>
    %23 = vector.extract_strided_slice %17 {offsets = [0, 40], sizes = [16, 8], strides = [1, 1]} : vector<16x96xf32> to vector<16x8xf32>
    %24 = vector.extract_strided_slice %17 {offsets = [0, 48], sizes = [16, 8], strides = [1, 1]} : vector<16x96xf32> to vector<16x8xf32>
    %25 = vector.extract_strided_slice %17 {offsets = [0, 56], sizes = [16, 8], strides = [1, 1]} : vector<16x96xf32> to vector<16x8xf32>
    %26 = vector.extract_strided_slice %17 {offsets = [0, 64], sizes = [16, 8], strides = [1, 1]} : vector<16x96xf32> to vector<16x8xf32>
    %27 = vector.extract_strided_slice %17 {offsets = [0, 72], sizes = [16, 8], strides = [1, 1]} : vector<16x96xf32> to vector<16x8xf32>
    %28 = vector.extract_strided_slice %17 {offsets = [0, 80], sizes = [16, 8], strides = [1, 1]} : vector<16x96xf32> to vector<16x8xf32>
    %29 = vector.extract_strided_slice %17 {offsets = [0, 88], sizes = [16, 8], strides = [1, 1]} : vector<16x96xf32> to vector<16x8xf32>
    %30 = tpu.concatenate %18, %19, %20, %21 in 0 : vector<16x8xf32>, vector<16x8xf32>, vector<16x8xf32>, vector<16x8xf32> -> vector<64x8xf32>
    %31 = vector.shape_cast %30 : vector<64x8xf32> to vector<8x8x8xf32>
    %32 = arith.truncf %31 : vector<8x8x8xf32> to vector<8x8x8xbf16>
    %33 = tpu.concatenate %22, %23, %24, %25 in 0 : vector<16x8xf32>, vector<16x8xf32>, vector<16x8xf32>, vector<16x8xf32> -> vector<64x8xf32>
    %34 = vector.shape_cast %33 : vector<64x8xf32> to vector<8x8x8xf32>
    %35 = arith.truncf %34 : vector<8x8x8xf32> to vector<8x8x8xbf16>
    %36 = tpu.concatenate %26, %27, %28, %29 in 0 : vector<16x8xf32>, vector<16x8xf32>, vector<16x8xf32>, vector<16x8xf32> -> vector<64x8xf32>
    %37 = vector.shape_cast %36 : vector<64x8xf32> to vector<8x8x8xf32>
    %38 = arith.truncf %37 : vector<8x8x8xf32> to vector<8x8x8xbf16>
    "tpu.trace_start"() <{level = 10 : i32, message = "ble,bme->blm"}> : () -> ()
    %cst_11 = arith.constant dense<0.000000e+00> : vector<8x8x8xf32>
    %39 = tpu.matmul %32, %35, %cst_11 {dimension_numbers = #tpu.dot_dimension_numbers<[2], [2], [1], [1], [0, 0, 0, 1, 1, 1], [0], [0]>} : vector<8x8x8xbf16>, vector<8x8x8xbf16>, vector<8x8x8xf32> -> vector<8x8x8xf32>
    "tpu.trace_stop"() : () -> ()
    %cst_12 = arith.constant 0.353553385 : f32
    %40 = vector.broadcast %cst_12 : f32 to vector<8x8x8xf32>
    %41 = arith.mulf %39, %40 : vector<8x8x8xf32>
    %cst_13 = arith.constant dense<0xFF800000> : vector<8x8xf32>
    %42 = vector.multi_reduction <maximumf>, %41, %cst_13 [2] : vector<8x8x8xf32> to vector<8x8xf32>
    %43 = vector.shape_cast %42 : vector<8x8xf32> to vector<8x8x1xf32>
    %44 = vector.broadcast %43 : vector<8x8x1xf32> to vector<8x8x8xf32>
    %45 = arith.subf %41, %44 : vector<8x8x8xf32>
    %46 = math.exp %45 : vector<8x8x8xf32>
    %cst_14 = arith.constant dense<0.000000e+00> : vector<8x8xf32>
    %47 = vector.multi_reduction <add>, %46, %cst_14 [2] : vector<8x8x8xf32> to vector<8x8xf32>
    %48 = vector.shape_cast %47 : vector<8x8xf32> to vector<8x8x1xf32>
    %49 = vector.broadcast %48 : vector<8x8x1xf32> to vector<8x8x8xf32>
    %50 = arith.divf %46, %49 : vector<8x8x8xf32>
    %51 = vector.shape_cast %50 : vector<8x8x8xf32> to vector<4x2x8x8xf32>
    %c0_15 = arith.constant 0 : index
    %c0_16 = arith.constant 0 : index
    %c0_17 = arith.constant 0 : index
    %c0_18 = arith.constant 0 : index
    %c0_19 = arith.constant 0 : index
    %52 = vector.load %arg11[%c0_15, %c0_16, %c0_17, %c0_18, %c0_19] : memref<2x4x2x8x8xf32, #tpu.memory_space<vmem>>, vector<1x4x2x8x8xf32>
    %53 = vector.shape_cast %52 : vector<1x4x2x8x8xf32> to vector<4x2x8x8xf32>
    %54 = vector.shape_cast %51 : vector<4x2x8x8xf32> to vector<1x4x2x8x8xf32>
    tpu.vector_store %arg11[%c0_15, %c0_16, %c0_17, %c0_18, %c0_19], %54 {strides = array<i32>} : memref<2x4x2x8x8xf32, #tpu.memory_space<vmem>>, vector<1x4x2x8x8xf32>,
    %55 = arith.truncf %50 : vector<8x8x8xf32> to vector<8x8x8xbf16>
    "tpu.trace_start"() <{level = 10 : i32, message = "blm,bme->ble"}> : () -> ()
    %cst_20 = arith.constant dense<0.000000e+00> : vector<8x8x8xf32>
    %56 = tpu.matmul %55, %38, %cst_20 {dimension_numbers = #tpu.dot_dimension_numbers<[2], [1], [1], [2], [0, 0, 0, 1, 1, 2], [0], [0]>} : vector<8x8x8xbf16>, vector<8x8x8xbf16>, vector<8x8x8xf32> -> vector<8x8x8xf32>
    "tpu.trace_stop"() : () -> ()
    %57 = vector.shape_cast %56 : vector<8x8x8xf32> to vector<4x16x8xf32>
    %c0_21 = arith.constant 0 : index
    %c0_22 = arith.constant 0 : index
    %c0_23 = arith.constant 0 : index
    %58 = vector.load %arg4[%c0_21, %c0_22, %c0_23] : memref<2x32x32xbf16, #tpu.memory_space<vmem>>, vector<1x32x32xbf16>
    %59 = vector.shape_cast %58 : vector<1x32x32xbf16> to vector<32x32xbf16>
    %cst_24 = arith.constant 0.000000e+00 : f32
    %60 = vector.broadcast %cst_24 : f32 to vector<16x32xf32>
    %61 = vector.extract_strided_slice %57 {offsets = [0, 0, 0], sizes = [1, 16, 8], strides = [1, 1, 1]} : vector<4x16x8xf32> to vector<1x16x8xf32>
    %62 = vector.shape_cast %61 : vector<1x16x8xf32> to vector<16x8xf32>
    %63 = arith.truncf %62 : vector<16x8xf32> to vector<16x8xbf16>
    %64 = vector.extract_strided_slice %59 {offsets = [0, 0], sizes = [8, 32], strides = [1, 1]} : vector<32x32xbf16> to vector<8x32xbf16>
    %cst_25 = arith.constant dense<0.000000e+00> : vector<16x32xf32>
    %65 = tpu.matmul %63, %64, %cst_25 {dimension_numbers = #tpu.dot_dimension_numbers<[1], [0], [0], [1], [0, 0, 1, 1], [], []>} : vector<16x8xbf16>, vector<8x32xbf16>, vector<16x32xf32> -> vector<16x32xf32>
    %66 = arith.addf %60, %65 : vector<16x32xf32>
    %67 = vector.extract_strided_slice %57 {offsets = [1, 0, 0], sizes = [1, 16, 8], strides = [1, 1, 1]} : vector<4x16x8xf32> to vector<1x16x8xf32>
    %68 = vector.shape_cast %67 : vector<1x16x8xf32> to vector<16x8xf32>
    %69 = arith.truncf %68 : vector<16x8xf32> to vector<16x8xbf16>
    %70 = vector.extract_strided_slice %59 {offsets = [8, 0], sizes = [8, 32], strides = [1, 1]} : vector<32x32xbf16> to vector<8x32xbf16>
    %cst_26 = arith.constant dense<0.000000e+00> : vector<16x32xf32>
    %71 = tpu.matmul %69, %70, %cst_26 {dimension_numbers = #tpu.dot_dimension_numbers<[1], [0], [0], [1], [0, 0, 1, 1], [], []>} : vector<16x8xbf16>, vector<8x32xbf16>, vector<16x32xf32> -> vector<16x32xf32>
    %72 = arith.addf %66, %71 : vector<16x32xf32>
    %73 = vector.extract_strided_slice %57 {offsets = [2, 0, 0], sizes = [1, 16, 8], strides = [1, 1, 1]} : vector<4x16x8xf32> to vector<1x16x8xf32>
    %74 = vector.shape_cast %73 : vector<1x16x8xf32> to vector<16x8xf32>
    %75 = arith.truncf %74 : vector<16x8xf32> to vector<16x8xbf16>
    %76 = vector.extract_strided_slice %59 {offsets = [16, 0], sizes = [8, 32], strides = [1, 1]} : vector<32x32xbf16> to vector<8x32xbf16>
    %cst_27 = arith.constant dense<0.000000e+00> : vector<16x32xf32>
    %77 = tpu.matmul %75, %76, %cst_27 {dimension_numbers = #tpu.dot_dimension_numbers<[1], [0], [0], [1], [0, 0, 1, 1], [], []>} : vector<16x8xbf16>, vector<8x32xbf16>, vector<16x32xf32> -> vector<16x32xf32>
    %78 = arith.addf %72, %77 : vector<16x32xf32>
    %79 = vector.extract_strided_slice %57 {offsets = [3, 0, 0], sizes = [1, 16, 8], strides = [1, 1, 1]} : vector<4x16x8xf32> to vector<1x16x8xf32>
    %80 = vector.shape_cast %79 : vector<1x16x8xf32> to vector<16x8xf32>
    %81 = arith.truncf %80 : vector<16x8xf32> to vector<16x8xbf16>
    %82 = vector.extract_strided_slice %59 {offsets = [24, 0], sizes = [8, 32], strides = [1, 1]} : vector<32x32xbf16> to vector<8x32xbf16>
    %cst_28 = arith.constant dense<0.000000e+00> : vector<16x32xf32>
    %83 = tpu.matmul %81, %82, %cst_28 {dimension_numbers = #tpu.dot_dimension_numbers<[1], [0], [0], [1], [0, 0, 1, 1], [], []>} : vector<16x8xbf16>, vector<8x32xbf16>, vector<16x32xf32> -> vector<16x32xf32>
    %84 = arith.addf %78, %83 : vector<16x32xf32>
    %85 = arith.addf %1, %84 : vector<16x32xf32>
    %86 = vector.broadcast %4 : vector<1x32xf32> to vector<16x32xf32>
    %87 = arith.addf %85, %86 : vector<16x32xf32>
    %cst_29 = arith.constant dense<0.000000e+00> : vector<16xf32>
    %88 = vector.multi_reduction <add>, %87, %cst_29 [1] : vector<16x32xf32> to vector<16xf32>
    %89 = vector.shape_cast %88 : vector<16xf32> to vector<16x1xf32>
    %cst_30 = arith.constant 3.200000e+01 : f32
    %90 = vector.broadcast %cst_30 : f32 to vector<16x1xf32>
    %91 = arith.divf %89, %90 : vector<16x1xf32>
    %92 = vector.broadcast %91 : vector<16x1xf32> to vector<16x32xf32>
    %93 = arith.subf %87, %92 : vector<16x32xf32>
    %94 = arith.mulf %93, %93 : vector<16x32xf32>
    %cst_31 = arith.constant dense<0.000000e+00> : vector<16xf32>
    %95 = vector.multi_reduction <add>, %94, %cst_31 [1] : vector<16x32xf32> to vector<16xf32>
    %96 = vector.shape_cast %95 : vector<16xf32> to vector<16x1xf32>
    %cst_32 = arith.constant 3.200000e+01 : f32
    %97 = vector.broadcast %cst_32 : f32 to vector<16x1xf32>
    %98 = arith.divf %96, %97 : vector<16x1xf32>
    %99 = vector.broadcast %91 : vector<16x1xf32> to vector<16x32xf32>
    %100 = arith.subf %87, %99 : vector<16x32xf32>
    %cst_33 = arith.constant 9.99999974E-6 : f32
    %101 = vector.broadcast %cst_33 : f32 to vector<16x1xf32>
    %102 = arith.addf %98, %101 : vector<16x1xf32>
    %103 = math.rsqrt %102 : vector<16x1xf32>
    %104 = vector.broadcast %103 : vector<16x1xf32> to vector<16x32xf32>
    %105 = arith.mulf %100, %104 : vector<16x32xf32>
    %106 = vector.broadcast %6 : vector<1x32xf32> to vector<16x32xf32>
    %107 = arith.mulf %105, %106 : vector<16x32xf32>
    %108 = vector.broadcast %7 : vector<1x32xf32> to vector<16x32xf32>
    %109 = arith.addf %107, %108 : vector<16x32xf32>
    %110 = arith.truncf %109 : vector<16x32xf32> to vector<16x32xbf16>
    %c0_34 = arith.constant 0 : index
    %c0_35 = arith.constant 0 : index
    %c0_36 = arith.constant 0 : index
    %111 = vector.load %arg5[%c0_34, %c0_35, %c0_36] : memref<2x32x64xbf16, #tpu.memory_space<vmem>>, vector<1x32x64xbf16>
    %112 = vector.shape_cast %111 : vector<1x32x64xbf16> to vector<32x64xbf16>
    %cst_37 = arith.constant dense<0.000000e+00> : vector<16x64xf32>
    %113 = tpu.matmul %110, %112, %cst_37 {dimension_numbers = #tpu.dot_dimension_numbers<[1], [0], [0], [1], [0, 0, 1, 1], [], []>} : vector<16x32xbf16>, vector<32x64xbf16>, vector<16x64xf32> -> vector<16x64xf32>
    %c0_38 = arith.constant 0 : index
    %c0_39 = arith.constant 0 : index
    %c0_40 = arith.constant 0 : index
    %114 = vector.load %arg6[%c0_38, %c0_39, %c0_40] : memref<2x1x64xf32, #tpu.memory_space<vmem>>, vector<1x1x64xf32>
    %115 = vector.shape_cast %114 : vector<1x1x64xf32> to vector<1x64xf32>
    %116 = vector.broadcast %115 : vector<1x64xf32> to vector<16x64xf32>
    %117 = arith.addf %113, %116 : vector<16x64xf32>
    %cst_41 = arith.constant 0.000000e+00 : f32
    %118 = vector.broadcast %cst_41 : f32 to vector<16x64xf32>
    %119 = arith.maximumf %117, %118 : vector<16x64xf32>
    %120 = arith.truncf %119 : vector<16x64xf32> to vector<16x64xbf16>
    %c0_42 = arith.constant 0 : index
    %c0_43 = arith.constant 0 : index
    %c0_44 = arith.constant 0 : index
    %121 = vector.load %arg7[%c0_42, %c0_43, %c0_44] : memref<2x64x32xbf16, #tpu.memory_space<vmem>>, vector<1x64x32xbf16>
    %122 = vector.shape_cast %121 : vector<1x64x32xbf16> to vector<64x32xbf16>
    %cst_45 = arith.constant dense<0.000000e+00> : vector<16x32xf32>
    %123 = tpu.matmul %120, %122, %cst_45 {dimension_numbers = #tpu.dot_dimension_numbers<[1], [0], [0], [1], [0, 0, 1, 1], [], []>} : vector<16x64xbf16>, vector<64x32xbf16>, vector<16x32xf32> -> vector<16x32xf32>
    %124 = vector.broadcast %5 : vector<1x32xf32> to vector<16x32xf32>
    %125 = arith.addf %123, %124 : vector<16x32xf32>
    %126 = arith.addf %109, %125 : vector<16x32xf32>
    %cst_46 = arith.constant dense<0.000000e+00> : vector<16xf32>
    %127 = vector.multi_reduction <add>, %126, %cst_46 [1] : vector<16x32xf32> to vector<16xf32>
    %128 = vector.shape_cast %127 : vector<16xf32> to vector<16x1xf32>
    %cst_47 = arith.constant 3.200000e+01 : f32
    %129 = vector.broadcast %cst_47 : f32 to vector<16x1xf32>
    %130 = arith.divf %128, %129 : vector<16x1xf32>
    %131 = vector.broadcast %130 : vector<16x1xf32> to vector<16x32xf32>
    %132 = arith.subf %126, %131 : vector<16x32xf32>
    %133 = arith.mulf %132, %132 : vector<16x32xf32>
    %cst_48 = arith.constant dense<0.000000e+00> : vector<16xf32>
    %134 = vector.multi_reduction <add>, %133, %cst_48 [1] : vector<16x32xf32> to vector<16xf32>
    %135 = vector.shape_cast %134 : vector<16xf32> to vector<16x1xf32>
    %cst_49 = arith.constant 3.200000e+01 : f32
    %136 = vector.broadcast %cst_49 : f32 to vector<16x1xf32>
    %137 = arith.divf %135, %136 : vector<16x1xf32>
    %138 = vector.broadcast %130 : vector<16x1xf32> to vector<16x32xf32>
    %139 = arith.subf %126, %138 : vector<16x32xf32>
    %cst_50 = arith.constant 9.99999974E-6 : f32
    %140 = vector.broadcast %cst_50 : f32 to vector<16x1xf32>
    %141 = arith.addf %137, %140 : vector<16x1xf32>
    %142 = math.rsqrt %141 : vector<16x1xf32>
    %143 = vector.broadcast %142 : vector<16x1xf32> to vector<16x32xf32>
    %144 = arith.mulf %139, %143 : vector<16x32xf32>
    %145 = vector.broadcast %8 : vector<1x32xf32> to vector<16x32xf32>
    %146 = arith.mulf %144, %145 : vector<16x32xf32>
    %147 = vector.broadcast %9 : vector<1x32xf32> to vector<16x32xf32>
    %148 = arith.addf %146, %147 : vector<16x32xf32>
    %c1 = arith.constant 1 : index
    %c0_51 = arith.constant 0 : index
    %c0_52 = arith.constant 0 : index
    %149 = vector.load %arg8[%c1, %c0_51, %c0_52] : memref<2x6x32xf32, #tpu.memory_space<vmem>>, vector<1x6x32xf32>
    %150 = vector.shape_cast %149 : vector<1x6x32xf32> to vector<6x32xf32>
    %151 = vector.extract_strided_slice %150 {offsets = [0, 0], sizes = [1, 32], strides = [1, 1]} : vector<6x32xf32> to vector<1x32xf32>
    %152 = vector.extract_strided_slice %150 {offsets = [1, 0], sizes = [1, 32], strides = [1, 1]} : vector<6x32xf32> to vector<1x32xf32>
    %153 = vector.extract_strided_slice %150 {offsets = [2, 0], sizes = [1, 32], strides = [1, 1]} : vector<6x32xf32> to vector<1x32xf32>
    %154 = vector.extract_strided_slice %150 {offsets = [3, 0], sizes = [1, 32], strides = [1, 1]} : vector<6x32xf32> to vector<1x32xf32>
    %155 = vector.extract_strided_slice %150 {offsets = [4, 0], sizes = [1, 32], strides = [1, 1]} : vector<6x32xf32> to vector<1x32xf32>
    %156 = vector.extract_strided_slice %150 {offsets = [5, 0], sizes = [1, 32], strides = [1, 1]} : vector<6x32xf32> to vector<1x32xf32>
    %157 = arith.truncf %148 : vector<16x32xf32> to vector<16x32xbf16>
    %c1_53 = arith.constant 1 : index
    %c0_54 = arith.constant 0 : index
    %c0_55 = arith.constant 0 : index
    %158 = vector.load %arg2[%c1_53, %c0_54, %c0_55] : memref<2x32x96xbf16, #tpu.memory_space<vmem>>, vector<1x32x96xbf16>
    %159 = vector.shape_cast %158 : vector<1x32x96xbf16> to vector<32x96xbf16>
    %cst_56 = arith.constant dense<0.000000e+00> : vector<16x96xf32>
    %160 = tpu.matmul %157, %159, %cst_56 {dimension_numbers = #tpu.dot_dimension_numbers<[1], [0], [0], [1], [0, 0, 1, 1], [], []>} : vector<16x32xbf16>, vector<32x96xbf16>, vector<16x96xf32> -> vector<16x96xf32>
    %c1_57 = arith.constant 1 : index
    %c0_58 = arith.constant 0 : index
    %c0_59 = arith.constant 0 : index
    %161 = vector.load %arg3[%c1_57, %c0_58, %c0_59] : memref<2x1x96xf32, #tpu.memory_space<vmem>>, vector<1x1x96xf32>
    %162 = vector.shape_cast %161 : vector<1x1x96xf32> to vector<1x96xf32>
    %163 = vector.broadcast %162 : vector<1x96xf32> to vector<16x96xf32>
    %164 = arith.addf %160, %163 : vector<16x96xf32>
    %165 = vector.extract_strided_slice %164 {offsets = [0, 0], sizes = [16, 8], strides = [1, 1]} : vector<16x96xf32> to vector<16x8xf32>
    %166 = vector.extract_strided_slice %164 {offsets = [0, 8], sizes = [16, 8], strides = [1, 1]} : vector<16x96xf32> to vector<16x8xf32>
    %167 = vector.extract_strided_slice %164 {offsets = [0, 16], sizes = [16, 8], strides = [1, 1]} : vector<16x96xf32> to vector<16x8xf32>
    %168 = vector.extract_strided_slice %164 {offsets = [0, 24], sizes = [16, 8], strides = [1, 1]} : vector<16x96xf32> to vector<16x8xf32>
    %169 = vector.extract_strided_slice %164 {offsets = [0, 32], sizes = [16, 8], strides = [1, 1]} : vector<16x96xf32> to vector<16x8xf32>
    %170 = vector.extract_strided_slice %164 {offsets = [0, 40], sizes = [16, 8], strides = [1, 1]} : vector<16x96xf32> to vector<16x8xf32>
    %171 = vector.extract_strided_slice %164 {offsets = [0, 48], sizes = [16, 8], strides = [1, 1]} : vector<16x96xf32> to vector<16x8xf32>
    %172 = vector.extract_strided_slice %164 {offsets = [0, 56], sizes = [16, 8], strides = [1, 1]} : vector<16x96xf32> to vector<16x8xf32>
    %173 = vector.extract_strided_slice %164 {offsets = [0, 64], sizes = [16, 8], strides = [1, 1]} : vector<16x96xf32> to vector<16x8xf32>
    %174 = vector.extract_strided_slice %164 {offsets = [0, 72], sizes = [16, 8], strides = [1, 1]} : vector<16x96xf32> to vector<16x8xf32>
    %175 = vector.extract_strided_slice %164 {offsets = [0, 80], sizes = [16, 8], strides = [1, 1]} : vector<16x96xf32> to vector<16x8xf32>
    %176 = vector.extract_strided_slice %164 {offsets = [0, 88], sizes = [16, 8], strides = [1, 1]} : vector<16x96xf32> to vector<16x8xf32>
    %177 = tpu.concatenate %165, %166, %167, %168 in 0 : vector<16x8xf32>, vector<16x8xf32>, vector<16x8xf32>, vector<16x8xf32> -> vector<64x8xf32>
    %178 = vector.shape_cast %177 : vector<64x8xf32> to vector<8x8x8xf32>
    %179 = arith.truncf %178 : vector<8x8x8xf32> to vector<8x8x8xbf16>
    %180 = tpu.concatenate %169, %170, %171, %172 in 0 : vector<16x8xf32>, vector<16x8xf32>, vector<16x8xf32>, vector<16x8xf32> -> vector<64x8xf32>
    %181 = vector.shape_cast %180 : vector<64x8xf32> to vector<8x8x8xf32>
    %182 = arith.truncf %181 : vector<8x8x8xf32> to vector<8x8x8xbf16>
    %183 = tpu.concatenate %173, %174, %175, %176 in 0 : vector<16x8xf32>, vector<16x8xf32>, vector<16x8xf32>, vector<16x8xf32> -> vector<64x8xf32>
    %184 = vector.shape_cast %183 : vector<64x8xf32> to vector<8x8x8xf32>
    %185 = arith.truncf %184 : vector<8x8x8xf32> to vector<8x8x8xbf16>
    "tpu.trace_start"() <{level = 10 : i32, message = "ble,bme->blm"}> : () -> ()
    %cst_60 = arith.constant dense<0.000000e+00> : vector<8x8x8xf32>
    %186 = tpu.matmul %179, %182, %cst_60 {dimension_numbers = #tpu.dot_dimension_numbers<[2], [2], [1], [1], [0, 0, 0, 1, 1, 1], [0], [0]>} : vector<8x8x8xbf16>, vector<8x8x8xbf16>, vector<8x8x8xf32> -> vector<8x8x8xf32>
    "tpu.trace_stop"() : () -> ()
    %cst_61 = arith.constant 0.353553385 : f32
    %187 = vector.broadcast %cst_61 : f32 to vector<8x8x8xf32>
    %188 = arith.mulf %186, %187 : vector<8x8x8xf32>
    %cst_62 = arith.constant dense<0xFF800000> : vector<8x8xf32>
    %189 = vector.multi_reduction <maximumf>, %188, %cst_62 [2] : vector<8x8x8xf32> to vector<8x8xf32>
    %190 = vector.shape_cast %189 : vector<8x8xf32> to vector<8x8x1xf32>
    %191 = vector.broadcast %190 : vector<8x8x1xf32> to vector<8x8x8xf32>
    %192 = arith.subf %188, %191 : vector<8x8x8xf32>
    %193 = math.exp %192 : vector<8x8x8xf32>
    %cst_63 = arith.constant dense<0.000000e+00> : vector<8x8xf32>
    %194 = vector.multi_reduction <add>, %193, %cst_63 [2] : vector<8x8x8xf32> to vector<8x8xf32>
    %195 = vector.shape_cast %194 : vector<8x8xf32> to vector<8x8x1xf32>
    %196 = vector.broadcast %195 : vector<8x8x1xf32> to vector<8x8x8xf32>
    %197 = arith.divf %193, %196 : vector<8x8x8xf32>
    %198 = vector.shape_cast %197 : vector<8x8x8xf32> to vector<4x2x8x8xf32>
    %c1_64 = arith.constant 1 : index
    %c0_65 = arith.constant 0 : index
    %c0_66 = arith.constant 0 : index
    %c0_67 = arith.constant 0 : index
    %c0_68 = arith.constant 0 : index
    %199 = vector.load %arg11[%c1_64, %c0_65, %c0_66, %c0_67, %c0_68] : memref<2x4x2x8x8xf32, #tpu.memory_space<vmem>>, vector<1x4x2x8x8xf32>
    %200 = vector.shape_cast %199 : vector<1x4x2x8x8xf32> to vector<4x2x8x8xf32>
    %201 = vector.shape_cast %198 : vector<4x2x8x8xf32> to vector<1x4x2x8x8xf32>
    tpu.vector_store %arg11[%c1_64, %c0_65, %c0_66, %c0_67, %c0_68], %201 {strides = array<i32>} : memref<2x4x2x8x8xf32, #tpu.memory_space<vmem>>, vector<1x4x2x8x8xf32>,
    %202 = arith.truncf %197 : vector<8x8x8xf32> to vector<8x8x8xbf16>
    "tpu.trace_start"() <{level = 10 : i32, message = "blm,bme->ble"}> : () -> ()
    %cst_69 = arith.constant dense<0.000000e+00> : vector<8x8x8xf32>
    %203 = tpu.matmul %202, %185, %cst_69 {dimension_numbers = #tpu.dot_dimension_numbers<[2], [1], [1], [2], [0, 0, 0, 1, 1, 2], [0], [0]>} : vector<8x8x8xbf16>, vector<8x8x8xbf16>, vector<8x8x8xf32> -> vector<8x8x8xf32>
    "tpu.trace_stop"() : () -> ()
    %204 = vector.shape_cast %203 : vector<8x8x8xf32> to vector<4x16x8xf32>
    %c1_70 = arith.constant 1 : index
    %c0_71 = arith.constant 0 : index
    %c0_72 = arith.constant 0 : index
    %205 = vector.load %arg4[%c1_70, %c0_71, %c0_72] : memref<2x32x32xbf16, #tpu.memory_space<vmem>>, vector<1x32x32xbf16>
    %206 = vector.shape_cast %205 : vector<1x32x32xbf16> to vector<32x32xbf16>
    %cst_73 = arith.constant 0.000000e+00 : f32
    %207 = vector.broadcast %cst_73 : f32 to vector<16x32xf32>
    %208 = vector.extract_strided_slice %204 {offsets = [0, 0, 0], sizes = [1, 16, 8], strides = [1, 1, 1]} : vector<4x16x8xf32> to vector<1x16x8xf32>
    %209 = vector.shape_cast %208 : vector<1x16x8xf32> to vector<16x8xf32>
    %210 = arith.truncf %209 : vector<16x8xf32> to vector<16x8xbf16>
    %211 = vector.extract_strided_slice %206 {offsets = [0, 0], sizes = [8, 32], strides = [1, 1]} : vector<32x32xbf16> to vector<8x32xbf16>
    %cst_74 = arith.constant dense<0.000000e+00> : vector<16x32xf32>
    %212 = tpu.matmul %210, %211, %cst_74 {dimension_numbers = #tpu.dot_dimension_numbers<[1], [0], [0], [1], [0, 0, 1, 1], [], []>} : vector<16x8xbf16>, vector<8x32xbf16>, vector<16x32xf32> -> vector<16x32xf32>
    %213 = arith.addf %207, %212 : vector<16x32xf32>
    %214 = vector.extract_strided_slice %204 {offsets = [1, 0, 0], sizes = [1, 16, 8], strides = [1, 1, 1]} : vector<4x16x8xf32> to vector<1x16x8xf32>
    %215 = vector.shape_cast %214 : vector<1x16x8xf32> to vector<16x8xf32>
    %216 = arith.truncf %215 : vector<16x8xf32> to vector<16x8xbf16>
    %217 = vector.extract_strided_slice %206 {offsets = [8, 0], sizes = [8, 32], strides = [1, 1]} : vector<32x32xbf16> to vector<8x32xbf16>
    %cst_75 = arith.constant dense<0.000000e+00> : vector<16x32xf32>
    %218 = tpu.matmul %216, %217, %cst_75 {dimension_numbers = #tpu.dot_dimension_numbers<[1], [0], [0], [1], [0, 0, 1, 1], [], []>} : vector<16x8xbf16>, vector<8x32xbf16>, vector<16x32xf32> -> vector<16x32xf32>
    %219 = arith.addf %213, %218 : vector<16x32xf32>
    %220 = vector.extract_strided_slice %204 {offsets = [2, 0, 0], sizes = [1, 16, 8], strides = [1, 1, 1]} : vector<4x16x8xf32> to vector<1x16x8xf32>
    %221 = vector.shape_cast %220 : vector<1x16x8xf32> to vector<16x8xf32>
    %222 = arith.truncf %221 : vector<16x8xf32> to vector<16x8xbf16>
    %223 = vector.extract_strided_slice %206 {offsets = [16, 0], sizes = [8, 32], strides = [1, 1]} : vector<32x32xbf16> to vector<8x32xbf16>
    %cst_76 = arith.constant dense<0.000000e+00> : vector<16x32xf32>
    %224 = tpu.matmul %222, %223, %cst_76 {dimension_numbers = #tpu.dot_dimension_numbers<[1], [0], [0], [1], [0, 0, 1, 1], [], []>} : vector<16x8xbf16>, vector<8x32xbf16>, vector<16x32xf32> -> vector<16x32xf32>
    %225 = arith.addf %219, %224 : vector<16x32xf32>
    %226 = vector.extract_strided_slice %204 {offsets = [3, 0, 0], sizes = [1, 16, 8], strides = [1, 1, 1]} : vector<4x16x8xf32> to vector<1x16x8xf32>
    %227 = vector.shape_cast %226 : vector<1x16x8xf32> to vector<16x8xf32>
    %228 = arith.truncf %227 : vector<16x8xf32> to vector<16x8xbf16>
    %229 = vector.extract_strided_slice %206 {offsets = [24, 0], sizes = [8, 32], strides = [1, 1]} : vector<32x32xbf16> to vector<8x32xbf16>
    %cst_77 = arith.constant dense<0.000000e+00> : vector<16x32xf32>
    %230 = tpu.matmul %228, %229, %cst_77 {dimension_numbers = #tpu.dot_dimension_numbers<[1], [0], [0], [1], [0, 0, 1, 1], [], []>} : vector<16x8xbf16>, vector<8x32xbf16>, vector<16x32xf32> -> vector<16x32xf32>
    %231 = arith.addf %225, %230 : vector<16x32xf32>
    %232 = arith.addf %148, %231 : vector<16x32xf32>
    %233 = vector.broadcast %151 : vector<1x32xf32> to vector<16x32xf32>
    %234 = arith.addf %232, %233 : vector<16x32xf32>
    %cst_78 = arith.constant dense<0.000000e+00> : vector<16xf32>
    %235 = vector.multi_reduction <add>, %234, %cst_78 [1] : vector<16x32xf32> to vector<16xf32>
    %236 = vector.shape_cast %235 : vector<16xf32> to vector<16x1xf32>
    %cst_79 = arith.constant 3.200000e+01 : f32
    %237 = vector.broadcast %cst_79 : f32 to vector<16x1xf32>
    %238 = arith.divf %236, %237 : vector<16x1xf32>
    %239 = vector.broadcast %238 : vector<16x1xf32> to vector<16x32xf32>
    %240 = arith.subf %234, %239 : vector<16x32xf32>
    %241 = arith.mulf %240, %240 : vector<16x32xf32>
    %cst_80 = arith.constant dense<0.000000e+00> : vector<16xf32>
    %242 = vector.multi_reduction <add>, %241, %cst_80 [1] : vector<16x32xf32> to vector<16xf32>
    %243 = vector.shape_cast %242 : vector<16xf32> to vector<16x1xf32>
    %cst_81 = arith.constant 3.200000e+01 : f32
    %244 = vector.broadcast %cst_81 : f32 to vector<16x1xf32>
    %245 = arith.divf %243, %244 : vector<16x1xf32>
    %246 = vector.broadcast %238 : vector<16x1xf32> to vector<16x32xf32>
    %247 = arith.subf %234, %246 : vector<16x32xf32>
    %cst_82 = arith.constant 9.99999974E-6 : f32
    %248 = vector.broadcast %cst_82 : f32 to vector<16x1xf32>
    %249 = arith.addf %245, %248 : vector<16x1xf32>
    %250 = math.rsqrt %249 : vector<16x1xf32>
    %251 = vector.broadcast %250 : vector<16x1xf32> to vector<16x32xf32>
    %252 = arith.mulf %247, %251 : vector<16x32xf32>
    %253 = vector.broadcast %153 : vector<1x32xf32> to vector<16x32xf32>
    %254 = arith.mulf %252, %253 : vector<16x32xf32>
    %255 = vector.broadcast %154 : vector<1x32xf32> to vector<16x32xf32>
    %256 = arith.addf %254, %255 : vector<16x32xf32>
    %257 = arith.truncf %256 : vector<16x32xf32> to vector<16x32xbf16>
    %c1_83 = arith.constant 1 : index
    %c0_84 = arith.constant 0 : index
    %c0_85 = arith.constant 0 : index
    %258 = vector.load %arg5[%c1_83, %c0_84, %c0_85] : memref<2x32x64xbf16, #tpu.memory_space<vmem>>, vector<1x32x64xbf16>
    %259 = vector.shape_cast %258 : vector<1x32x64xbf16> to vector<32x64xbf16>
    %cst_86 = arith.constant dense<0.000000e+00> : vector<16x64xf32>
    %260 = tpu.matmul %257, %259, %cst_86 {dimension_numbers = #tpu.dot_dimension_numbers<[1], [0], [0], [1], [0, 0, 1, 1], [], []>} : vector<16x32xbf16>, vector<32x64xbf16>, vector<16x64xf32> -> vector<16x64xf32>
    %c1_87 = arith.constant 1 : index
    %c0_88 = arith.constant 0 : index
    %c0_89 = arith.constant 0 : index
    %261 = vector.load %arg6[%c1_87, %c0_88, %c0_89] : memref<2x1x64xf32, #tpu.memory_space<vmem>>, vector<1x1x64xf32>
    %262 = vector.shape_cast %261 : vector<1x1x64xf32> to vector<1x64xf32>
    %263 = vector.broadcast %262 : vector<1x64xf32> to vector<16x64xf32>
    %264 = arith.addf %260, %263 : vector<16x64xf32>
    %cst_90 = arith.constant 0.000000e+00 : f32
    %265 = vector.broadcast %cst_90 : f32 to vector<16x64xf32>
    %266 = arith.maximumf %264, %265 : vector<16x64xf32>
    %267 = arith.truncf %266 : vector<16x64xf32> to vector<16x64xbf16>
    %c1_91 = arith.constant 1 : index
    %c0_92 = arith.constant 0 : index
    %c0_93 = arith.constant 0 : index
    %268 = vector.load %arg7[%c1_91, %c0_92, %c0_93] : memref<2x64x32xbf16, #tpu.memory_space<vmem>>, vector<1x64x32xbf16>
    %269 = vector.shape_cast %268 : vector<1x64x32xbf16> to vector<64x32xbf16>
    %cst_94 = arith.constant dense<0.000000e+00> : vector<16x32xf32>
    %270 = tpu.matmul %267, %269, %cst_94 {dimension_numbers = #tpu.dot_dimension_numbers<[1], [0], [0], [1], [0, 0, 1, 1], [], []>} : vector<16x64xbf16>, vector<64x32xbf16>, vector<16x32xf32> -> vector<16x32xf32>
    %271 = vector.broadcast %152 : vector<1x32xf32> to vector<16x32xf32>
    %272 = arith.addf %270, %271 : vector<16x32xf32>
    %273 = arith.addf %256, %272 : vector<16x32xf32>
    %cst_95 = arith.constant dense<0.000000e+00> : vector<16xf32>
    %274 = vector.multi_reduction <add>, %273, %cst_95 [1] : vector<16x32xf32> to vector<16xf32>
    %275 = vector.shape_cast %274 : vector<16xf32> to vector<16x1xf32>
    %cst_96 = arith.constant 3.200000e+01 : f32
    %276 = vector.broadcast %cst_96 : f32 to vector<16x1xf32>
    %277 = arith.divf %275, %276 : vector<16x1xf32>
    %278 = vector.broadcast %277 : vector<16x1xf32> to vector<16x32xf32>
    %279 = arith.subf %273, %278 : vector<16x32xf32>
    %280 = arith.mulf %279, %279 : vector<16x32xf32>
    %cst_97 = arith.constant dense<0.000000e+00> : vector<16xf32>
    %281 = vector.multi_reduction <add>, %280, %cst_97 [1] : vector<16x32xf32> to vector<16xf32>
    %282 = vector.shape_cast %281 : vector<16xf32> to vector<16x1xf32>
    %cst_98 = arith.constant 3.200000e+01 : f32
    %283 = vector.broadcast %cst_98 : f32 to vector<16x1xf32>
    %284 = arith.divf %282, %283 : vector<16x1xf32>
    %285 = vector.broadcast %277 : vector<16x1xf32> to vector<16x32xf32>
    %286 = arith.subf %273, %285 : vector<16x32xf32>
    %cst_99 = arith.constant 9.99999974E-6 : f32
    %287 = vector.broadcast %cst_99 : f32 to vector<16x1xf32>
    %288 = arith.addf %284, %287 : vector<16x1xf32>
    %289 = math.rsqrt %288 : vector<16x1xf32>
    %290 = vector.broadcast %289 : vector<16x1xf32> to vector<16x32xf32>
    %291 = arith.mulf %286, %290 : vector<16x32xf32>
    %292 = vector.broadcast %155 : vector<1x32xf32> to vector<16x32xf32>
    %293 = arith.mulf %291, %292 : vector<16x32xf32>
    %294 = vector.broadcast %156 : vector<1x32xf32> to vector<16x32xf32>
    %295 = arith.addf %293, %294 : vector<16x32xf32>
    %c0_100 = arith.constant 0 : index
    %c0_101 = arith.constant 0 : index
    %296 = vector.load %arg9[%c0_100, %c0_101] : memref<2x32xf32, #tpu.memory_space<vmem>>, vector<1x32xf32>
    %c1_102 = arith.constant 1 : index
    %c0_103 = arith.constant 0 : index
    %297 = vector.load %arg9[%c1_102, %c0_103] : memref<2x32xf32, #tpu.memory_space<vmem>>, vector<1x32xf32>
    %cst_104 = arith.constant dense<0.000000e+00> : vector<16xf32>
    %298 = vector.multi_reduction <add>, %295, %cst_104 [1] : vector<16x32xf32> to vector<16xf32>
    %299 = vector.shape_cast %298 : vector<16xf32> to vector<16x1xf32>
    %cst_105 = arith.constant 3.200000e+01 : f32
    %300 = vector.broadcast %cst_105 : f32 to vector<16x1xf32>
    %301 = arith.divf %299, %300 : vector<16x1xf32>
    %302 = vector.broadcast %301 : vector<16x1xf32> to vector<16x32xf32>
    %303 = arith.subf %295, %302 : vector<16x32xf32>
    %304 = arith.mulf %303, %303 : vector<16x32xf32>
    %cst_106 = arith.constant dense<0.000000e+00> : vector<16xf32>
    %305 = vector.multi_reduction <add>, %304, %cst_106 [1] : vector<16x32xf32> to vector<16xf32>
    %306 = vector.shape_cast %305 : vector<16xf32> to vector<16x1xf32>
    %cst_107 = arith.constant 3.200000e+01 : f32
    %307 = vector.broadcast %cst_107 : f32 to vector<16x1xf32>
    %308 = arith.divf %306, %307 : vector<16x1xf32>
    %309 = vector.broadcast %301 : vector<16x1xf32> to vector<16x32xf32>
    %310 = arith.subf %295, %309 : vector<16x32xf32>
    %cst_108 = arith.constant 9.99999974E-6 : f32
    %311 = vector.broadcast %cst_108 : f32 to vector<16x1xf32>
    %312 = arith.addf %308, %311 : vector<16x1xf32>
    %313 = math.rsqrt %312 : vector<16x1xf32>
    %314 = vector.broadcast %313 : vector<16x1xf32> to vector<16x32xf32>
    %315 = arith.mulf %310, %314 : vector<16x32xf32>
    %316 = vector.broadcast %296 : vector<1x32xf32> to vector<16x32xf32>
    %317 = arith.mulf %315, %316 : vector<16x32xf32>
    %318 = vector.broadcast %297 : vector<1x32xf32> to vector<16x32xf32>
    %319 = arith.addf %317, %318 : vector<16x32xf32>
    %320 = vector.shape_cast %319 : vector<16x32xf32> to vector<2x8x32xf32>
    %c0_109 = arith.constant 0 : index
    %c0_110 = arith.constant 0 : index
    %c0_111 = arith.constant 0 : index
    %321 = vector.load %arg10[%c0_109, %c0_110, %c0_111] : memref<2x8x32xf32, #tpu.memory_space<vmem>>, vector<2x8x32xf32>
    tpu.vector_store %arg10[%c0_109, %c0_110, %c0_111], %320 {strides = array<i32>} : memref<2x8x32xf32, #tpu.memory_space<vmem>>, vector<2x8x32xf32>,
    return
  }
  func.func @transform_0(%arg0: i32) -> (i32, i32, i32) {
    %c0_i32 = arith.constant 0 : i32
    %c0_i32_0 = arith.constant 0 : i32
    %c0_i32_1 = arith.constant 0 : i32
    return %arg0, %c0_i32, %c0_i32_0 : i32, i32, i32
  }
  func.func @transform_1(%arg0: i32) -> (i32, i32, i32) {
    %c0_i32 = arith.constant 0 : i32
    %c0_i32_0 = arith.constant 0 : i32
    %c0_i32_1 = arith.constant 0 : i32
    %c0_i32_2 = arith.constant 0 : i32
    return %c0_i32, %c0_i32_0, %c0_i32_1 : i32, i32, i32
  }
  func.func @transform_2(%arg0: i32) -> (i32, i32, i32) {
    %c0_i32 = arith.constant 0 : i32
    %c0_i32_0 = arith.constant 0 : i32
    %c0_i32_1 = arith.constant 0 : i32
    %c0_i32_2 = arith.constant 0 : i32
    return %c0_i32, %c0_i32_0, %c0_i32_1 : i32, i32, i32
  }
  func.func @transform_3(%arg0: i32) -> (i32, i32, i32) {
    %c0_i32 = arith.constant 0 : i32
    %c0_i32_0 = arith.constant 0 : i32
    %c0_i32_1 = arith.constant 0 : i32
    %c0_i32_2 = arith.constant 0 : i32
    return %c0_i32, %c0_i32_0, %c0_i32_1 : i32, i32, i32
  }
  func.func @transform_4(%arg0: i32) -> (i32, i32, i32) {
    %c0_i32 = arith.constant 0 : i32
    %c0_i32_0 = arith.constant 0 : i32
    %c0_i32_1 = arith.constant 0 : i32
    %c0_i32_2 = arith.constant 0 : i32
    return %c0_i32, %c0_i32_0, %c0_i32_1 : i32, i32, i32
  }
  func.func @transform_5(%arg0: i32) -> (i32, i32, i32) {
    %c0_i32 = arith.constant 0 : i32
    %c0_i32_0 = arith.constant 0 : i32
    %c0_i32_1 = arith.constant 0 : i32
    %c0_i32_2 = arith.constant 0 : i32
    return %c0_i32, %c0_i32_0, %c0_i32_1 : i32, i32, i32
  }
  func.func @transform_6(%arg0: i32) -> (i32, i32, i32) {
    %c0_i32 = arith.constant 0 : i32
    %c0_i32_0 = arith.constant 0 : i32
    %c0_i32_1 = arith.constant 0 : i32
    %c0_i32_2 = arith.constant 0 : i32
    return %c0_i32, %c0_i32_0, %c0_i32_1 : i32, i32, i32
  }
  func.func @transform_7(%arg0: i32) -> (i32, i32, i32) {
    %c0_i32 = arith.constant 0 : i32
    %c0_i32_0 = arith.constant 0 : i32
    %c0_i32_1 = arith.constant 0 : i32
    %c0_i32_2 = arith.constant 0 : i32
    return %c0_i32, %c0_i32_0, %c0_i32_1 : i32, i32, i32
  }
  func.func @transform_8(%arg0: i32) -> (i32, i32) {
    %c0_i32 = arith.constant 0 : i32
    %c0_i32_0 = arith.constant 0 : i32
    %c0_i32_1 = arith.constant 0 : i32
    return %c0_i32, %c0_i32_0 : i32, i32
  }
  func.func @transform_9(%arg0: i32) -> (i32, i32, i32) {
    %c0_i32 = arith.constant 0 : i32
    %c0_i32_0 = arith.constant 0 : i32
    %c0_i32_1 = arith.constant 0 : i32
    return %arg0, %c0_i32, %c0_i32_0 : i32, i32, i32
  }
  func.func @transform_10(%arg0: i32) -> (i32, i32, i32, i32, i32) {
    %c0_i32 = arith.constant 0 : i32
    %c0_i32_0 = arith.constant 0 : i32
    %c0_i32_1 = arith.constant 0 : i32
    %c0_i32_2 = arith.constant 0 : i32
    %c0_i32_3 = arith.constant 0 : i32
    return %c0_i32, %c0_i32_0, %arg0, %c0_i32_1, %c0_i32_2 : i32, i32, i32, i32, i32
  }
}

</mosaic_0001>

<llo_original>
// kernel: tpu_custom_call.1
$region0: #{tpu_custom_call.1}
  #allocation0 [shape = 'u32[]', space=smem, size = 0x4, offset = 0x4, fixed_abs, tag = 'smem constant byte address 0x4 - core index']
  #allocation1 [shape = 'u32[72,128]{1,0:T(1,128)}', space=vmem, size = 0x9000, scoped, tag = 'internal scratch']
  %s0 = inlined_call_operand.hbm [shape: f32[2,8,32], index: 0, kind: input, shape index: {}]
  %s1 = inlined_call_operand.vmem [shape: bf16[2,32,96], index: 1, kind: input, shape index: {}]
  %s2 = inlined_call_operand.hbm [shape: f32[2,1,96], index: 2, kind: input, shape index: {}]
  %s3 = inlined_call_operand.vmem [shape: bf16[2,32,32], index: 3, kind: input, shape index: {}]
  %s4 = inlined_call_operand.vmem [shape: bf16[2,32,64], index: 4, kind: input, shape index: {}]
  %s5 = inlined_call_operand.hbm [shape: f32[2,1,64], index: 5, kind: input, shape index: {}]
  %s6 = inlined_call_operand.vmem [shape: bf16[2,64,32], index: 6, kind: input, shape index: {}]
  %s7 = inlined_call_operand.vmem [shape: f32[2,6,32], index: 7, kind: input, shape index: {}]
  %s8 = inlined_call_operand.vmem [shape: f32[2,32], index: 8, kind: input, shape index: {}]
  %s9 = inlined_call_operand.hbm [shape: f32[2,8,32], index: 9, kind: output, shape index: {0}]
  %s10 = inlined_call_operand.hbm [shape: f32[2,4,2,8,8], index: 10, kind: output, shape index: {1}]
  %11 = xla_tuple %s9, %s10
  %s12 = sld [smem:[#allocation0]]
  $region66: #{tpu_custom_call.1} parent=0
    _
  %s14 = ssub.s32 1, %s12
  %s15 = scalar_select 0, %s14, %s12
  $region1: #{tpu_custom_call.1} parent=0
    #allocation2 [shape = 'u8[8192]{0}', space=vmem, size = 0x2000, scoped, tag = 'input window, operand 0, single buffered']
    #allocation3 [shape = 's32[1]{0}', space=sflag, size = 0x4, scoped, tag = 'scoped memory for tpu_custom_call.1']
    #allocation4 [shape = 's32[1]{0}', space=sflag, size = 0x4, scoped, tag = 'scoped memory for tpu_custom_call.1']
    #allocation5 [shape = 'u8[1024]{0}', space=vmem, size = 0x400, scoped, tag = 'input window, operand 2, single buffered']
    #allocation6 [shape = 's32[1]{0}', space=sflag, size = 0x4, scoped, tag = 'scoped memory for tpu_custom_call.1']
    #allocation7 [shape = 'u8[1024]{0}', space=vmem, size = 0x400, scoped, tag = 'input window, operand 5, single buffered']
    #allocation8 [shape = 'u8[8192]{0}', space=vmem, size = 0x2000, scoped, tag = 'output window, operand 0, single buffered']
    #allocation9 [shape = 'u8[65536]{0}', space=vmem, size = 0x10000, scoped, tag = 'output window, operand 1, single buffered']
    #allocation10 [shape = 's32[1]{0}', space=sflag, size = 0x4, scoped, tag = 'scoped memory for tpu_custom_call.1']
    %16 = vsyncpa [#allocation3], 0
    %17 = vsyncpa [#allocation6], 0
    %18 = vsyncpa [#allocation4], 0
    %19 = vsyncpa [#allocation10], 0
    // Predicated region
    $region2: #{tpu_custom_call.1} parent=1 // pred_check
      _
    $region3: #{tpu_custom_call.1} parent=1 // pred_check_branch
      %21 = sbr.rel (0) target = $region5
    $region4: #{tpu_custom_call.1} parent=1 // pred_region
      %23 = vsyncadd [#allocation3], 0
      %s24 = sshll.u32 %s0, 4
      %s25 = int_to_ptr.hbm [resolvable:$true] %s24
      %s26 = sshll.u32 [#allocation2], 4
      %s27 = int_to_ptr.vmem [resolvable:$true] %s26
      %32 = dma.hbm_to_vmem [thread:$0]  %s25, 256, %s27, [#allocation3], 128, 128, 8
    $region5: #{tpu_custom_call.1} parent=1 // pred_fallthru
      _
    // Predicated region
    $region6: #{tpu_custom_call.1} parent=1 // pred_check
      _
    $region7: #{tpu_custom_call.1} parent=1 // pred_check_branch
      %34 = sbr.rel (0) target = $region9
    $region8: #{tpu_custom_call.1} parent=1 // pred_region
      _
    $region9: #{tpu_custom_call.1} parent=1 // pred_fallthru
      _
    // Predicated region
    $region10: #{tpu_custom_call.1} parent=1 // pred_check
      _
    $region11: #{tpu_custom_call.1} parent=1 // pred_check_branch
      %36 = sbr.rel (0) target = $region13
    $region12: #{tpu_custom_call.1} parent=1 // pred_region
      %38 = vsyncadd [#allocation6], 0
      %s39 = sshll.u32 %s2, 4
      %s40 = int_to_ptr.hbm [resolvable:$true] %s39
      %s41 = sshll.u32 [#allocation5], 4
      %s42 = int_to_ptr.vmem [resolvable:$true] %s41
      %47 = dma.hbm_to_vmem [thread:$0]  %s40, 32, %s42, [#allocation6], 16, 16, 1
    $region13: #{tpu_custom_call.1} parent=1 // pred_fallthru
      _
    // Predicated region
    $region14: #{tpu_custom_call.1} parent=1 // pred_check
      _
    $region15: #{tpu_custom_call.1} parent=1 // pred_check_branch
      %49 = sbr.rel (0) target = $region17
    $region16: #{tpu_custom_call.1} parent=1 // pred_region
      _
    $region17: #{tpu_custom_call.1} parent=1 // pred_fallthru
      _
    // Predicated region
    $region18: #{tpu_custom_call.1} parent=1 // pred_check
      _
    $region19: #{tpu_custom_call.1} parent=1 // pred_check_branch
      %51 = sbr.rel (0) target = $region21
    $region20: #{tpu_custom_call.1} parent=1 // pred_region
      _
    $region21: #{tpu_custom_call.1} parent=1 // pred_fallthru
      _
    // Predicated region
    $region22: #{tpu_custom_call.1} parent=1 // pred_check
      _
    $region23: #{tpu_custom_call.1} parent=1 // pred_check_branch
      %53 = sbr.rel (0) target = $region25
    $region24: #{tpu_custom_call.1} parent=1 // pred_region
      %55 = vsyncadd [#allocation6], 0
      %s56 = sshll.u32 %s5, 4
      %s57 = int_to_ptr.hbm [resolvable:$true] %s56
      %s58 = sshll.u32 [#allocation7], 4
      %s59 = int_to_ptr.vmem [resolvable:$true] %s58
      %64 = dma.hbm_to_vmem [thread:$0]  %s57, 32, %s59, [#allocation6], 16, 16, 1
    $region25: #{tpu_custom_call.1} parent=1 // pred_fallthru
      _
    // Predicated region
    $region26: #{tpu_custom_call.1} parent=1 // pred_check
      _
    $region27: #{tpu_custom_call.1} parent=1 // pred_check_branch
      %66 = sbr.rel (0) target = $region29
    $region28: #{tpu_custom_call.1} parent=1 // pred_region
      _
    $region29: #{tpu_custom_call.1} parent=1 // pred_fallthru
      _
    // Predicated region
    $region30: #{tpu_custom_call.1} parent=1 // pred_check
      _
    $region31: #{tpu_custom_call.1} parent=1 // pred_check_branch
      %68 = sbr.rel (0) target = $region33
    $region32: #{tpu_custom_call.1} parent=1 // pred_region
      _
    $region33: #{tpu_custom_call.1} parent=1 // pred_fallthru
      _
    // Predicated region
    $region34: #{tpu_custom_call.1} parent=1 // pred_check
      _
    $region35: #{tpu_custom_call.1} parent=1 // pred_check_branch
      %70 = sbr.rel (0) target = $region37
    $region36: #{tpu_custom_call.1} parent=1 // pred_region
      _
    $region37: #{tpu_custom_call.1} parent=1 // pred_fallthru
      _
    // Predicated region
    $region38: #{tpu_custom_call.1} parent=1 // pred_check
      _
    $region39: #{tpu_custom_call.1} parent=1 // pred_check_branch
      %72 = sbr.rel (0) target = $region41
    $region40: #{tpu_custom_call.1} parent=1 // pred_region
      %74 = dma.done [#allocation3], 256
    $region41: #{tpu_custom_call.1} parent=1 // pred_fallthru
      _
    // Predicated region
    $region42: #{tpu_custom_call.1} parent=1 // pred_check
      _
    $region43: #{tpu_custom_call.1} parent=1 // pred_check_branch
      %76 = sbr.rel (0) target = $region45
    $region44: #{tpu_custom_call.1} parent=1 // pred_region
      %78 = dma.done [#allocation6], 32
    $region45: #{tpu_custom_call.1} parent=1 // pred_fallthru
      _
    // Predicated region
    $region46: #{tpu_custom_call.1} parent=1 // pred_check
      _
    $region47: #{tpu_custom_call.1} parent=1 // pred_check_branch
      %80 = sbr.rel (0) target = $region49
    $region48: #{tpu_custom_call.1} parent=1 // pred_region
      %82 = dma.done [#allocation6], 32
    $region49: #{tpu_custom_call.1} parent=1 // pred_fallthru
      _
    %v84 = vld [vmem:[#allocation2] sm:$0xff]
    %v85 = vld [vmem:[#allocation2 + $0x8] sm:$0xff]
    %v86 = vld [vmem:[%s7] sm:$0x3f]
    %v87 = vpack.c.bf16 %v85, %v84
    %v88 = vld [vmem:[%s1] sm:$0xf]
    %v89 = vld [vmem:[%s1 + $0x4] sm:$0xf]
    %v90 = vld [vmem:[%s1 + $0x8] sm:$0xf]
    %v91 = vld [vmem:[%s1 + $0xc] sm:$0xf]
    %v92 = vld [vmem:[#allocation5] sm:$0x1]
    %v94 = vperm.slane %v92, 0
    %v100 = vunpack.c.l.b16 %v88
    %v101 = vunpack.c.l.b16 %v89
    %v102 = vunpack.c.l.b16 %v90
    %v103 = vunpack.c.l.b16 %v91
    %v104 = vpack.c.b16 %v101, %v100
    %v105 = vpack.c.b16 %v103, %v102
    %vm108 = vcmask 261120
    %v110 = vsel %vm108, %v87, 0
    %112 = vmatpush.bf16.msra.mxu0 0
    %113 = vmatpush.bf16.msra.mxu0 0
    %114 = vmatpush.bf16.msra.mxu0 0
    %115 = vmatpush.bf16.msra.mxu0 0
    %116 = vmatpush.bf16.msra.mxu0 0
    %117 = vmatpush.bf16.msra.mxu0 0
    %118 = vmatpush.bf16.msra.mxu0 %v105
    %119 = vmatpush.bf16.msra.mxu0 %v104
    %120 = vmatmul.bf16.gmra.mxu0 %v110
    %v121 = vpop.f32.mrf.mxu0
    %v122 = vadd.f32 %v94, %v121
    %v123 = vpop.f32.mrf.mxu0
    %v124 = vadd.f32 %v94, %v123
    %125 = vdwg.mxu0
    %128 = vrot.lane.b32.xlu0 %v122, 120
    %v129 = vpop.permute.xlu0 %128
    %130 = vrot.lane.b32.xlu0 %v124, 120
    %v131 = vpop.permute.xlu0 %130
    %134 = vrot.lane.b32.xlu0 %v122, 112
    %v135 = vpop.permute.xlu0 %134
    %136 = vrot.lane.b32.xlu0 %v124, 112
    %v137 = vpop.permute.xlu0 %136
    %140 = vrot.lane.b32.xlu0 %v122, 104
    %v141 = vpop.permute.xlu0 %140
    %142 = vrot.lane.b32.xlu0 %v124, 104
    %v143 = vpop.permute.xlu0 %142
    %v146 = vpack.c.bf16 %v122, %v122
    %v147 = vpack.c.bf16 %v124, %v124
    %v148 = vpack.c.bf16 %v129, %v129
    %v149 = vpack.c.bf16 %v131, %v131
    %v150 = vpack.c.bf16 %v135, %v135
    %v151 = vpack.c.bf16 %v137, %v137
    %v152 = vpack.c.bf16 %v141, %v141
    %v153 = vpack.c.bf16 %v143, %v143
    %v155 = vunpack.c.l.b16 %v146
    %v156 = vpack.c.b16 %v155, %v155
    %157 = vrot.lane.b32.xlu0 %v156, 96
    %v158 = vpop.permute.xlu0 %157
    %vm159 = vcmask 64512
    %v161 = vsel %vm159, %v146, 0
    %v164 = vsel %vm159, %v158, 0
    %166 = vmatpush.bf16.xpose.msra.mxu0 0
    %167 = vmatpush.bf16.xpose.msra.mxu0 0
    %168 = vmatpush.bf16.xpose.msra.mxu0 0
    %169 = vmatpush.bf16.xpose.msra.mxu0 0
    %170 = vmatpush.bf16.xpose.msra.mxu0 0
    %171 = vmatpush.bf16.xpose.msra.mxu0 0
    %172 = vmatpush.bf16.xpose.msra.mxu0 0
    %173 = vmatpush.bf16.xpose.msra.mxu0 %v164
    %174 = vmatmul.bf16.gmra.mxu0 %v161
    %v175 = vpop.f32.mrf.mxu0
    %v176 = vadd.f32 0.0, %v175
    %v177 = vpop.f32.mrf.mxu0
    %178 = vdwg.mxu0
    %v180 = vunpack.c.l.b16 %v147
    %v181 = vpack.c.b16 %v180, %v180
    %182 = vrot.lane.b32.xlu0 %v181, 96
    %v183 = vpop.permute.xlu0 %182
    %v185 = vsel %vm159, %v147, 0
    %v188 = vsel %vm159, %v183, 0
    %190 = vmatpush.bf16.xpose.msra.mxu0 0
    %191 = vmatpush.bf16.xpose.msra.mxu0 0
    %192 = vmatpush.bf16.xpose.msra.mxu0 0
    %193 = vmatpush.bf16.xpose.msra.mxu0 0
    %194 = vmatpush.bf16.xpose.msra.mxu0 0
    %195 = vmatpush.bf16.xpose.msra.mxu0 0
    %196 = vmatpush.bf16.xpose.msra.mxu0 0
    %197 = vmatpush.bf16.xpose.msra.mxu0 %v188
    %198 = vmatmul.bf16.gmra.mxu0 %v185
    %v199 = vpop.f32.mrf.mxu0
    %v200 = vadd.f32 0.0, %v199
    %v201 = vpop.f32.mrf.mxu0
    %202 = vdwg.mxu0
    %v204 = vunpack.c.l.b16 %v148
    %v205 = vpack.c.b16 %v204, %v204
    %206 = vrot.lane.b32.xlu0 %v205, 96
    %v207 = vpop.permute.xlu0 %206
    %v209 = vsel %vm159, %v148, 0
    %v212 = vsel %vm159, %v207, 0
    %214 = vmatpush.bf16.xpose.msra.mxu0 0
    %215 = vmatpush.bf16.xpose.msra.mxu0 0
    %216 = vmatpush.bf16.xpose.msra.mxu0 0
    %217 = vmatpush.bf16.xpose.msra.mxu0 0
    %218 = vmatpush.bf16.xpose.msra.mxu0 0
    %219 = vmatpush.bf16.xpose.msra.mxu0 0
    %220 = vmatpush.bf16.xpose.msra.mxu0 0
    %221 = vmatpush.bf16.xpose.msra.mxu0 %v212
    %222 = vmatmul.bf16.gmra.mxu0 %v209
    %v223 = vpop.f32.mrf.mxu0
    %v224 = vadd.f32 0.0, %v223
    %v225 = vpop.f32.mrf.mxu0
    %226 = vdwg.mxu0
    %v228 = vunpack.c.l.b16 %v149
    %v229 = vpack.c.b16 %v228, %v228
    %230 = vrot.lane.b32.xlu0 %v229, 96
    %v231 = vpop.permute.xlu0 %230
    %v233 = vsel %vm159, %v149, 0
    %v236 = vsel %vm159, %v231, 0
    %238 = vmatpush.bf16.xpose.msra.mxu0 0
    %239 = vmatpush.bf16.xpose.msra.mxu0 0
    %240 = vmatpush.bf16.xpose.msra.mxu0 0
    %241 = vmatpush.bf16.xpose.msra.mxu0 0
    %242 = vmatpush.bf16.xpose.msra.mxu0 0
    %243 = vmatpush.bf16.xpose.msra.mxu0 0
    %244 = vmatpush.bf16.xpose.msra.mxu0 0
    %245 = vmatpush.bf16.xpose.msra.mxu0 %v236
    %246 = vmatmul.bf16.gmra.mxu0 %v233
    %v247 = vpop.f32.mrf.mxu0
    %v248 = vadd.f32 0.0, %v247
    %v249 = vpop.f32.mrf.mxu0
    %250 = vdwg.mxu0
    %v252 = vunpack.c.l.b16 %v150
    %v253 = vpack.c.b16 %v252, %v252
    %254 = vrot.lane.b32.xlu0 %v253, 96
    %v255 = vpop.permute.xlu0 %254
    %v257 = vsel %vm159, %v150, 0
    %v260 = vsel %vm159, %v255, 0
    %262 = vmatpush.bf16.xpose.msra.mxu0 0
    %263 = vmatpush.bf16.xpose.msra.mxu0 0
    %264 = vmatpush.bf16.xpose.msra.mxu0 0
    %265 = vmatpush.bf16.xpose.msra.mxu0 0
    %266 = vmatpush.bf16.xpose.msra.mxu0 0
    %267 = vmatpush.bf16.xpose.msra.mxu0 0
    %268 = vmatpush.bf16.xpose.msra.mxu0 0
    %269 = vmatpush.bf16.xpose.msra.mxu0 %v260
    %270 = vmatmul.bf16.gmra.mxu0 %v257
    %v271 = vpop.f32.mrf.mxu0
    %v272 = vadd.f32 0.0, %v271
    %v273 = vpop.f32.mrf.mxu0
    %274 = vdwg.mxu0
    %v276 = vunpack.c.l.b16 %v151
    %v277 = vpack.c.b16 %v276, %v276
    %278 = vrot.lane.b32.xlu0 %v277, 96
    %v279 = vpop.permute.xlu0 %278
    %v281 = vsel %vm159, %v151, 0
    %v284 = vsel %vm159, %v279, 0
    %286 = vmatpush.bf16.xpose.msra.mxu0 0
    %287 = vmatpush.bf16.xpose.msra.mxu0 0
    %288 = vmatpush.bf16.xpose.msra.mxu0 0
    %289 = vmatpush.bf16.xpose.msra.mxu0 0
    %290 = vmatpush.bf16.xpose.msra.mxu0 0
    %291 = vmatpush.bf16.xpose.msra.mxu0 0
    %292 = vmatpush.bf16.xpose.msra.mxu0 0
    %293 = vmatpush.bf16.xpose.msra.mxu0 %v284
    %294 = vmatmul.bf16.gmra.mxu0 %v281
    %v295 = vpop.f32.mrf.mxu0
    %v296 = vadd.f32 0.0, %v295
    %v297 = vpop.f32.mrf.mxu0
    %298 = vdwg.mxu0
    %v300 = vunpack.c.l.b16 %v152
    %v301 = vpack.c.b16 %v300, %v300
    %302 = vrot.lane.b32.xlu0 %v301, 96
    %v303 = vpop.permute.xlu0 %302
    %v305 = vsel %vm159, %v152, 0
    %v308 = vsel %vm159, %v303, 0
    %310 = vmatpush.bf16.xpose.msra.mxu0 0
    %311 = vmatpush.bf16.xpose.msra.mxu0 0
    %312 = vmatpush.bf16.xpose.msra.mxu0 0
    %313 = vmatpush.bf16.xpose.msra.mxu0 0
    %314 = vmatpush.bf16.xpose.msra.mxu0 0
    %315 = vmatpush.bf16.xpose.msra.mxu0 0
    %316 = vmatpush.bf16.xpose.msra.mxu0 0
    %317 = vmatpush.bf16.xpose.msra.mxu0 %v308
    %318 = vmatmul.bf16.gmra.mxu0 %v305
    %v319 = vpop.f32.mrf.mxu0
    %v320 = vadd.f32 0.0, %v319
    %v321 = vpop.f32.mrf.mxu0
    %322 = vdwg.mxu0
    %v324 = vunpack.c.l.b16 %v153
    %v325 = vpack.c.b16 %v324, %v324
    %326 = vrot.lane.b32.xlu0 %v325, 96
    %v327 = vpop.permute.xlu0 %326
    %v329 = vsel %vm159, %v153, 0
    %v332 = vsel %vm159, %v327, 0
    %334 = vmatpush.bf16.xpose.msra.mxu0 0
    %335 = vmatpush.bf16.xpose.msra.mxu0 0
    %336 = vmatpush.bf16.xpose.msra.mxu0 0
    %337 = vmatpush.bf16.xpose.msra.mxu0 0
    %338 = vmatpush.bf16.xpose.msra.mxu0 0
    %339 = vmatpush.bf16.xpose.msra.mxu0 0
    %340 = vmatpush.bf16.xpose.msra.mxu0 0
    %341 = vmatpush.bf16.xpose.msra.mxu0 %v332
    %342 = vmatmul.bf16.gmra.mxu0 %v329
    %v343 = vpop.f32.mrf.mxu0
    %v344 = vadd.f32 0.0, %v343
    %v345 = vpop.f32.mrf.mxu0
    %346 = vdwg.mxu0
    %v347 = vmul.f32 %v176, 0.35355338
    %v348 = vmul.f32 %v200, 0.35355338
    %v349 = vmul.f32 %v224, 0.35355338
    %v350 = vmul.f32 %v248, 0.35355338
    %v351 = vmul.f32 %v272, 0.35355338
    %v352 = vmul.f32 %v296, 0.35355338
    %v353 = vmul.f32 %v320, 0.35355338
    %v354 = vmul.f32 %v344, 0.35355338
    %v355 = vsel %vm159, %v347, -inf
    %356 = vmax.xlane.f32.xlu0 %v355
    %v357 = vpop.xlane.xlu0 %356
    %v358 = vsel %vm159, %v348, -inf
    %359 = vmax.xlane.f32.xlu0 %v358
    %v360 = vpop.xlane.xlu0 %359
    %v361 = vsel %vm159, %v349, -inf
    %362 = vmax.xlane.f32.xlu0 %v361
    %v363 = vpop.xlane.xlu0 %362
    %v364 = vsel %vm159, %v350, -inf
    %365 = vmax.xlane.f32.xlu0 %v364
    %v366 = vpop.xlane.xlu0 %365
    %v367 = vsel %vm159, %v351, -inf
    %368 = vmax.xlane.f32.xlu0 %v367
    %v369 = vpop.xlane.xlu0 %368
    %v370 = vsel %vm159, %v352, -inf
    %371 = vmax.xlane.f32.xlu0 %v370
    %v372 = vpop.xlane.xlu0 %371
    %v373 = vsel %vm159, %v353, -inf
    %374 = vmax.xlane.f32.xlu0 %v373
    %v375 = vpop.xlane.xlu0 %374
    %v376 = vsel %vm159, %v354, -inf
    %377 = vmax.xlane.f32.xlu0 %v376
    %v378 = vpop.xlane.xlu0 %377
    %v379 = vsub.f32 %v347, %v357
    %v380 = vsub.f32 %v348, %v360
    %v381 = vsub.f32 %v349, %v363
    %v382 = vsub.f32 %v350, %v366
    %v383 = vsub.f32 %v351, %v369
    %v384 = vsub.f32 %v352, %v372
    %v385 = vsub.f32 %v353, %v375
    %v386 = vsub.f32 %v354, %v378
    %v387 = vmul.f32 %v379, 1.442695
    %v388 = vpow.pop %v387
    %v389 = vmul.f32 %v380, 1.442695
    %v390 = vpow.pop %v389
    %v391 = vmul.f32 %v381, 1.442695
    %v392 = vpow.pop %v391
    %v393 = vmul.f32 %v382, 1.442695
    %v394 = vpow.pop %v393
    %v395 = vmul.f32 %v383, 1.442695
    %v396 = vpow.pop %v395
    %v397 = vmul.f32 %v384, 1.442695
    %v398 = vpow.pop %v397
    %v399 = vmul.f32 %v385, 1.442695
    %v400 = vpow.pop %v399
    %v401 = vmul.f32 %v386, 1.442695
    %v402 = vpow.pop %v401
    %v403 = vsel %vm159, %v388, 0.0
    %404 = vadd.xlane.f32.xlu0 %v403
    %v405 = vpop.xlane.xlu0 %404
    %v406 = vsel %vm159, %v390, 0.0
    %407 = vadd.xlane.f32.xlu0 %v406
    %v408 = vpop.xlane.xlu0 %407
    %v409 = vsel %vm159, %v392, 0.0
    %410 = vadd.xlane.f32.xlu0 %v409
    %v411 = vpop.xlane.xlu0 %410
    %v412 = vsel %vm159, %v394, 0.0
    %413 = vadd.xlane.f32.xlu0 %v412
    %v414 = vpop.xlane.xlu0 %413
    %v415 = vsel %vm159, %v396, 0.0
    %416 = vadd.xlane.f32.xlu0 %v415
    %v417 = vpop.xlane.xlu0 %416
    %v418 = vsel %vm159, %v398, 0.0
    %419 = vadd.xlane.f32.xlu0 %v418
    %v420 = vpop.xlane.xlu0 %419
    %v421 = vsel %vm159, %v400, 0.0
    %422 = vadd.xlane.f32.xlu0 %v421
    %v423 = vpop.xlane.xlu0 %422
    %v424 = vsel %vm159, %v402, 0.0
    %425 = vadd.xlane.f32.xlu0 %v424
    %v426 = vpop.xlane.xlu0 %425
    %v427 = vrcp.pop %v405
    %v428 = vmul.f32 %v405, %v427
    %v429 = vsub.f32 1.0, %v428
    %v430 = vmul.f32 %v427, %v429
    %v431 = vadd.f32 %v427, %v430
    %vm432 = vweird.f32 %v405
    %vm433 = vweird.f32 %v427
    %vm434 = vmor %vm432, %vm433
    %v435 = vsel %vm434, %v427, %v431
    %v436 = vand.u32 2147483647, %v405
    %vm437 = vcmp.eq.f32.partialorder %v436, 8.507059e+37
    %v438 = vand.u32 %v405, 2147483648
    %v439 = vor.u32 1.1754944e-38, %v438
    %v440 = vsel %vm437, %v439, %v435
    %v441 = vmul.f32 %v388, %v440
    %v442 = vrcp.pop %v408
    %v443 = vmul.f32 %v408, %v442
    %v444 = vsub.f32 1.0, %v443
    %v445 = vmul.f32 %v442, %v444
    %v446 = vadd.f32 %v442, %v445
    %vm447 = vweird.f32 %v408
    %vm448 = vweird.f32 %v442
    %vm449 = vmor %vm447, %vm448
    %v450 = vsel %vm449, %v442, %v446
    %v451 = vand.u32 2147483647, %v408
    %vm452 = vcmp.eq.f32.partialorder %v451, 8.507059e+37
    %v453 = vand.u32 %v408, 2147483648
    %v454 = vor.u32 1.1754944e-38, %v453
    %v455 = vsel %vm452, %v454, %v450
    %v456 = vmul.f32 %v390, %v455
    %v457 = vrcp.pop %v411
    %v458 = vmul.f32 %v411, %v457
    %v459 = vsub.f32 1.0, %v458
    %v460 = vmul.f32 %v457, %v459
    %v461 = vadd.f32 %v457, %v460
    %vm462 = vweird.f32 %v411
    %vm463 = vweird.f32 %v457
    %vm464 = vmor %vm462, %vm463
    %v465 = vsel %vm464, %v457, %v461
    %v466 = vand.u32 2147483647, %v411
    %vm467 = vcmp.eq.f32.partialorder %v466, 8.507059e+37
    %v468 = vand.u32 %v411, 2147483648
    %v469 = vor.u32 1.1754944e-38, %v468
    %v470 = vsel %vm467, %v469, %v465
    %v471 = vmul.f32 %v392, %v470
    %v472 = vrcp.pop %v414
    %v473 = vmul.f32 %v414, %v472
    %v474 = vsub.f32 1.0, %v473
    %v475 = vmul.f32 %v472, %v474
    %v476 = vadd.f32 %v472, %v475
    %vm477 = vweird.f32 %v414
    %vm478 = vweird.f32 %v472
    %vm479 = vmor %vm477, %vm478
    %v480 = vsel %vm479, %v472, %v476
    %v481 = vand.u32 2147483647, %v414
    %vm482 = vcmp.eq.f32.partialorder %v481, 8.507059e+37
    %v483 = vand.u32 %v414, 2147483648
    %v484 = vor.u32 1.1754944e-38, %v483
    %v485 = vsel %vm482, %v484, %v480
    %v486 = vmul.f32 %v394, %v485
    %v487 = vrcp.pop %v417
    %v488 = vmul.f32 %v417, %v487
    %v489 = vsub.f32 1.0, %v488
    %v490 = vmul.f32 %v487, %v489
    %v491 = vadd.f32 %v487, %v490
    %vm492 = vweird.f32 %v417
    %vm493 = vweird.f32 %v487
    %vm494 = vmor %vm492, %vm493
    %v495 = vsel %vm494, %v487, %v491
    %v496 = vand.u32 2147483647, %v417
    %vm497 = vcmp.eq.f32.partialorder %v496, 8.507059e+37
    %v498 = vand.u32 %v417, 2147483648
    %v499 = vor.u32 1.1754944e-38, %v498
    %v500 = vsel %vm497, %v499, %v495
    %v501 = vmul.f32 %v396, %v500
    %v502 = vrcp.pop %v420
    %v503 = vmul.f32 %v420, %v502
    %v504 = vsub.f32 1.0, %v503
    %v505 = vmul.f32 %v502, %v504
    %v506 = vadd.f32 %v502, %v505
    %vm507 = vweird.f32 %v420
    %vm508 = vweird.f32 %v502
    %vm509 = vmor %vm507, %vm508
    %v510 = vsel %vm509, %v502, %v506
    %v511 = vand.u32 2147483647, %v420
    %vm512 = vcmp.eq.f32.partialorder %v511, 8.507059e+37
    %v513 = vand.u32 %v420, 2147483648
    %v514 = vor.u32 1.1754944e-38, %v513
    %v515 = vsel %vm512, %v514, %v510
    %v516 = vmul.f32 %v398, %v515
    %v517 = vrcp.pop %v423
    %v518 = vmul.f32 %v423, %v517
    %v519 = vsub.f32 1.0, %v518
    %v520 = vmul.f32 %v517, %v519
    %v521 = vadd.f32 %v517, %v520
    %vm522 = vweird.f32 %v423
    %vm523 = vweird.f32 %v517
    %vm524 = vmor %vm522, %vm523
    %v525 = vsel %vm524, %v517, %v521
    %v526 = vand.u32 2147483647, %v423
    %vm527 = vcmp.eq.f32.partialorder %v526, 8.507059e+37
    %v528 = vand.u32 %v423, 2147483648
    %v529 = vor.u32 1.1754944e-38, %v528
    %v530 = vsel %vm527, %v529, %v525
    %v531 = vmul.f32 %v400, %v530
    %v532 = vrcp.pop %v426
    %v533 = vmul.f32 %v426, %v532
    %v534 = vsub.f32 1.0, %v533
    %v535 = vmul.f32 %v532, %v534
    %v536 = vadd.f32 %v532, %v535
    %vm537 = vweird.f32 %v426
    %vm538 = vweird.f32 %v532
    %vm539 = vmor %vm537, %vm538
    %v540 = vsel %vm539, %v532, %v536
    %v541 = vand.u32 2147483647, %v426
    %vm542 = vcmp.eq.f32.partialorder %v541, 8.507059e+37
    %v543 = vand.u32 %v426, 2147483648
    %v544 = vor.u32 1.1754944e-38, %v543
    %v545 = vsel %vm542, %v544, %v540
    %v546 = vmul.f32 %v402, %v545
    %547 = vst.msk [vmem:[#allocation9] sm:$0xff] %vm159, %v441
    %548 = vst.msk [vmem:[#allocation9 + $0x8] sm:$0xff] %vm159, %v456
    %549 = vst.msk [vmem:[#allocation9 + $0x10] sm:$0xff] %vm159, %v471
    %550 = vst.msk [vmem:[#allocation9 + $0x18] sm:$0xff] %vm159, %v486
    %551 = vst.msk [vmem:[#allocation9 + $0x20] sm:$0xff] %vm159, %v501
    %552 = vst.msk [vmem:[#allocation9 + $0x28] sm:$0xff] %vm159, %v516
    %553 = vst.msk [vmem:[#allocation9 + $0x30] sm:$0xff] %vm159, %v531
    %554 = vst.msk [vmem:[#allocation9 + $0x38] sm:$0xff] %vm159, %v546
    %v555 = vpack.c.bf16 %v441, %v441
    %v556 = vpack.c.bf16 %v456, %v456
    %v557 = vpack.c.bf16 %v471, %v471
    %v558 = vpack.c.bf16 %v486, %v486
    %v559 = vpack.c.bf16 %v501, %v501
    %v560 = vpack.c.bf16 %v516, %v516
    %v561 = vpack.c.bf16 %v531, %v531
    %v562 = vpack.c.bf16 %v546, %v546
    %563 = vrot.lane.b32.xlu0 %v156, 64
    %v564 = vpop.permute.xlu0 %563
    %v566 = vsel %vm159, %v555, 0
    %vm568 = vcmask 1043456
    %v570 = vsel %vm568, %v564, 0
    %572 = vmatpush.bf16.msra.mxu0 0
    %573 = vmatpush.bf16.msra.mxu0 0
    %574 = vmatpush.bf16.msra.mxu0 0
    %575 = vmatpush.bf16.msra.mxu0 0
    %576 = vmatpush.bf16.msra.mxu0 0
    %577 = vmatpush.bf16.msra.mxu0 0
    %578 = vmatpush.bf16.msra.mxu0 0
    %579 = vmatpush.bf16.msra.mxu0 %v570
    %580 = vmatmul.bf16.gmra.mxu0 %v566
    %v581 = vpop.f32.mrf.mxu0
    %v582 = vadd.f32 0.0, %v581
    %v583 = vpop.f32.mrf.mxu0
    %584 = vdwg.mxu0
    %585 = vrot.lane.b32.xlu0 %v181, 64
    %v586 = vpop.permute.xlu0 %585
    %v588 = vsel %vm159, %v556, 0
    %v591 = vsel %vm568, %v586, 0
    %593 = vmatpush.bf16.msra.mxu0 0
    %594 = vmatpush.bf16.msra.mxu0 0
    %595 = vmatpush.bf16.msra.mxu0 0
    %596 = vmatpush.bf16.msra.mxu0 0
    %597 = vmatpush.bf16.msra.mxu0 0
    %598 = vmatpush.bf16.msra.mxu0 0
    %599 = vmatpush.bf16.msra.mxu0 0
    %600 = vmatpush.bf16.msra.mxu0 %v591
    %601 = vmatmul.bf16.gmra.mxu0 %v588
    %v602 = vpop.f32.mrf.mxu0
    %v603 = vadd.f32 0.0, %v602
    %v604 = vpop.f32.mrf.mxu0
    %605 = vdwg.mxu0
    %606 = vrot.lane.b32.xlu0 %v205, 64
    %v607 = vpop.permute.xlu0 %606
    %v609 = vsel %vm159, %v557, 0
    %v612 = vsel %vm568, %v607, 0
    %614 = vmatpush.bf16.msra.mxu0 0
    %615 = vmatpush.bf16.msra.mxu0 0
    %616 = vmatpush.bf16.msra.mxu0 0
    %617 = vmatpush.bf16.msra.mxu0 0
    %618 = vmatpush.bf16.msra.mxu0 0
    %619 = vmatpush.bf16.msra.mxu0 0
    %620 = vmatpush.bf16.msra.mxu0 0
    %621 = vmatpush.bf16.msra.mxu0 %v612
    %622 = vmatmul.bf16.gmra.mxu0 %v609
    %v623 = vpop.f32.mrf.mxu0
    %v624 = vadd.f32 0.0, %v623
    %v625 = vpop.f32.mrf.mxu0
    %626 = vdwg.mxu0
    %627 = vrot.lane.b32.xlu0 %v229, 64
    %v628 = vpop.permute.xlu0 %627
    %v630 = vsel %vm159, %v558, 0
    %v633 = vsel %vm568, %v628, 0
    %635 = vmatpush.bf16.msra.mxu0 0
    %636 = vmatpush.bf16.msra.mxu0 0
    %637 = vmatpush.bf16.msra.mxu0 0
    %638 = vmatpush.bf16.msra.mxu0 0
    %639 = vmatpush.bf16.msra.mxu0 0
    %640 = vmatpush.bf16.msra.mxu0 0
    %641 = vmatpush.bf16.msra.mxu0 0
    %642 = vmatpush.bf16.msra.mxu0 %v633
    %643 = vmatmul.bf16.gmra.mxu0 %v630
    %v644 = vpop.f32.mrf.mxu0
    %v645 = vadd.f32 0.0, %v644
    %v646 = vpop.f32.mrf.mxu0
    %647 = vdwg.mxu0
    %648 = vrot.lane.b32.xlu0 %v253, 64
    %v649 = vpop.permute.xlu0 %648
    %v651 = vsel %vm159, %v559, 0
    %v654 = vsel %vm568, %v649, 0
    %656 = vmatpush.bf16.msra.mxu0 0
    %657 = vmatpush.bf16.msra.mxu0 0
    %658 = vmatpush.bf16.msra.mxu0 0
    %659 = vmatpush.bf16.msra.mxu0 0
    %660 = vmatpush.bf16.msra.mxu0 0
    %661 = vmatpush.bf16.msra.mxu0 0
    %662 = vmatpush.bf16.msra.mxu0 0
    %663 = vmatpush.bf16.msra.mxu0 %v654
    %664 = vmatmul.bf16.gmra.mxu0 %v651
    %v665 = vpop.f32.mrf.mxu0
    %v666 = vadd.f32 0.0, %v665
    %v667 = vpop.f32.mrf.mxu0
    %668 = vdwg.mxu0
    %669 = vrot.lane.b32.xlu0 %v277, 64
    %v670 = vpop.permute.xlu0 %669
    %v672 = vsel %vm159, %v560, 0
    %v675 = vsel %vm568, %v670, 0
    %677 = vmatpush.bf16.msra.mxu0 0
    %678 = vmatpush.bf16.msra.mxu0 0
    %679 = vmatpush.bf16.msra.mxu0 0
    %680 = vmatpush.bf16.msra.mxu0 0
    %681 = vmatpush.bf16.msra.mxu0 0
    %682 = vmatpush.bf16.msra.mxu0 0
    %683 = vmatpush.bf16.msra.mxu0 0
    %684 = vmatpush.bf16.msra.mxu0 %v675
    %685 = vmatmul.bf16.gmra.mxu0 %v672
    %v686 = vpop.f32.mrf.mxu0
    %v687 = vadd.f32 0.0, %v686
    %v688 = vpop.f32.mrf.mxu0
    %689 = vdwg.mxu0
    %690 = vrot.lane.b32.xlu0 %v301, 64
    %v691 = vpop.permute.xlu0 %690
    %v693 = vsel %vm159, %v561, 0
    %v696 = vsel %vm568, %v691, 0
    %698 = vmatpush.bf16.msra.mxu0 0
    %699 = vmatpush.bf16.msra.mxu0 0
    %700 = vmatpush.bf16.msra.mxu0 0
    %701 = vmatpush.bf16.msra.mxu0 0
    %702 = vmatpush.bf16.msra.mxu0 0
    %703 = vmatpush.bf16.msra.mxu0 0
    %704 = vmatpush.bf16.msra.mxu0 0
    %705 = vmatpush.bf16.msra.mxu0 %v696
    %706 = vmatmul.bf16.gmra.mxu0 %v693
    %v707 = vpop.f32.mrf.mxu0
    %v708 = vadd.f32 0.0, %v707
    %v709 = vpop.f32.mrf.mxu0
    %710 = vdwg.mxu0
    %711 = vrot.lane.b32.xlu0 %v325, 64
    %v712 = vpop.permute.xlu0 %711
    %v714 = vsel %vm159, %v562, 0
    %v717 = vsel %vm568, %v712, 0
    %719 = vmatpush.bf16.msra.mxu0 0
    %720 = vmatpush.bf16.msra.mxu0 0
    %721 = vmatpush.bf16.msra.mxu0 0
    %722 = vmatpush.bf16.msra.mxu0 0
    %723 = vmatpush.bf16.msra.mxu0 0
    %724 = vmatpush.bf16.msra.mxu0 0
    %725 = vmatpush.bf16.msra.mxu0 0
    %726 = vmatpush.bf16.msra.mxu0 %v717
    %727 = vmatmul.bf16.gmra.mxu0 %v714
    %v728 = vpop.f32.mrf.mxu0
    %v729 = vadd.f32 0.0, %v728
    %v730 = vpop.f32.mrf.mxu0
    %731 = vdwg.mxu0
    %v732 = vld [vmem:[%s3] sm:$0xf]
    %v733 = vld [vmem:[%s3 + $0x4] sm:$0xf]
    %v734 = vld [vmem:[%s3 + $0x8] sm:$0xf]
    %v735 = vld [vmem:[%s3 + $0xc] sm:$0xf]
    %v736 = vpack.c.bf16 %v603, %v582
    %v737 = vpack.c.bf16 %v645, %v624
    %v739 = vsel %vm159, %v737, 0
    %v742 = vsel %vm568, %v733, 0
    %744 = vmatpush.bf16.msra.mxu0 0
    %745 = vmatpush.bf16.msra.mxu0 0
    %746 = vmatpush.bf16.msra.mxu0 0
    %747 = vmatpush.bf16.msra.mxu0 0
    %748 = vmatpush.bf16.msra.mxu0 0
    %749 = vmatpush.bf16.msra.mxu0 0
    %750 = vmatpush.bf16.msra.mxu0 0
    %751 = vmatpush.bf16.msra.mxu0 %v742
    %752 = vmatmul.bf16.gmra.mxu0 %v739
    %v753 = vpop.f32.mrf.mxu0
    %v754 = vadd.f32 0.0, %v753
    %v755 = vpop.f32.mrf.mxu0
    %v756 = vadd.f32 0.0, %v755
    %757 = vdwg.mxu0
    %v759 = vsel %vm159, %v736, 0
    %v762 = vsel %vm568, %v732, 0
    %764 = vmatpush.bf16.msra.mxu0 0
    %765 = vmatpush.bf16.msra.mxu0 0
    %766 = vmatpush.bf16.msra.mxu0 0
    %767 = vmatpush.bf16.msra.mxu0 0
    %768 = vmatpush.bf16.msra.mxu0 0
    %769 = vmatpush.bf16.msra.mxu0 0
    %770 = vmatpush.bf16.msra.mxu0 0
    %771 = vmatpush.bf16.msra.mxu0 %v762
    %772 = vmatmul.bf16.gmra.mxu0 %v759
    %v773 = vpop.f32.mrf.mxu0
    %v774 = vadd.f32 %v754, %v773
    %v775 = vpop.f32.mrf.mxu0
    %v776 = vadd.f32 %v756, %v775
    %777 = vdwg.mxu0
    %v778 = vpack.c.bf16 %v687, %v666
    %v780 = vsel %vm159, %v778, 0
    %v783 = vsel %vm568, %v734, 0
    %785 = vmatpush.bf16.msra.mxu0 0
    %786 = vmatpush.bf16.msra.mxu0 0
    %787 = vmatpush.bf16.msra.mxu0 0
    %788 = vmatpush.bf16.msra.mxu0 0
    %789 = vmatpush.bf16.msra.mxu0 0
    %790 = vmatpush.bf16.msra.mxu0 0
    %791 = vmatpush.bf16.msra.mxu0 0
    %792 = vmatpush.bf16.msra.mxu0 %v783
    %793 = vmatmul.bf16.gmra.mxu0 %v780
    %v794 = vpop.f32.mrf.mxu0
    %v795 = vadd.f32 0.0, %v794
    %v796 = vpop.f32.mrf.mxu0
    %v797 = vadd.f32 0.0, %v796
    %798 = vdwg.mxu0
    %v799 = vadd.f32 %v774, %v795
    %v800 = vadd.f32 %v776, %v797
    %v801 = vpack.c.bf16 %v729, %v708
    %v803 = vsel %vm159, %v801, 0
    %v806 = vsel %vm568, %v735, 0
    %808 = vmatpush.bf16.msra.mxu0 0
    %809 = vmatpush.bf16.msra.mxu0 0
    %810 = vmatpush.bf16.msra.mxu0 0
    %811 = vmatpush.bf16.msra.mxu0 0
    %812 = vmatpush.bf16.msra.mxu0 0
    %813 = vmatpush.bf16.msra.mxu0 0
    %814 = vmatpush.bf16.msra.mxu0 0
    %815 = vmatpush.bf16.msra.mxu0 %v806
    %816 = vmatmul.bf16.gmra.mxu0 %v803
    %v817 = vpop.f32.mrf.mxu0
    %v818 = vadd.f32 0.0, %v817
    %v819 = vpop.f32.mrf.mxu0
    %v820 = vadd.f32 0.0, %v819
    %821 = vdwg.mxu0
    %v822 = vadd.f32 %v799, %v818
    %v823 = vadd.f32 %v800, %v820
    %v824 = vadd.f32 %v84, %v822
    %v825 = vadd.f32 %v85, %v823
    %v826 = vperm.slane %v86, 0
    %v827 = vadd.f32 %v824, %v826
    %v828 = vadd.f32 %v825, %v826
    %v829 = vsel %vm108, %v827, 0.0
    %830 = vadd.xlane.f32.xlu0 %v829
    %v831 = vpop.xlane.xlu0 %830
    %v832 = vsel %vm108, %v828, 0.0
    %833 = vadd.xlane.f32.xlu0 %v832
    %v834 = vpop.xlane.xlu0 %833
    %v835 = vrcp.pop 32.0
    %v836 = vmul.f32 32.0, %v835
    %v837 = vsub.f32 1.0, %v836
    %v838 = vmul.f32 %v835, %v837
    %v839 = vadd.f32 %v835, %v838
    %vm840 = vweird.f32 %v835
    %v841 = vsel %vm840, %v835, %v839
    %v842 = vmul.f32 %v831, %v841
    %v843 = vmul.f32 %v834, %v841
    %v844 = vsub.f32 %v827, %v842
    %v845 = vsub.f32 %v828, %v843
    %v846 = vmul.f32 %v844, %v844
    %v847 = vmul.f32 %v845, %v845
    %v848 = vsel %vm108, %v846, 0.0
    %849 = vadd.xlane.f32.xlu0 %v848
    %v850 = vpop.xlane.xlu0 %849
    %v851 = vsel %vm108, %v847, 0.0
    %852 = vadd.xlane.f32.xlu0 %v851
    %v853 = vpop.xlane.xlu0 %852
    %v854 = vmul.f32 %v850, %v841
    %v855 = vmul.f32 %v853, %v841
    %v856 = vadd.f32 %v854, 1e-05
    %v857 = vadd.f32 %v855, 1e-05
    %v858 = vrsqrt.pop %v856
    %v859 = vmul.f32 %v858, %v856
    %v860 = vmul.f32 %v859, %v858
    %v861 = vmul.f32 0.5, %v860
    %v862 = vsub.f32 1.5, %v861
    %v863 = vmul.f32 %v858, %v862
    %vm864 = vweird.f32 %v856
    %vm865 = vweird.f32 %v858
    %vm866 = vmor %vm864, %vm865
    %v867 = vsel %vm866, %v858, %v863
    %v868 = vrsqrt.pop %v857
    %v869 = vmul.f32 %v868, %v857
    %v870 = vmul.f32 %v869, %v868
    %v871 = vmul.f32 0.5, %v870
    %v872 = vsub.f32 1.5, %v871
    %v873 = vmul.f32 %v868, %v872
    %vm874 = vweird.f32 %v857
    %vm875 = vweird.f32 %v868
    %vm876 = vmor %vm874, %vm875
    %v877 = vsel %vm876, %v868, %v873
    %v878 = vmul.f32 %v844, %v867
    %v879 = vmul.f32 %v845, %v877
    %v880 = vperm.slane %v86, 2
    %v881 = vmul.f32 %v878, %v880
    %v882 = vmul.f32 %v879, %v880
    %v883 = vperm.slane %v86, 3
    %v884 = vadd.f32 %v881, %v883
    %v885 = vadd.f32 %v882, %v883
    %v886 = vpack.c.bf16 %v885, %v884
    %v887 = vld [vmem:[%s4] sm:$0xf]
    %v888 = vld [vmem:[%s4 + $0x4] sm:$0xf]
    %v889 = vld [vmem:[%s4 + $0x8] sm:$0xf]
    %v890 = vld [vmem:[%s4 + $0xc] sm:$0xf]
    %v891 = vld [vmem:[#allocation7] sm:$0x1]
    %v893 = vperm.slane %v891, 0
    %v899 = vunpack.c.l.b16 %v887
    %v900 = vunpack.c.l.b16 %v888
    %v901 = vunpack.c.l.b16 %v889
    %v902 = vunpack.c.l.b16 %v890
    %v903 = vpack.c.b16 %v900, %v899
    %v904 = vpack.c.b16 %v902, %v901
    %v908 = vsel %vm108, %v886, 0
    %910 = vmatpush.bf16.msra.mxu0 0
    %911 = vmatpush.bf16.msra.mxu0 0
    %912 = vmatpush.bf16.msra.mxu0 0
    %913 = vmatpush.bf16.msra.mxu0 0
    %914 = vmatpush.bf16.msra.mxu0 0
    %915 = vmatpush.bf16.msra.mxu0 0
    %916 = vmatpush.bf16.msra.mxu0 %v904
    %917 = vmatpush.bf16.msra.mxu0 %v903
    %918 = vmatmul.bf16.gmra.mxu0 %v908
    %v919 = vpop.f32.mrf.mxu0
    %v920 = vadd.f32 %v893, %v919
    %v921 = vpop.f32.mrf.mxu0
    %v922 = vadd.f32 %v893, %v921
    %923 = vdwg.mxu0
    %v924 = vmax.f32 %v920, 0.0
    %v925 = vmax.f32 %v922, 0.0
    %v926 = vpack.c.bf16 %v925, %v924
    %v927 = vld [vmem:[%s6] sm:$0xf]
    %v928 = vld [vmem:[%s6 + $0x4] sm:$0xf]
    %v929 = vld [vmem:[%s6 + $0x8] sm:$0xf]
    %v930 = vld [vmem:[%s6 + $0xc] sm:$0xf]
    %v931 = vld [vmem:[%s6 + $0x10] sm:$0xf]
    %v932 = vld [vmem:[%s6 + $0x14] sm:$0xf]
    %v933 = vld [vmem:[%s6 + $0x18] sm:$0xf]
    %v934 = vld [vmem:[%s6 + $0x1c] sm:$0xf]
    %v935 = vperm.slane %v86, 1
    %v944 = vunpack.c.l.b16 %v927
    %v945 = vunpack.c.l.b16 %v928
    %v946 = vunpack.c.l.b16 %v929
    %v947 = vunpack.c.l.b16 %v930
    %v948 = vunpack.c.l.b16 %v931
    %v949 = vunpack.c.l.b16 %v932
    %v950 = vunpack.c.l.b16 %v933
    %v951 = vunpack.c.l.b16 %v934
    %v952 = vpack.c.b16 %v945, %v944
    %v953 = vpack.c.b16 %v947, %v946
    %v954 = vpack.c.b16 %v949, %v948
    %v955 = vpack.c.b16 %v951, %v950
    %vm960 = vcmask 523264
    %v962 = vsel %vm960, %v926, 0
    %964 = vmatpush.bf16.msra.mxu0 0
    %965 = vmatpush.bf16.msra.mxu0 0
    %966 = vmatpush.bf16.msra.mxu0 0
    %967 = vmatpush.bf16.msra.mxu0 0
    %968 = vmatpush.bf16.msra.mxu0 %v955
    %969 = vmatpush.bf16.msra.mxu0 %v954
    %970 = vmatpush.bf16.msra.mxu0 %v953
    %971 = vmatpush.bf16.msra.mxu0 %v952
    %972 = vmatmul.bf16.gmra.mxu0 %v962
    %v973 = vpop.f32.mrf.mxu0
    %v974 = vadd.f32 %v935, %v973
    %v975 = vpop.f32.mrf.mxu0
    %v976 = vadd.f32 %v935, %v975
    %977 = vdwg.mxu0
    %v978 = vadd.f32 %v884, %v974
    %v979 = vadd.f32 %v885, %v976
    %v980 = vsel %vm108, %v978, 0.0
    %981 = vadd.xlane.f32.xlu0 %v980
    %v982 = vpop.xlane.xlu0 %981
    %v983 = vsel %vm108, %v979, 0.0
    %984 = vadd.xlane.f32.xlu0 %v983
    %v985 = vpop.xlane.xlu0 %984
    %v986 = vmul.f32 %v982, %v841
    %v987 = vmul.f32 %v985, %v841
    %v988 = vsub.f32 %v978, %v986
    %v989 = vsub.f32 %v979, %v987
    %v990 = vmul.f32 %v988, %v988
    %v991 = vmul.f32 %v989, %v989
    %v992 = vsel %vm108, %v990, 0.0
    %993 = vadd.xlane.f32.xlu0 %v992
    %v994 = vpop.xlane.xlu0 %993
    %v995 = vsel %vm108, %v991, 0.0
    %996 = vadd.xlane.f32.xlu0 %v995
    %v997 = vpop.xlane.xlu0 %996
    %v998 = vmul.f32 %v994, %v841
    %v999 = vmul.f32 %v997, %v841
    %v1000 = vadd.f32 %v998, 1e-05
    %v1001 = vadd.f32 %v999, 1e-05
    %v1002 = vrsqrt.pop %v1000
    %v1003 = vmul.f32 %v1002, %v1000
    %v1004 = vmul.f32 %v1003, %v1002
    %v1005 = vmul.f32 0.5, %v1004
    %v1006 = vsub.f32 1.5, %v1005
    %v1007 = vmul.f32 %v1002, %v1006
    %vm1008 = vweird.f32 %v1000
    %vm1009 = vweird.f32 %v1002
    %vm1010 = vmor %vm1008, %vm1009
    %v1011 = vsel %vm1010, %v1002, %v1007
    %v1012 = vrsqrt.pop %v1001
    %v1013 = vmul.f32 %v1012, %v1001
    %v1014 = vmul.f32 %v1013, %v1012
    %v1015 = vmul.f32 0.5, %v1014
    %v1016 = vsub.f32 1.5, %v1015
    %v1017 = vmul.f32 %v1012, %v1016
    %vm1018 = vweird.f32 %v1001
    %vm1019 = vweird.f32 %v1012
    %vm1020 = vmor %vm1018, %vm1019
    %v1021 = vsel %vm1020, %v1012, %v1017
    %v1022 = vmul.f32 %v988, %v1011
    %v1023 = vmul.f32 %v989, %v1021
    %v1024 = vperm.slane %v86, 4
    %v1025 = vmul.f32 %v1022, %v1024
    %v1026 = vmul.f32 %v1023, %v1024
    %v1027 = vperm.slane %v86, 5
    %v1028 = vadd.f32 %v1025, %v1027
    %v1029 = vadd.f32 %v1026, %v1027
    %s1030 = scalar_lea.vmem %s7, 8
    %v1031 = vld [vmem:[%s1030] sm:$0x3f]
    %v1032 = vpack.c.bf16 %v1029, %v1028
    %s1033 = scalar_lea.vmem %s1, 16
    %v1034 = vld [vmem:[%s1033] sm:$0xf]
    %v1035 = vld [vmem:[%s1033 + $0x4] sm:$0xf]
    %v1036 = vld [vmem:[%s1033 + $0x8] sm:$0xf]
    %v1037 = vld [vmem:[%s1033 + $0xc] sm:$0xf]
    %s1038 = scalar_lea.vmem [#allocation5], 1
    %v1039 = vld [vmem:[%s1038] sm:$0x1]
    %v1041 = vperm.slane %v1039, 0
    %v1047 = vunpack.c.l.b16 %v1034
    %v1048 = vunpack.c.l.b16 %v1035
    %v1049 = vunpack.c.l.b16 %v1036
    %v1050 = vunpack.c.l.b16 %v1037
    %v1051 = vpack.c.b16 %v1048, %v1047
    %v1052 = vpack.c.b16 %v1050, %v1049
    %v1056 = vsel %vm108, %v1032, 0
    %1058 = vmatpush.bf16.msra.mxu0 0
    %1059 = vmatpush.bf16.msra.mxu0 0
    %1060 = vmatpush.bf16.msra.mxu0 0
    %1061 = vmatpush.bf16.msra.mxu0 0
    %1062 = vmatpush.bf16.msra.mxu0 0
    %1063 = vmatpush.bf16.msra.mxu0 0
    %1064 = vmatpush.bf16.msra.mxu0 %v1052
    %1065 = vmatpush.bf16.msra.mxu0 %v1051
    %1066 = vmatmul.bf16.gmra.mxu0 %v1056
    %v1067 = vpop.f32.mrf.mxu0
    %v1068 = vadd.f32 %v1041, %v1067
    %v1069 = vpop.f32.mrf.mxu0
    %v1070 = vadd.f32 %v1041, %v1069
    %1071 = vdwg.mxu0
    %1074 = vrot.lane.b32.xlu0 %v1068, 120
    %v1075 = vpop.permute.xlu0 %1074
    %1076 = vrot.lane.b32.xlu0 %v1070, 120
    %v1077 = vpop.permute.xlu0 %1076
    %1080 = vrot.lane.b32.xlu0 %v1068, 112
    %v1081 = vpop.permute.xlu0 %1080
    %1082 = vrot.lane.b32.xlu0 %v1070, 112
    %v1083 = vpop.permute.xlu0 %1082
    %1086 = vrot.lane.b32.xlu0 %v1068, 104
    %v1087 = vpop.permute.xlu0 %1086
    %1088 = vrot.lane.b32.xlu0 %v1070, 104
    %v1089 = vpop.permute.xlu0 %1088
    %v1092 = vpack.c.bf16 %v1068, %v1068
    %v1093 = vpack.c.bf16 %v1070, %v1070
    %v1094 = vpack.c.bf16 %v1075, %v1075
    %v1095 = vpack.c.bf16 %v1077, %v1077
    %v1096 = vpack.c.bf16 %v1081, %v1081
    %v1097 = vpack.c.bf16 %v1083, %v1083
    %v1098 = vpack.c.bf16 %v1087, %v1087
    %v1099 = vpack.c.bf16 %v1089, %v1089
    %v1101 = vunpack.c.l.b16 %v1092
    %v1102 = vpack.c.b16 %v1101, %v1101
    %1103 = vrot.lane.b32.xlu0 %v1102, 96
    %v1104 = vpop.permute.xlu0 %1103
    %v1106 = vsel %vm159, %v1092, 0
    %v1109 = vsel %vm159, %v1104, 0
    %1111 = vmatpush.bf16.xpose.msra.mxu0 0
    %1112 = vmatpush.bf16.xpose.msra.mxu0 0
    %1113 = vmatpush.bf16.xpose.msra.mxu0 0
    %1114 = vmatpush.bf16.xpose.msra.mxu0 0
    %1115 = vmatpush.bf16.xpose.msra.mxu0 0
    %1116 = vmatpush.bf16.xpose.msra.mxu0 0
    %1117 = vmatpush.bf16.xpose.msra.mxu0 0
    %1118 = vmatpush.bf16.xpose.msra.mxu0 %v1109
    %1119 = vmatmul.bf16.gmra.mxu0 %v1106
    %v1120 = vpop.f32.mrf.mxu0
    %v1121 = vadd.f32 0.0, %v1120
    %v1122 = vpop.f32.mrf.mxu0
    %1123 = vdwg.mxu0
    %v1125 = vunpack.c.l.b16 %v1093
    %v1126 = vpack.c.b16 %v1125, %v1125
    %1127 = vrot.lane.b32.xlu0 %v1126, 96
    %v1128 = vpop.permute.xlu0 %1127
    %v1130 = vsel %vm159, %v1093, 0
    %v1133 = vsel %vm159, %v1128, 0
    %1135 = vmatpush.bf16.xpose.msra.mxu0 0
    %1136 = vmatpush.bf16.xpose.msra.mxu0 0
    %1137 = vmatpush.bf16.xpose.msra.mxu0 0
    %1138 = vmatpush.bf16.xpose.msra.mxu0 0
    %1139 = vmatpush.bf16.xpose.msra.mxu0 0
    %1140 = vmatpush.bf16.xpose.msra.mxu0 0
    %1141 = vmatpush.bf16.xpose.msra.mxu0 0
    %1142 = vmatpush.bf16.xpose.msra.mxu0 %v1133
    %1143 = vmatmul.bf16.gmra.mxu0 %v1130
    %v1144 = vpop.f32.mrf.mxu0
    %v1145 = vadd.f32 0.0, %v1144
    %v1146 = vpop.f32.mrf.mxu0
    %1147 = vdwg.mxu0
    %v1149 = vunpack.c.l.b16 %v1094
    %v1150 = vpack.c.b16 %v1149, %v1149
    %1151 = vrot.lane.b32.xlu0 %v1150, 96
    %v1152 = vpop.permute.xlu0 %1151
    %v1154 = vsel %vm159, %v1094, 0
    %v1157 = vsel %vm159, %v1152, 0
    %1159 = vmatpush.bf16.xpose.msra.mxu0 0
    %1160 = vmatpush.bf16.xpose.msra.mxu0 0
    %1161 = vmatpush.bf16.xpose.msra.mxu0 0
    %1162 = vmatpush.bf16.xpose.msra.mxu0 0
    %1163 = vmatpush.bf16.xpose.msra.mxu0 0
    %1164 = vmatpush.bf16.xpose.msra.mxu0 0
    %1165 = vmatpush.bf16.xpose.msra.mxu0 0
    %1166 = vmatpush.bf16.xpose.msra.mxu0 %v1157
    %1167 = vmatmul.bf16.gmra.mxu0 %v1154
    %v1168 = vpop.f32.mrf.mxu0
    %v1169 = vadd.f32 0.0, %v1168
    %v1170 = vpop.f32.mrf.mxu0
    %1171 = vdwg.mxu0
    %v1173 = vunpack.c.l.b16 %v1095
    %v1174 = vpack.c.b16 %v1173, %v1173
    %1175 = vrot.lane.b32.xlu0 %v1174, 96
    %v1176 = vpop.permute.xlu0 %1175
    %v1178 = vsel %vm159, %v1095, 0
    %v1181 = vsel %vm159, %v1176, 0
    %1183 = vmatpush.bf16.xpose.msra.mxu0 0
    %1184 = vmatpush.bf16.xpose.msra.mxu0 0
    %1185 = vmatpush.bf16.xpose.msra.mxu0 0
    %1186 = vmatpush.bf16.xpose.msra.mxu0 0
    %1187 = vmatpush.bf16.xpose.msra.mxu0 0
    %1188 = vmatpush.bf16.xpose.msra.mxu0 0
    %1189 = vmatpush.bf16.xpose.msra.mxu0 0
    %1190 = vmatpush.bf16.xpose.msra.mxu0 %v1181
    %1191 = vmatmul.bf16.gmra.mxu0 %v1178
    %v1192 = vpop.f32.mrf.mxu0
    %v1193 = vadd.f32 0.0, %v1192
    %v1194 = vpop.f32.mrf.mxu0
    %1195 = vdwg.mxu0
    %v1197 = vunpack.c.l.b16 %v1096
    %v1198 = vpack.c.b16 %v1197, %v1197
    %1199 = vrot.lane.b32.xlu0 %v1198, 96
    %v1200 = vpop.permute.xlu0 %1199
    %v1202 = vsel %vm159, %v1096, 0
    %v1205 = vsel %vm159, %v1200, 0
    %1207 = vmatpush.bf16.xpose.msra.mxu0 0
    %1208 = vmatpush.bf16.xpose.msra.mxu0 0
    %1209 = vmatpush.bf16.xpose.msra.mxu0 0
    %1210 = vmatpush.bf16.xpose.msra.mxu0 0
    %1211 = vmatpush.bf16.xpose.msra.mxu0 0
    %1212 = vmatpush.bf16.xpose.msra.mxu0 0
    %1213 = vmatpush.bf16.xpose.msra.mxu0 0
    %1214 = vmatpush.bf16.xpose.msra.mxu0 %v1205
    %1215 = vmatmul.bf16.gmra.mxu0 %v1202
    %v1216 = vpop.f32.mrf.mxu0
    %v1217 = vadd.f32 0.0, %v1216
    %v1218 = vpop.f32.mrf.mxu0
    %1219 = vdwg.mxu0
    %v1221 = vunpack.c.l.b16 %v1097
    %v1222 = vpack.c.b16 %v1221, %v1221
    %1223 = vrot.lane.b32.xlu0 %v1222, 96
    %v1224 = vpop.permute.xlu0 %1223
    %v1226 = vsel %vm159, %v1097, 0
    %v1229 = vsel %vm159, %v1224, 0
    %1231 = vmatpush.bf16.xpose.msra.mxu0 0
    %1232 = vmatpush.bf16.xpose.msra.mxu0 0
    %1233 = vmatpush.bf16.xpose.msra.mxu0 0
    %1234 = vmatpush.bf16.xpose.msra.mxu0 0
    %1235 = vmatpush.bf16.xpose.msra.mxu0 0
    %1236 = vmatpush.bf16.xpose.msra.mxu0 0
    %1237 = vmatpush.bf16.xpose.msra.mxu0 0
    %1238 = vmatpush.bf16.xpose.msra.mxu0 %v1229
    %1239 = vmatmul.bf16.gmra.mxu0 %v1226
    %v1240 = vpop.f32.mrf.mxu0
    %v1241 = vadd.f32 0.0, %v1240
    %v1242 = vpop.f32.mrf.mxu0
    %1243 = vdwg.mxu0
    %v1245 = vunpack.c.l.b16 %v1098
    %v1246 = vpack.c.b16 %v1245, %v1245
    %1247 = vrot.lane.b32.xlu0 %v1246, 96
    %v1248 = vpop.permute.xlu0 %1247
    %v1250 = vsel %vm159, %v1098, 0
    %v1253 = vsel %vm159, %v1248, 0
    %1255 = vmatpush.bf16.xpose.msra.mxu0 0
    %1256 = vmatpush.bf16.xpose.msra.mxu0 0
    %1257 = vmatpush.bf16.xpose.msra.mxu0 0
    %1258 = vmatpush.bf16.xpose.msra.mxu0 0
    %1259 = vmatpush.bf16.xpose.msra.mxu0 0
    %1260 = vmatpush.bf16.xpose.msra.mxu0 0
    %1261 = vmatpush.bf16.xpose.msra.mxu0 0
    %1262 = vmatpush.bf16.xpose.msra.mxu0 %v1253
    %1263 = vmatmul.bf16.gmra.mxu0 %v1250
    %v1264 = vpop.f32.mrf.mxu0
    %v1265 = vadd.f32 0.0, %v1264
    %v1266 = vpop.f32.mrf.mxu0
    %1267 = vdwg.mxu0
    %v1269 = vunpack.c.l.b16 %v1099
    %v1270 = vpack.c.b16 %v1269, %v1269
    %1271 = vrot.lane.b32.xlu0 %v1270, 96
    %v1272 = vpop.permute.xlu0 %1271
    %v1274 = vsel %vm159, %v1099, 0
    %v1277 = vsel %vm159, %v1272, 0
    %1279 = vmatpush.bf16.xpose.msra.mxu0 0
    %1280 = vmatpush.bf16.xpose.msra.mxu0 0
    %1281 = vmatpush.bf16.xpose.msra.mxu0 0
    %1282 = vmatpush.bf16.xpose.msra.mxu0 0
    %1283 = vmatpush.bf16.xpose.msra.mxu0 0
    %1284 = vmatpush.bf16.xpose.msra.mxu0 0
    %1285 = vmatpush.bf16.xpose.msra.mxu0 0
    %1286 = vmatpush.bf16.xpose.msra.mxu0 %v1277
    %1287 = vmatmul.bf16.gmra.mxu0 %v1274
    %v1288 = vpop.f32.mrf.mxu0
    %v1289 = vadd.f32 0.0, %v1288
    %v1290 = vpop.f32.mrf.mxu0
    %1291 = vdwg.mxu0
    %v1292 = vmul.f32 %v1121, 0.35355338
    %v1293 = vmul.f32 %v1145, 0.35355338
    %v1294 = vmul.f32 %v1169, 0.35355338
    %v1295 = vmul.f32 %v1193, 0.35355338
    %v1296 = vmul.f32 %v1217, 0.35355338
    %v1297 = vmul.f32 %v1241, 0.35355338
    %v1298 = vmul.f32 %v1265, 0.35355338
    %v1299 = vmul.f32 %v1289, 0.35355338
    %v1300 = vsel %vm159, %v1292, -inf
    %1301 = vmax.xlane.f32.xlu0 %v1300
    %v1302 = vpop.xlane.xlu0 %1301
    %v1303 = vsel %vm159, %v1293, -inf
    %1304 = vmax.xlane.f32.xlu0 %v1303
    %v1305 = vpop.xlane.xlu0 %1304
    %v1306 = vsel %vm159, %v1294, -inf
    %1307 = vmax.xlane.f32.xlu0 %v1306
    %v1308 = vpop.xlane.xlu0 %1307
    %v1309 = vsel %vm159, %v1295, -inf
    %1310 = vmax.xlane.f32.xlu0 %v1309
    %v1311 = vpop.xlane.xlu0 %1310
    %v1312 = vsel %vm159, %v1296, -inf
    %1313 = vmax.xlane.f32.xlu0 %v1312
    %v1314 = vpop.xlane.xlu0 %1313
    %v1315 = vsel %vm159, %v1297, -inf
    %1316 = vmax.xlane.f32.xlu0 %v1315
    %v1317 = vpop.xlane.xlu0 %1316
    %v1318 = vsel %vm159, %v1298, -inf
    %1319 = vmax.xlane.f32.xlu0 %v1318
    %v1320 = vpop.xlane.xlu0 %1319
    %v1321 = vsel %vm159, %v1299, -inf
    %1322 = vmax.xlane.f32.xlu0 %v1321
    %v1323 = vpop.xlane.xlu0 %1322
    %v1324 = vsub.f32 %v1292, %v1302
    %v1325 = vsub.f32 %v1293, %v1305
    %v1326 = vsub.f32 %v1294, %v1308
    %v1327 = vsub.f32 %v1295, %v1311
    %v1328 = vsub.f32 %v1296, %v1314
    %v1329 = vsub.f32 %v1297, %v1317
    %v1330 = vsub.f32 %v1298, %v1320
    %v1331 = vsub.f32 %v1299, %v1323
    %v1332 = vmul.f32 %v1324, 1.442695
    %v1333 = vpow.pop %v1332
    %v1334 = vmul.f32 %v1325, 1.442695
    %v1335 = vpow.pop %v1334
    %v1336 = vmul.f32 %v1326, 1.442695
    %v1337 = vpow.pop %v1336
    %v1338 = vmul.f32 %v1327, 1.442695
    %v1339 = vpow.pop %v1338
    %v1340 = vmul.f32 %v1328, 1.442695
    %v1341 = vpow.pop %v1340
    %v1342 = vmul.f32 %v1329, 1.442695
    %v1343 = vpow.pop %v1342
    %v1344 = vmul.f32 %v1330, 1.442695
    %v1345 = vpow.pop %v1344
    %v1346 = vmul.f32 %v1331, 1.442695
    %v1347 = vpow.pop %v1346
    %v1348 = vsel %vm159, %v1333, 0.0
    %1349 = vadd.xlane.f32.xlu0 %v1348
    %v1350 = vpop.xlane.xlu0 %1349
    %v1351 = vsel %vm159, %v1335, 0.0
    %1352 = vadd.xlane.f32.xlu0 %v1351
    %v1353 = vpop.xlane.xlu0 %1352
    %v1354 = vsel %vm159, %v1337, 0.0
    %1355 = vadd.xlane.f32.xlu0 %v1354
    %v1356 = vpop.xlane.xlu0 %1355
    %v1357 = vsel %vm159, %v1339, 0.0
    %1358 = vadd.xlane.f32.xlu0 %v1357
    %v1359 = vpop.xlane.xlu0 %1358
    %v1360 = vsel %vm159, %v1341, 0.0
    %1361 = vadd.xlane.f32.xlu0 %v1360
    %v1362 = vpop.xlane.xlu0 %1361
    %v1363 = vsel %vm159, %v1343, 0.0
    %1364 = vadd.xlane.f32.xlu0 %v1363
    %v1365 = vpop.xlane.xlu0 %1364
    %v1366 = vsel %vm159, %v1345, 0.0
    %1367 = vadd.xlane.f32.xlu0 %v1366
    %v1368 = vpop.xlane.xlu0 %1367
    %v1369 = vsel %vm159, %v1347, 0.0
    %1370 = vadd.xlane.f32.xlu0 %v1369
    %v1371 = vpop.xlane.xlu0 %1370
    %v1372 = vrcp.pop %v1350
    %v1373 = vmul.f32 %v1350, %v1372
    %v1374 = vsub.f32 1.0, %v1373
    %v1375 = vmul.f32 %v1372, %v1374
    %v1376 = vadd.f32 %v1372, %v1375
    %vm1377 = vweird.f32 %v1350
    %vm1378 = vweird.f32 %v1372
    %vm1379 = vmor %vm1377, %vm1378
    %v1380 = vsel %vm1379, %v1372, %v1376
    %v1381 = vand.u32 2147483647, %v1350
    %vm1382 = vcmp.eq.f32.partialorder %v1381, 8.507059e+37
    %v1383 = vand.u32 %v1350, 2147483648
    %v1384 = vor.u32 1.1754944e-38, %v1383
    %v1385 = vsel %vm1382, %v1384, %v1380
    %v1386 = vmul.f32 %v1333, %v1385
    %v1387 = vrcp.pop %v1353
    %v1388 = vmul.f32 %v1353, %v1387
    %v1389 = vsub.f32 1.0, %v1388
    %v1390 = vmul.f32 %v1387, %v1389
    %v1391 = vadd.f32 %v1387, %v1390
    %vm1392 = vweird.f32 %v1353
    %vm1393 = vweird.f32 %v1387
    %vm1394 = vmor %vm1392, %vm1393
    %v1395 = vsel %vm1394, %v1387, %v1391
    %v1396 = vand.u32 2147483647, %v1353
    %vm1397 = vcmp.eq.f32.partialorder %v1396, 8.507059e+37
    %v1398 = vand.u32 %v1353, 2147483648
    %v1399 = vor.u32 1.1754944e-38, %v1398
    %v1400 = vsel %vm1397, %v1399, %v1395
    %v1401 = vmul.f32 %v1335, %v1400
    %v1402 = vrcp.pop %v1356
    %v1403 = vmul.f32 %v1356, %v1402
    %v1404 = vsub.f32 1.0, %v1403
    %v1405 = vmul.f32 %v1402, %v1404
    %v1406 = vadd.f32 %v1402, %v1405
    %vm1407 = vweird.f32 %v1356
    %vm1408 = vweird.f32 %v1402
    %vm1409 = vmor %vm1407, %vm1408
    %v1410 = vsel %vm1409, %v1402, %v1406
    %v1411 = vand.u32 2147483647, %v1356
    %vm1412 = vcmp.eq.f32.partialorder %v1411, 8.507059e+37
    %v1413 = vand.u32 %v1356, 2147483648
    %v1414 = vor.u32 1.1754944e-38, %v1413
    %v1415 = vsel %vm1412, %v1414, %v1410
    %v1416 = vmul.f32 %v1337, %v1415
    %v1417 = vrcp.pop %v1359
    %v1418 = vmul.f32 %v1359, %v1417
    %v1419 = vsub.f32 1.0, %v1418
    %v1420 = vmul.f32 %v1417, %v1419
    %v1421 = vadd.f32 %v1417, %v1420
    %vm1422 = vweird.f32 %v1359
    %vm1423 = vweird.f32 %v1417
    %vm1424 = vmor %vm1422, %vm1423
    %v1425 = vsel %vm1424, %v1417, %v1421
    %v1426 = vand.u32 2147483647, %v1359
    %vm1427 = vcmp.eq.f32.partialorder %v1426, 8.507059e+37
    %v1428 = vand.u32 %v1359, 2147483648
    %v1429 = vor.u32 1.1754944e-38, %v1428
    %v1430 = vsel %vm1427, %v1429, %v1425
    %v1431 = vmul.f32 %v1339, %v1430
    %v1432 = vrcp.pop %v1362
    %v1433 = vmul.f32 %v1362, %v1432
    %v1434 = vsub.f32 1.0, %v1433
    %v1435 = vmul.f32 %v1432, %v1434
    %v1436 = vadd.f32 %v1432, %v1435
    %vm1437 = vweird.f32 %v1362
    %vm1438 = vweird.f32 %v1432
    %vm1439 = vmor %vm1437, %vm1438
    %v1440 = vsel %vm1439, %v1432, %v1436
    %v1441 = vand.u32 2147483647, %v1362
    %vm1442 = vcmp.eq.f32.partialorder %v1441, 8.507059e+37
    %v1443 = vand.u32 %v1362, 2147483648
    %v1444 = vor.u32 1.1754944e-38, %v1443
    %v1445 = vsel %vm1442, %v1444, %v1440
    %v1446 = vmul.f32 %v1341, %v1445
    %v1447 = vrcp.pop %v1365
    %v1448 = vmul.f32 %v1365, %v1447
    %v1449 = vsub.f32 1.0, %v1448
    %v1450 = vmul.f32 %v1447, %v1449
    %v1451 = vadd.f32 %v1447, %v1450
    %vm1452 = vweird.f32 %v1365
    %vm1453 = vweird.f32 %v1447
    %vm1454 = vmor %vm1452, %vm1453
    %v1455 = vsel %vm1454, %v1447, %v1451
    %v1456 = vand.u32 2147483647, %v1365
    %vm1457 = vcmp.eq.f32.partialorder %v1456, 8.507059e+37
    %v1458 = vand.u32 %v1365, 2147483648
    %v1459 = vor.u32 1.1754944e-38, %v1458
    %v1460 = vsel %vm1457, %v1459, %v1455
    %v1461 = vmul.f32 %v1343, %v1460
    %v1462 = vrcp.pop %v1368
    %v1463 = vmul.f32 %v1368, %v1462
    %v1464 = vsub.f32 1.0, %v1463
    %v1465 = vmul.f32 %v1462, %v1464
    %v1466 = vadd.f32 %v1462, %v1465
    %vm1467 = vweird.f32 %v1368
    %vm1468 = vweird.f32 %v1462
    %vm1469 = vmor %vm1467, %vm1468
    %v1470 = vsel %vm1469, %v1462, %v1466
    %v1471 = vand.u32 2147483647, %v1368
    %vm1472 = vcmp.eq.f32.partialorder %v1471, 8.507059e+37
    %v1473 = vand.u32 %v1368, 2147483648
    %v1474 = vor.u32 1.1754944e-38, %v1473
    %v1475 = vsel %vm1472, %v1474, %v1470
    %v1476 = vmul.f32 %v1345, %v1475
    %v1477 = vrcp.pop %v1371
    %v1478 = vmul.f32 %v1371, %v1477
    %v1479 = vsub.f32 1.0, %v1478
    %v1480 = vmul.f32 %v1477, %v1479
    %v1481 = vadd.f32 %v1477, %v1480
    %vm1482 = vweird.f32 %v1371
    %vm1483 = vweird.f32 %v1477
    %vm1484 = vmor %vm1482, %vm1483
    %v1485 = vsel %vm1484, %v1477, %v1481
    %v1486 = vand.u32 2147483647, %v1371
    %vm1487 = vcmp.eq.f32.partialorder %v1486, 8.507059e+37
    %v1488 = vand.u32 %v1371, 2147483648
    %v1489 = vor.u32 1.1754944e-38, %v1488
    %v1490 = vsel %vm1487, %v1489, %v1485
    %v1491 = vmul.f32 %v1347, %v1490
    %s1492 = scalar_lea.vmem [#allocation9], 64
    %1493 = vst.msk [vmem:[%s1492] sm:$0xff] %vm159, %v1386
    %1494 = vst.msk [vmem:[%s1492 + $0x8] sm:$0xff] %vm159, %v1401
    %1495 = vst.msk [vmem:[%s1492 + $0x10] sm:$0xff] %vm159, %v1416
    %1496 = vst.msk [vmem:[%s1492 + $0x18] sm:$0xff] %vm159, %v1431
    %1497 = vst.msk [vmem:[%s1492 + $0x20] sm:$0xff] %vm159, %v1446
    %1498 = vst.msk [vmem:[%s1492 + $0x28] sm:$0xff] %vm159, %v1461
    %1499 = vst.msk [vmem:[%s1492 + $0x30] sm:$0xff] %vm159, %v1476
    %1500 = vst.msk [vmem:[%s1492 + $0x38] sm:$0xff] %vm159, %v1491
    %v1501 = vpack.c.bf16 %v1386, %v1386
    %v1502 = vpack.c.bf16 %v1401, %v1401
    %v1503 = vpack.c.bf16 %v1416, %v1416
    %v1504 = vpack.c.bf16 %v1431, %v1431
    %v1505 = vpack.c.bf16 %v1446, %v1446
    %v1506 = vpack.c.bf16 %v1461, %v1461
    %v1507 = vpack.c.bf16 %v1476, %v1476
    %v1508 = vpack.c.bf16 %v1491, %v1491
    %1509 = vrot.lane.b32.xlu0 %v1102, 64
    %v1510 = vpop.permute.xlu0 %1509
    %v1512 = vsel %vm159, %v1501, 0
    %v1515 = vsel %vm568, %v1510, 0
    %1517 = vmatpush.bf16.msra.mxu0 0
    %1518 = vmatpush.bf16.msra.mxu0 0
    %1519 = vmatpush.bf16.msra.mxu0 0
    %1520 = vmatpush.bf16.msra.mxu0 0
    %1521 = vmatpush.bf16.msra.mxu0 0
    %1522 = vmatpush.bf16.msra.mxu0 0
    %1523 = vmatpush.bf16.msra.mxu0 0
    %1524 = vmatpush.bf16.msra.mxu0 %v1515
    %1525 = vmatmul.bf16.gmra.mxu0 %v1512
    %v1526 = vpop.f32.mrf.mxu0
    %v1527 = vadd.f32 0.0, %v1526
    %v1528 = vpop.f32.mrf.mxu0
    %1529 = vdwg.mxu0
    %1530 = vrot.lane.b32.xlu0 %v1126, 64
    %v1531 = vpop.permute.xlu0 %1530
    %v1533 = vsel %vm159, %v1502, 0
    %v1536 = vsel %vm568, %v1531, 0
    %1538 = vmatpush.bf16.msra.mxu0 0
    %1539 = vmatpush.bf16.msra.mxu0 0
    %1540 = vmatpush.bf16.msra.mxu0 0
    %1541 = vmatpush.bf16.msra.mxu0 0
    %1542 = vmatpush.bf16.msra.mxu0 0
    %1543 = vmatpush.bf16.msra.mxu0 0
    %1544 = vmatpush.bf16.msra.mxu0 0
    %1545 = vmatpush.bf16.msra.mxu0 %v1536
    %1546 = vmatmul.bf16.gmra.mxu0 %v1533
    %v1547 = vpop.f32.mrf.mxu0
    %v1548 = vadd.f32 0.0, %v1547
    %v1549 = vpop.f32.mrf.mxu0
    %1550 = vdwg.mxu0
    %1551 = vrot.lane.b32.xlu0 %v1150, 64
    %v1552 = vpop.permute.xlu0 %1551
    %v1554 = vsel %vm159, %v1503, 0
    %v1557 = vsel %vm568, %v1552, 0
    %1559 = vmatpush.bf16.msra.mxu0 0
    %1560 = vmatpush.bf16.msra.mxu0 0
    %1561 = vmatpush.bf16.msra.mxu0 0
    %1562 = vmatpush.bf16.msra.mxu0 0
    %1563 = vmatpush.bf16.msra.mxu0 0
    %1564 = vmatpush.bf16.msra.mxu0 0
    %1565 = vmatpush.bf16.msra.mxu0 0
    %1566 = vmatpush.bf16.msra.mxu0 %v1557
    %1567 = vmatmul.bf16.gmra.mxu0 %v1554
    %v1568 = vpop.f32.mrf.mxu0
    %v1569 = vadd.f32 0.0, %v1568
    %v1570 = vpop.f32.mrf.mxu0
    %1571 = vdwg.mxu0
    %1572 = vrot.lane.b32.xlu0 %v1174, 64
    %v1573 = vpop.permute.xlu0 %1572
    %v1575 = vsel %vm159, %v1504, 0
    %v1578 = vsel %vm568, %v1573, 0
    %1580 = vmatpush.bf16.msra.mxu0 0
    %1581 = vmatpush.bf16.msra.mxu0 0
    %1582 = vmatpush.bf16.msra.mxu0 0
    %1583 = vmatpush.bf16.msra.mxu0 0
    %1584 = vmatpush.bf16.msra.mxu0 0
    %1585 = vmatpush.bf16.msra.mxu0 0
    %1586 = vmatpush.bf16.msra.mxu0 0
    %1587 = vmatpush.bf16.msra.mxu0 %v1578
    %1588 = vmatmul.bf16.gmra.mxu0 %v1575
    %v1589 = vpop.f32.mrf.mxu0
    %v1590 = vadd.f32 0.0, %v1589
    %v1591 = vpop.f32.mrf.mxu0
    %1592 = vdwg.mxu0
    %1593 = vrot.lane.b32.xlu0 %v1198, 64
    %v1594 = vpop.permute.xlu0 %1593
    %v1596 = vsel %vm159, %v1505, 0
    %v1599 = vsel %vm568, %v1594, 0
    %1601 = vmatpush.bf16.msra.mxu0 0
    %1602 = vmatpush.bf16.msra.mxu0 0
    %1603 = vmatpush.bf16.msra.mxu0 0
    %1604 = vmatpush.bf16.msra.mxu0 0
    %1605 = vmatpush.bf16.msra.mxu0 0
    %1606 = vmatpush.bf16.msra.mxu0 0
    %1607 = vmatpush.bf16.msra.mxu0 0
    %1608 = vmatpush.bf16.msra.mxu0 %v1599
    %1609 = vmatmul.bf16.gmra.mxu0 %v1596
    %v1610 = vpop.f32.mrf.mxu0
    %v1611 = vadd.f32 0.0, %v1610
    %v1612 = vpop.f32.mrf.mxu0
    %1613 = vdwg.mxu0
    %1614 = vrot.lane.b32.xlu0 %v1222, 64
    %v1615 = vpop.permute.xlu0 %1614
    %v1617 = vsel %vm159, %v1506, 0
    %v1620 = vsel %vm568, %v1615, 0
    %1622 = vmatpush.bf16.msra.mxu0 0
    %1623 = vmatpush.bf16.msra.mxu0 0
    %1624 = vmatpush.bf16.msra.mxu0 0
    %1625 = vmatpush.bf16.msra.mxu0 0
    %1626 = vmatpush.bf16.msra.mxu0 0
    %1627 = vmatpush.bf16.msra.mxu0 0
    %1628 = vmatpush.bf16.msra.mxu0 0
    %1629 = vmatpush.bf16.msra.mxu0 %v1620
    %1630 = vmatmul.bf16.gmra.mxu0 %v1617
    %v1631 = vpop.f32.mrf.mxu0
    %v1632 = vadd.f32 0.0, %v1631
    %v1633 = vpop.f32.mrf.mxu0
    %1634 = vdwg.mxu0
    %1635 = vrot.lane.b32.xlu0 %v1246, 64
    %v1636 = vpop.permute.xlu0 %1635
    %v1638 = vsel %vm159, %v1507, 0
    %v1641 = vsel %vm568, %v1636, 0
    %1643 = vmatpush.bf16.msra.mxu0 0
    %1644 = vmatpush.bf16.msra.mxu0 0
    %1645 = vmatpush.bf16.msra.mxu0 0
    %1646 = vmatpush.bf16.msra.mxu0 0
    %1647 = vmatpush.bf16.msra.mxu0 0
    %1648 = vmatpush.bf16.msra.mxu0 0
    %1649 = vmatpush.bf16.msra.mxu0 0
    %1650 = vmatpush.bf16.msra.mxu0 %v1641
    %1651 = vmatmul.bf16.gmra.mxu0 %v1638
    %v1652 = vpop.f32.mrf.mxu0
    %v1653 = vadd.f32 0.0, %v1652
    %v1654 = vpop.f32.mrf.mxu0
    %1655 = vdwg.mxu0
    %1656 = vrot.lane.b32.xlu0 %v1270, 64
    %v1657 = vpop.permute.xlu0 %1656
    %v1659 = vsel %vm159, %v1508, 0
    %v1662 = vsel %vm568, %v1657, 0
    %1664 = vmatpush.bf16.msra.mxu0 0
    %1665 = vmatpush.bf16.msra.mxu0 0
    %1666 = vmatpush.bf16.msra.mxu0 0
    %1667 = vmatpush.bf16.msra.mxu0 0
    %1668 = vmatpush.bf16.msra.mxu0 0
    %1669 = vmatpush.bf16.msra.mxu0 0
    %1670 = vmatpush.bf16.msra.mxu0 0
    %1671 = vmatpush.bf16.msra.mxu0 %v1662
    %1672 = vmatmul.bf16.gmra.mxu0 %v1659
    %v1673 = vpop.f32.mrf.mxu0
    %v1674 = vadd.f32 0.0, %v1673
    %v1675 = vpop.f32.mrf.mxu0
    %1676 = vdwg.mxu0
    %s1677 = scalar_lea.vmem %s3, 16
    %v1678 = vld [vmem:[%s1677] sm:$0xf]
    %v1679 = vld [vmem:[%s1677 + $0x4] sm:$0xf]
    %v1680 = vld [vmem:[%s1677 + $0x8] sm:$0xf]
    %v1681 = vld [vmem:[%s1677 + $0xc] sm:$0xf]
    %v1682 = vpack.c.bf16 %v1548, %v1527
    %v1683 = vpack.c.bf16 %v1590, %v1569
    %v1685 = vsel %vm159, %v1683, 0
    %v1688 = vsel %vm568, %v1679, 0
    %1690 = vmatpush.bf16.msra.mxu0 0
    %1691 = vmatpush.bf16.msra.mxu0 0
    %1692 = vmatpush.bf16.msra.mxu0 0
    %1693 = vmatpush.bf16.msra.mxu0 0
    %1694 = vmatpush.bf16.msra.mxu0 0
    %1695 = vmatpush.bf16.msra.mxu0 0
    %1696 = vmatpush.bf16.msra.mxu0 0
    %1697 = vmatpush.bf16.msra.mxu0 %v1688
    %1698 = vmatmul.bf16.gmra.mxu0 %v1685
    %v1699 = vpop.f32.mrf.mxu0
    %v1700 = vadd.f32 0.0, %v1699
    %v1701 = vpop.f32.mrf.mxu0
    %v1702 = vadd.f32 0.0, %v1701
    %1703 = vdwg.mxu0
    %v1705 = vsel %vm159, %v1682, 0
    %v1708 = vsel %vm568, %v1678, 0
    %1710 = vmatpush.bf16.msra.mxu0 0
    %1711 = vmatpush.bf16.msra.mxu0 0
    %1712 = vmatpush.bf16.msra.mxu0 0
    %1713 = vmatpush.bf16.msra.mxu0 0
    %1714 = vmatpush.bf16.msra.mxu0 0
    %1715 = vmatpush.bf16.msra.mxu0 0
    %1716 = vmatpush.bf16.msra.mxu0 0
    %1717 = vmatpush.bf16.msra.mxu0 %v1708
    %1718 = vmatmul.bf16.gmra.mxu0 %v1705
    %v1719 = vpop.f32.mrf.mxu0
    %v1720 = vadd.f32 %v1700, %v1719
    %v1721 = vpop.f32.mrf.mxu0
    %v1722 = vadd.f32 %v1702, %v1721
    %1723 = vdwg.mxu0
    %v1724 = vpack.c.bf16 %v1632, %v1611
    %v1726 = vsel %vm159, %v1724, 0
    %v1729 = vsel %vm568, %v1680, 0
    %1731 = vmatpush.bf16.msra.mxu0 0
    %1732 = vmatpush.bf16.msra.mxu0 0
    %1733 = vmatpush.bf16.msra.mxu0 0
    %1734 = vmatpush.bf16.msra.mxu0 0
    %1735 = vmatpush.bf16.msra.mxu0 0
    %1736 = vmatpush.bf16.msra.mxu0 0
    %1737 = vmatpush.bf16.msra.mxu0 0
    %1738 = vmatpush.bf16.msra.mxu0 %v1729
    %1739 = vmatmul.bf16.gmra.mxu0 %v1726
    %v1740 = vpop.f32.mrf.mxu0
    %v1741 = vadd.f32 0.0, %v1740
    %v1742 = vpop.f32.mrf.mxu0
    %v1743 = vadd.f32 0.0, %v1742
    %1744 = vdwg.mxu0
    %v1745 = vadd.f32 %v1720, %v1741
    %v1746 = vadd.f32 %v1722, %v1743
    %v1747 = vpack.c.bf16 %v1674, %v1653
    %v1749 = vsel %vm159, %v1747, 0
    %v1752 = vsel %vm568, %v1681, 0
    %1754 = vmatpush.bf16.msra.mxu0 0
    %1755 = vmatpush.bf16.msra.mxu0 0
    %1756 = vmatpush.bf16.msra.mxu0 0
    %1757 = vmatpush.bf16.msra.mxu0 0
    %1758 = vmatpush.bf16.msra.mxu0 0
    %1759 = vmatpush.bf16.msra.mxu0 0
    %1760 = vmatpush.bf16.msra.mxu0 0
    %1761 = vmatpush.bf16.msra.mxu0 %v1752
    %1762 = vmatmul.bf16.gmra.mxu0 %v1749
    %v1763 = vpop.f32.mrf.mxu0
    %v1764 = vadd.f32 0.0, %v1763
    %v1765 = vpop.f32.mrf.mxu0
    %v1766 = vadd.f32 0.0, %v1765
    %1767 = vdwg.mxu0
    %v1768 = vadd.f32 %v1745, %v1764
    %v1769 = vadd.f32 %v1746, %v1766
    %v1770 = vadd.f32 %v1028, %v1768
    %v1771 = vadd.f32 %v1029, %v1769
    %v1772 = vperm.slane %v1031, 0
    %v1773 = vadd.f32 %v1770, %v1772
    %v1774 = vadd.f32 %v1771, %v1772
    %v1775 = vsel %vm108, %v1773, 0.0
    %1776 = vadd.xlane.f32.xlu0 %v1775
    %v1777 = vpop.xlane.xlu0 %1776
    %v1778 = vsel %vm108, %v1774, 0.0
    %1779 = vadd.xlane.f32.xlu0 %v1778
    %v1780 = vpop.xlane.xlu0 %1779
    %v1781 = vmul.f32 %v1777, %v841
    %v1782 = vmul.f32 %v1780, %v841
    %v1783 = vsub.f32 %v1773, %v1781
    %v1784 = vsub.f32 %v1774, %v1782
    %v1785 = vmul.f32 %v1783, %v1783
    %v1786 = vmul.f32 %v1784, %v1784
    %v1787 = vsel %vm108, %v1785, 0.0
    %1788 = vadd.xlane.f32.xlu0 %v1787
    %v1789 = vpop.xlane.xlu0 %1788
    %v1790 = vsel %vm108, %v1786, 0.0
    %1791 = vadd.xlane.f32.xlu0 %v1790
    %v1792 = vpop.xlane.xlu0 %1791
    %v1793 = vmul.f32 %v1789, %v841
    %v1794 = vmul.f32 %v1792, %v841
    %v1795 = vadd.f32 %v1793, 1e-05
    %v1796 = vadd.f32 %v1794, 1e-05
    %v1797 = vrsqrt.pop %v1795
    %v1798 = vmul.f32 %v1797, %v1795
    %v1799 = vmul.f32 %v1798, %v1797
    %v1800 = vmul.f32 0.5, %v1799
    %v1801 = vsub.f32 1.5, %v1800
    %v1802 = vmul.f32 %v1797, %v1801
    %vm1803 = vweird.f32 %v1795
    %vm1804 = vweird.f32 %v1797
    %vm1805 = vmor %vm1803, %vm1804
    %v1806 = vsel %vm1805, %v1797, %v1802
    %v1807 = vrsqrt.pop %v1796
    %v1808 = vmul.f32 %v1807, %v1796
    %v1809 = vmul.f32 %v1808, %v1807
    %v1810 = vmul.f32 0.5, %v1809
    %v1811 = vsub.f32 1.5, %v1810
    %v1812 = vmul.f32 %v1807, %v1811
    %vm1813 = vweird.f32 %v1796
    %vm1814 = vweird.f32 %v1807
    %vm1815 = vmor %vm1813, %vm1814
    %v1816 = vsel %vm1815, %v1807, %v1812
    %v1817 = vmul.f32 %v1783, %v1806
    %v1818 = vmul.f32 %v1784, %v1816
    %v1819 = vperm.slane %v1031, 2
    %v1820 = vmul.f32 %v1817, %v1819
    %v1821 = vmul.f32 %v1818, %v1819
    %v1822 = vperm.slane %v1031, 3
    %v1823 = vadd.f32 %v1820, %v1822
    %v1824 = vadd.f32 %v1821, %v1822
    %v1825 = vpack.c.bf16 %v1824, %v1823
    %s1826 = scalar_lea.vmem %s4, 16
    %v1827 = vld [vmem:[%s1826] sm:$0xf]
    %v1828 = vld [vmem:[%s1826 + $0x4] sm:$0xf]
    %v1829 = vld [vmem:[%s1826 + $0x8] sm:$0xf]
    %v1830 = vld [vmem:[%s1826 + $0xc] sm:$0xf]
    %s1831 = scalar_lea.vmem [#allocation7], 1
    %v1832 = vld [vmem:[%s1831] sm:$0x1]
    %v1834 = vperm.slane %v1832, 0
    %v1840 = vunpack.c.l.b16 %v1827
    %v1841 = vunpack.c.l.b16 %v1828
    %v1842 = vunpack.c.l.b16 %v1829
    %v1843 = vunpack.c.l.b16 %v1830
    %v1844 = vpack.c.b16 %v1841, %v1840
    %v1845 = vpack.c.b16 %v1843, %v1842
    %v1849 = vsel %vm108, %v1825, 0
    %1851 = vmatpush.bf16.msra.mxu0 0
    %1852 = vmatpush.bf16.msra.mxu0 0
    %1853 = vmatpush.bf16.msra.mxu0 0
    %1854 = vmatpush.bf16.msra.mxu0 0
    %1855 = vmatpush.bf16.msra.mxu0 0
    %1856 = vmatpush.bf16.msra.mxu0 0
    %1857 = vmatpush.bf16.msra.mxu0 %v1845
    %1858 = vmatpush.bf16.msra.mxu0 %v1844
    %1859 = vmatmul.bf16.gmra.mxu0 %v1849
    %v1860 = vpop.f32.mrf.mxu0
    %v1861 = vadd.f32 %v1834, %v1860
    %v1862 = vpop.f32.mrf.mxu0
    %v1863 = vadd.f32 %v1834, %v1862
    %1864 = vdwg.mxu0
    %v1865 = vmax.f32 %v1861, 0.0
    %v1866 = vmax.f32 %v1863, 0.0
    %v1867 = vpack.c.bf16 %v1866, %v1865
    %s1868 = scalar_lea.vmem %s6, 32
    %v1869 = vld [vmem:[%s1868] sm:$0xf]
    %v1870 = vld [vmem:[%s1868 + $0x4] sm:$0xf]
    %v1871 = vld [vmem:[%s1868 + $0x8] sm:$0xf]
    %v1872 = vld [vmem:[%s1868 + $0xc] sm:$0xf]
    %v1873 = vld [vmem:[%s1868 + $0x10] sm:$0xf]
    %v1874 = vld [vmem:[%s1868 + $0x14] sm:$0xf]
    %v1875 = vld [vmem:[%s1868 + $0x18] sm:$0xf]
    %v1876 = vld [vmem:[%s1868 + $0x1c] sm:$0xf]
    %v1877 = vperm.slane %v1031, 1
    %v1886 = vunpack.c.l.b16 %v1869
    %v1887 = vunpack.c.l.b16 %v1870
    %v1888 = vunpack.c.l.b16 %v1871
    %v1889 = vunpack.c.l.b16 %v1872
    %v1890 = vunpack.c.l.b16 %v1873
    %v1891 = vunpack.c.l.b16 %v1874
    %v1892 = vunpack.c.l.b16 %v1875
    %v1893 = vunpack.c.l.b16 %v1876
    %v1894 = vpack.c.b16 %v1887, %v1886
    %v1895 = vpack.c.b16 %v1889, %v1888
    %v1896 = vpack.c.b16 %v1891, %v1890
    %v1897 = vpack.c.b16 %v1893, %v1892
    %v1903 = vsel %vm960, %v1867, 0
    %1905 = vmatpush.bf16.msra.mxu0 0
    %1906 = vmatpush.bf16.msra.mxu0 0
    %1907 = vmatpush.bf16.msra.mxu0 0
    %1908 = vmatpush.bf16.msra.mxu0 0
    %1909 = vmatpush.bf16.msra.mxu0 %v1897
    %1910 = vmatpush.bf16.msra.mxu0 %v1896
    %1911 = vmatpush.bf16.msra.mxu0 %v1895
    %1912 = vmatpush.bf16.msra.mxu0 %v1894
    %1913 = vmatmul.bf16.gmra.mxu0 %v1903
    %v1914 = vpop.f32.mrf.mxu0
    %v1915 = vadd.f32 %v1877, %v1914
    %v1916 = vpop.f32.mrf.mxu0
    %v1917 = vadd.f32 %v1877, %v1916
    %1918 = vdwg.mxu0
    %v1919 = vadd.f32 %v1823, %v1915
    %v1920 = vadd.f32 %v1824, %v1917
    %v1921 = vsel %vm108, %v1919, 0.0
    %1922 = vadd.xlane.f32.xlu0 %v1921
    %v1923 = vpop.xlane.xlu0 %1922
    %v1924 = vsel %vm108, %v1920, 0.0
    %1925 = vadd.xlane.f32.xlu0 %v1924
    %v1926 = vpop.xlane.xlu0 %1925
    %v1927 = vmul.f32 %v1923, %v841
    %v1928 = vmul.f32 %v1926, %v841
    %v1929 = vsub.f32 %v1919, %v1927
    %v1930 = vsub.f32 %v1920, %v1928
    %v1931 = vmul.f32 %v1929, %v1929
    %v1932 = vmul.f32 %v1930, %v1930
    %v1933 = vsel %vm108, %v1931, 0.0
    %1934 = vadd.xlane.f32.xlu0 %v1933
    %v1935 = vpop.xlane.xlu0 %1934
    %v1936 = vsel %vm108, %v1932, 0.0
    %1937 = vadd.xlane.f32.xlu0 %v1936
    %v1938 = vpop.xlane.xlu0 %1937
    %v1939 = vmul.f32 %v1935, %v841
    %v1940 = vmul.f32 %v1938, %v841
    %v1941 = vadd.f32 %v1939, 1e-05
    %v1942 = vadd.f32 %v1940, 1e-05
    %v1943 = vrsqrt.pop %v1941
    %v1944 = vmul.f32 %v1943, %v1941
    %v1945 = vmul.f32 %v1944, %v1943
    %v1946 = vmul.f32 0.5, %v1945
    %v1947 = vsub.f32 1.5, %v1946
    %v1948 = vmul.f32 %v1943, %v1947
    %vm1949 = vweird.f32 %v1941
    %vm1950 = vweird.f32 %v1943
    %vm1951 = vmor %vm1949, %vm1950
    %v1952 = vsel %vm1951, %v1943, %v1948
    %v1953 = vrsqrt.pop %v1942
    %v1954 = vmul.f32 %v1953, %v1942
    %v1955 = vmul.f32 %v1954, %v1953
    %v1956 = vmul.f32 0.5, %v1955
    %v1957 = vsub.f32 1.5, %v1956
    %v1958 = vmul.f32 %v1953, %v1957
    %vm1959 = vweird.f32 %v1942
    %vm1960 = vweird.f32 %v1953
    %vm1961 = vmor %vm1959, %vm1960
    %v1962 = vsel %vm1961, %v1953, %v1958
    %v1963 = vmul.f32 %v1929, %v1952
    %v1964 = vmul.f32 %v1930, %v1962
    %v1965 = vperm.slane %v1031, 4
    %v1966 = vmul.f32 %v1963, %v1965
    %v1967 = vmul.f32 %v1964, %v1965
    %v1968 = vperm.slane %v1031, 5
    %v1969 = vadd.f32 %v1966, %v1968
    %v1970 = vadd.f32 %v1967, %v1968
    %v1971 = vld [vmem:[%s8] sm:$0x1]
    %v1972 = vld [vmem:[%s8 + $0x1] sm:$0x1]
    %v1973 = vsel %vm108, %v1969, 0.0
    %1974 = vadd.xlane.f32.xlu0 %v1973
    %v1975 = vpop.xlane.xlu0 %1974
    %v1976 = vsel %vm108, %v1970, 0.0
    %1977 = vadd.xlane.f32.xlu0 %v1976
    %v1978 = vpop.xlane.xlu0 %1977
    %v1979 = vmul.f32 %v1975, %v841
    %v1980 = vmul.f32 %v1978, %v841
    %v1981 = vsub.f32 %v1969, %v1979
    %v1982 = vsub.f32 %v1970, %v1980
    %v1983 = vmul.f32 %v1981, %v1981
    %v1984 = vmul.f32 %v1982, %v1982
    %v1985 = vsel %vm108, %v1983, 0.0
    %1986 = vadd.xlane.f32.xlu0 %v1985
    %v1987 = vpop.xlane.xlu0 %1986
    %v1988 = vsel %vm108, %v1984, 0.0
    %1989 = vadd.xlane.f32.xlu0 %v1988
    %v1990 = vpop.xlane.xlu0 %1989
    %v1991 = vmul.f32 %v1987, %v841
    %v1992 = vmul.f32 %v1990, %v841
    %v1993 = vadd.f32 %v1991, 1e-05
    %v1994 = vadd.f32 %v1992, 1e-05
    %v1995 = vrsqrt.pop %v1993
    %v1996 = vmul.f32 %v1995, %v1993
    %v1997 = vmul.f32 %v1996, %v1995
    %v1998 = vmul.f32 0.5, %v1997
    %v1999 = vsub.f32 1.5, %v1998
    %v2000 = vmul.f32 %v1995, %v1999
    %vm2001 = vweird.f32 %v1993
    %vm2002 = vweird.f32 %v1995
    %vm2003 = vmor %vm2001, %vm2002
    %v2004 = vsel %vm2003, %v1995, %v2000
    %v2005 = vrsqrt.pop %v1994
    %v2006 = vmul.f32 %v2005, %v1994
    %v2007 = vmul.f32 %v2006, %v2005
    %v2008 = vmul.f32 0.5, %v2007
    %v2009 = vsub.f32 1.5, %v2008
    %v2010 = vmul.f32 %v2005, %v2009
    %vm2011 = vweird.f32 %v1994
    %vm2012 = vweird.f32 %v2005
    %vm2013 = vmor %vm2011, %vm2012
    %v2014 = vsel %vm2013, %v2005, %v2010
    %v2015 = vmul.f32 %v1981, %v2004
    %v2016 = vmul.f32 %v1982, %v2014
    %v2017 = vperm.slane %v1971, 0
    %v2018 = vmul.f32 %v2015, %v2017
    %v2019 = vmul.f32 %v2016, %v2017
    %v2020 = vperm.slane %v1972, 0
    %v2021 = vadd.f32 %v2018, %v2020
    %v2022 = vadd.f32 %v2019, %v2020
    %2023 = vst.msk [vmem:[#allocation8] sm:$0xff] %vm108, %v2021
    %2024 = vst.msk [vmem:[#allocation8 + $0x8] sm:$0xff] %vm108, %v2022
    // Predicated region
    $region50: #{tpu_custom_call.1} parent=1 // pred_check
      _
    $region51: #{tpu_custom_call.1} parent=1 // pred_check_branch
      %2026 = sbr.rel (0) target = $region53
    $region52: #{tpu_custom_call.1} parent=1 // pred_region
      %2028 = vsyncadd [#allocation4], 0
      %s2029 = sshll.u32 [#allocation8], 4
      %s2030 = int_to_ptr.vmem [resolvable:$true] %s2029
      %s2031 = sshll.u32 %s9, 4
      %s2032 = int_to_ptr.hbm [resolvable:$true] %s2031
      %2037 = dma.vmem_to_hbm [thread:$0]  %s2030, 256, %s2032, [#allocation4], 128, 128, 8
    $region53: #{tpu_custom_call.1} parent=1 // pred_fallthru
      _
    // Predicated region
    $region54: #{tpu_custom_call.1} parent=1 // pred_check
      _
    $region55: #{tpu_custom_call.1} parent=1 // pred_check_branch
      %2039 = sbr.rel (0) target = $region57
    $region56: #{tpu_custom_call.1} parent=1 // pred_region
      %2041 = vsyncadd [#allocation10], 0
      %s2042 = sshll.u32 [#allocation9], 4
      %s2043 = int_to_ptr.vmem [resolvable:$true] %s2042
      %s2044 = sshll.u32 %s10, 4
      %s2045 = int_to_ptr.hbm [resolvable:$true] %s2044
      %2050 = dma.vmem_to_hbm [thread:$0]  %s2043, 2048, %s2045, [#allocation10], 128, 128, 8
    $region57: #{tpu_custom_call.1} parent=1 // pred_fallthru
      _
    // Predicated region
    $region58: #{tpu_custom_call.1} parent=1 // pred_check
      _
    $region59: #{tpu_custom_call.1} parent=1 // pred_check_branch
      %2052 = sbr.rel (0) target = $region61
    $region60: #{tpu_custom_call.1} parent=1 // pred_region
      %2054 = dma.done [#allocation4], 256
    $region61: #{tpu_custom_call.1} parent=1 // pred_fallthru
      _
    // Predicated region
    $region62: #{tpu_custom_call.1} parent=1 // pred_check
      _
    $region63: #{tpu_custom_call.1} parent=1 // pred_check_branch
      %2056 = sbr.rel (0) target = $region65
    $region64: #{tpu_custom_call.1} parent=1 // pred_region
      %2058 = dma.done [#allocation10], 2048
    $region65: #{tpu_custom_call.1} parent=1 // pred_fallthru
      _
    %2059 = vsyncpa [#allocation3], 1
    %2060 = vsyncpa [#allocation6], 1
    %2061 = vsyncpa [#allocation4], 1
    %2062 = vsyncpa [#allocation10], 1

// kernel: tpu_custom_call.1
$region0: #{tpu_custom_call.1}
  #allocation0 [shape = 'u32[]', space=smem, size = 0x4, offset = 0x4, fixed_abs, tag = 'smem constant byte address 0x4 - core index']
  #allocation1 [shape = 'u32[72,128]{1,0:T(1,128)}', space=vmem, size = 0x9000, scoped, tag = 'internal scratch']
  %s0 = inlined_call_operand.hbm [shape: f32[2,8,32], index: 0, kind: input, shape index: {}]
  %s1 = inlined_call_operand.vmem [shape: bf16[2,32,96], index: 1, kind: input, shape index: {}]
  %s2 = inlined_call_operand.hbm [shape: f32[2,1,96], index: 2, kind: input, shape index: {}]
  %s3 = inlined_call_operand.vmem [shape: bf16[2,32,32], index: 3, kind: input, shape index: {}]
  %s4 = inlined_call_operand.vmem [shape: bf16[2,32,64], index: 4, kind: input, shape index: {}]
  %s5 = inlined_call_operand.hbm [shape: f32[2,1,64], index: 5, kind: input, shape index: {}]
  %s6 = inlined_call_operand.vmem [shape: bf16[2,64,32], index: 6, kind: input, shape index: {}]
  %s7 = inlined_call_operand.vmem [shape: f32[2,6,32], index: 7, kind: input, shape index: {}]
  %s8 = inlined_call_operand.vmem [shape: f32[2,32], index: 8, kind: input, shape index: {}]
  %s9 = inlined_call_operand.hbm [shape: f32[2,8,32], index: 9, kind: output, shape index: {0}]
  %s10 = inlined_call_operand.hbm [shape: f32[2,4,2,8,8], index: 10, kind: output, shape index: {1}]
  %11 = xla_tuple %s9, %s10
  %s12 = sld [smem:[#allocation0]]
  $region66: #{tpu_custom_call.1} parent=0
    _
  %s14 = ssub.s32 1, %s12
  %s15 = scalar_select 0, %s14, %s12
  $region1: #{tpu_custom_call.1} parent=0
    #allocation2 [shape = 'u8[8192]{0}', space=vmem, size = 0x2000, scoped, tag = 'input window, operand 0, single buffered']
    #allocation3 [shape = 's32[1]{0}', space=sflag, size = 0x4, scoped, tag = 'scoped memory for tpu_custom_call.1']
    #allocation4 [shape = 's32[1]{0}', space=sflag, size = 0x4, scoped, tag = 'scoped memory for tpu_custom_call.1']
    #allocation5 [shape = 'u8[1024]{0}', space=vmem, size = 0x400, scoped, tag = 'input window, operand 2, single buffered']
    #allocation6 [shape = 's32[1]{0}', space=sflag, size = 0x4, scoped, tag = 'scoped memory for tpu_custom_call.1']
    #allocation7 [shape = 'u8[1024]{0}', space=vmem, size = 0x400, scoped, tag = 'input window, operand 5, single buffered']
    #allocation8 [shape = 'u8[8192]{0}', space=vmem, size = 0x2000, scoped, tag = 'output window, operand 0, single buffered']
    #allocation9 [shape = 'u8[65536]{0}', space=vmem, size = 0x10000, scoped, tag = 'output window, operand 1, single buffered']
    #allocation10 [shape = 's32[1]{0}', space=sflag, size = 0x4, scoped, tag = 'scoped memory for tpu_custom_call.1']
    %16 = vsyncpa [#allocation3], 0
    %17 = vsyncpa [#allocation6], 0
    %18 = vsyncpa [#allocation4], 0
    %19 = vsyncpa [#allocation10], 0
    // Predicated region
    $region2: #{tpu_custom_call.1} parent=1 // pred_check
      _
    $region3: #{tpu_custom_call.1} parent=1 // pred_check_branch
      %21 = sbr.rel (0) target = $region5
    $region4: #{tpu_custom_call.1} parent=1 // pred_region
      %23 = vsyncadd [#allocation3], 0
      %s24 = sshll.u32 %s0, 4
      %s25 = int_to_ptr.hbm [resolvable:$true] %s24
      %s26 = sshll.u32 [#allocation2], 4
      %s27 = int_to_ptr.vmem [resolvable:$true] %s26
      %32 = dma.hbm_to_vmem [thread:$0]  %s25, 256, %s27, [#allocation3], 128, 128, 8
    $region5: #{tpu_custom_call.1} parent=1 // pred_fallthru
      _
    // Predicated region
    $region6: #{tpu_custom_call.1} parent=1 // pred_check
      _
    $region7: #{tpu_custom_call.1} parent=1 // pred_check_branch
      %34 = sbr.rel (0) target = $region9
    $region8: #{tpu_custom_call.1} parent=1 // pred_region
      _
    $region9: #{tpu_custom_call.1} parent=1 // pred_fallthru
      _
    // Predicated region
    $region10: #{tpu_custom_call.1} parent=1 // pred_check
      _
    $region11: #{tpu_custom_call.1} parent=1 // pred_check_branch
      %36 = sbr.rel (0) target = $region13
    $region12: #{tpu_custom_call.1} parent=1 // pred_region
      %38 = vsyncadd [#allocation6], 0
      %s39 = sshll.u32 %s2, 4
      %s40 = int_to_ptr.hbm [resolvable:$true] %s39
      %s41 = sshll.u32 [#allocation5], 4
      %s42 = int_to_ptr.vmem [resolvable:$true] %s41
      %47 = dma.hbm_to_vmem [thread:$0]  %s40, 32, %s42, [#allocation6], 16, 16, 1
    $region13: #{tpu_custom_call.1} parent=1 // pred_fallthru
      _
    // Predicated region
    $region14: #{tpu_custom_call.1} parent=1 // pred_check
      _
    $region15: #{tpu_custom_call.1} parent=1 // pred_check_branch
      %49 = sbr.rel (0) target = $region17
    $region16: #{tpu_custom_call.1} parent=1 // pred_region
      _
    $region17: #{tpu_custom_call.1} parent=1 // pred_fallthru
      _
    // Predicated region
    $region18: #{tpu_custom_call.1} parent=1 // pred_check
      _
    $region19: #{tpu_custom_call.1} parent=1 // pred_check_branch
      %51 = sbr.rel (0) target = $region21
    $region20: #{tpu_custom_call.1} parent=1 // pred_region
      _
    $region21: #{tpu_custom_call.1} parent=1 // pred_fallthru
      _
    // Predicated region
    $region22: #{tpu_custom_call.1} parent=1 // pred_check
      _
    $region23: #{tpu_custom_call.1} parent=1 // pred_check_branch
      %53 = sbr.rel (0) target = $region25
    $region24: #{tpu_custom_call.1} parent=1 // pred_region
      %55 = vsyncadd [#allocation6], 0
      %s56 = sshll.u32 %s5, 4
      %s57 = int_to_ptr.hbm [resolvable:$true] %s56
      %s58 = sshll.u32 [#allocation7], 4
      %s59 = int_to_ptr.vmem [resolvable:$true] %s58
      %64 = dma.hbm_to_vmem [thread:$0]  %s57, 32, %s59, [#allocation6], 16, 16, 1
    $region25: #{tpu_custom_call.1} parent=1 // pred_fallthru
      _
    // Predicated region
    $region26: #{tpu_custom_call.1} parent=1 // pred_check
      _
    $region27: #{tpu_custom_call.1} parent=1 // pred_check_branch
      %66 = sbr.rel (0) target = $region29
    $region28: #{tpu_custom_call.1} parent=1 // pred_region
      _
    $region29: #{tpu_custom_call.1} parent=1 // pred_fallthru
      _
    // Predicated region
    $region30: #{tpu_custom_call.1} parent=1 // pred_check
      _
    $region31: #{tpu_custom_call.1} parent=1 // pred_check_branch
      %68 = sbr.rel (0) target = $region33
    $region32: #{tpu_custom_call.1} parent=1 // pred_region
      _
    $region33: #{tpu_custom_call.1} parent=1 // pred_fallthru
      _
    // Predicated region
    $region34: #{tpu_custom_call.1} parent=1 // pred_check
      _
    $region35: #{tpu_custom_call.1} parent=1 // pred_check_branch
      %70 = sbr.rel (0) target = $region37
    $region36: #{tpu_custom_call.1} parent=1 // pred_region
      _
    $region37: #{tpu_custom_call.1} parent=1 // pred_fallthru
      _
    // Predicated region
    $region38: #{tpu_custom_call.1} parent=1 // pred_check
      _
    $region39: #{tpu_custom_call.1} parent=1 // pred_check_branch
      %72 = sbr.rel (0) target = $region41
    $region40: #{tpu_custom_call.1} parent=1 // pred_region
      %74 = dma.done [#allocation3], 256
    $region41: #{tpu_custom_call.1} parent=1 // pred_fallthru
      _
    // Predicated region
    $region42: #{tpu_custom_call.1} parent=1 // pred_check
      _
    $region43: #{tpu_custom_call.1} parent=1 // pred_check_branch
      %76 = sbr.rel (0) target = $region45
    $region44: #{tpu_custom_call.1} parent=1 // pred_region
      %78 = dma.done [#allocation6], 32
    $region45: #{tpu_custom_call.1} parent=1 // pred_fallthru
      _
    // Predicated region
    $region46: #{tpu_custom_call.1} parent=1 // pred_check
      _
    $region47: #{tpu_custom_call.1} parent=1 // pred_check_branch
      %80 = sbr.rel (0) target = $region49
    $region48: #{tpu_custom_call.1} parent=1 // pred_region
      %82 = dma.done [#allocation6], 32
    $region49: #{tpu_custom_call.1} parent=1 // pred_fallthru
      _
    %v84 = vld [vmem:[#allocation2] sm:$0xff]
    %v85 = vld [vmem:[#allocation2 + $0x8] sm:$0xff]
    %v86 = vld [vmem:[%s7] sm:$0x3f]
    %v87 = vpack.c.bf16 %v85, %v84
    %v88 = vld [vmem:[%s1] sm:$0xf]
    %v89 = vld [vmem:[%s1 + $0x4] sm:$0xf]
    %v90 = vld [vmem:[%s1 + $0x8] sm:$0xf]
    %v91 = vld [vmem:[%s1 + $0xc] sm:$0xf]
    %v92 = vld [vmem:[#allocation5] sm:$0x1]
    %v94 = vperm.slane %v92, 0
    %v100 = vunpack.c.l.b16 %v88
    %v101 = vunpack.c.l.b16 %v89
    %v102 = vunpack.c.l.b16 %v90
    %v103 = vunpack.c.l.b16 %v91
    %v104 = vpack.c.b16 %v101, %v100
    %v105 = vpack.c.b16 %v103, %v102
    %vm108 = vcmask 261120
    %v110 = vsel %vm108, %v87, 0
    %112 = vmatpush.bf16.msra.mxu0 0
    %113 = vmatpush.bf16.msra.mxu0 0
    %114 = vmatpush.bf16.msra.mxu0 0
    %115 = vmatpush.bf16.msra.mxu0 0
    %116 = vmatpush.bf16.msra.mxu0 0
    %117 = vmatpush.bf16.msra.mxu0 0
    %118 = vmatpush.bf16.msra.mxu0 %v105
    %119 = vmatpush.bf16.msra.mxu0 %v104
    %120 = vmatmul.bf16.gmra.mxu0 %v110
    %v121 = vpop.f32.mrf.mxu0
    %v122 = vadd.f32 %v94, %v121
    %v123 = vpop.f32.mrf.mxu0
    %v124 = vadd.f32 %v94, %v123
    %125 = vdwg.mxu0
    %128 = vrot.lane.b32.xlu0 %v122, 120
    %v129 = vpop.permute.xlu0 %128
    %130 = vrot.lane.b32.xlu0 %v124, 120
    %v131 = vpop.permute.xlu0 %130
    %134 = vrot.lane.b32.xlu0 %v122, 112
    %v135 = vpop.permute.xlu0 %134
    %136 = vrot.lane.b32.xlu0 %v124, 112
    %v137 = vpop.permute.xlu0 %136
    %140 = vrot.lane.b32.xlu0 %v122, 104
    %v141 = vpop.permute.xlu0 %140
    %142 = vrot.lane.b32.xlu0 %v124, 104
    %v143 = vpop.permute.xlu0 %142
    %v146 = vpack.c.bf16 %v122, %v122
    %v147 = vpack.c.bf16 %v124, %v124
    %v148 = vpack.c.bf16 %v129, %v129
    %v149 = vpack.c.bf16 %v131, %v131
    %v150 = vpack.c.bf16 %v135, %v135
    %v151 = vpack.c.bf16 %v137, %v137
    %v152 = vpack.c.bf16 %v141, %v141
    %v153 = vpack.c.bf16 %v143, %v143
    %v155 = vunpack.c.l.b16 %v146
    %v156 = vpack.c.b16 %v155, %v155
    %157 = vrot.lane.b32.xlu0 %v156, 96
    %v158 = vpop.permute.xlu0 %157
    %vm159 = vcmask 64512
    %v161 = vsel %vm159, %v146, 0
    %v164 = vsel %vm159, %v158, 0
    %166 = vmatpush.bf16.xpose.msra.mxu0 0
    %167 = vmatpush.bf16.xpose.msra.mxu0 0
    %168 = vmatpush.bf16.xpose.msra.mxu0 0
    %169 = vmatpush.bf16.xpose.msra.mxu0 0
    %170 = vmatpush.bf16.xpose.msra.mxu0 0
    %171 = vmatpush.bf16.xpose.msra.mxu0 0
    %172 = vmatpush.bf16.xpose.msra.mxu0 0
    %173 = vmatpush.bf16.xpose.msra.mxu0 %v164
    %174 = vmatmul.bf16.gmra.mxu0 %v161
    %v175 = vpop.f32.mrf.mxu0
    %v176 = vadd.f32 0.0, %v175
    %v177 = vpop.f32.mrf.mxu0
    %178 = vdwg.mxu0
    %v180 = vunpack.c.l.b16 %v147
    %v181 = vpack.c.b16 %v180, %v180
    %182 = vrot.lane.b32.xlu0 %v181, 96
    %v183 = vpop.permute.xlu0 %182
    %v185 = vsel %vm159, %v147, 0
    %v188 = vsel %vm159, %v183, 0
    %190 = vmatpush.bf16.xpose.msra.mxu0 0
    %191 = vmatpush.bf16.xpose.msra.mxu0 0
    %192 = vmatpush.bf16.xpose.msra.mxu0 0
    %193 = vmatpush.bf16.xpose.msra.mxu0 0
    %194 = vmatpush.bf16.xpose.msra.mxu0 0
    %195 = vmatpush.bf16.xpose.msra.mxu0 0
    %196 = vmatpush.bf16.xpose.msra.mxu0 0
    %197 = vmatpush.bf16.xpose.msra.mxu0 %v188
    %198 = vmatmul.bf16.gmra.mxu0 %v185
    %v199 = vpop.f32.mrf.mxu0
    %v200 = vadd.f32 0.0, %v199
    %v201 = vpop.f32.mrf.mxu0
    %202 = vdwg.mxu0
    %v204 = vunpack.c.l.b16 %v148
    %v205 = vpack.c.b16 %v204, %v204
    %206 = vrot.lane.b32.xlu0 %v205, 96
    %v207 = vpop.permute.xlu0 %206
    %v209 = vsel %vm159, %v148, 0
    %v212 = vsel %vm159, %v207, 0
    %214 = vmatpush.bf16.xpose.msra.mxu0 0
    %215 = vmatpush.bf16.xpose.msra.mxu0 0
    %216 = vmatpush.bf16.xpose.msra.mxu0 0
    %217 = vmatpush.bf16.xpose.msra.mxu0 0
    %218 = vmatpush.bf16.xpose.msra.mxu0 0
    %219 = vmatpush.bf16.xpose.msra.mxu0 0
    %220 = vmatpush.bf16.xpose.msra.mxu0 0
    %221 = vmatpush.bf16.xpose.msra.mxu0 %v212
    %222 = vmatmul.bf16.gmra.mxu0 %v209
    %v223 = vpop.f32.mrf.mxu0
    %v224 = vadd.f32 0.0, %v223
    %v225 = vpop.f32.mrf.mxu0
    %226 = vdwg.mxu0
    %v228 = vunpack.c.l.b16 %v149
    %v229 = vpack.c.b16 %v228, %v228
    %230 = vrot.lane.b32.xlu0 %v229, 96
    %v231 = vpop.permute.xlu0 %230
    %v233 = vsel %vm159, %v149, 0
    %v236 = vsel %vm159, %v231, 0
    %238 = vmatpush.bf16.xpose.msra.mxu0 0
    %239 = vmatpush.bf16.xpose.msra.mxu0 0
    %240 = vmatpush.bf16.xpose.msra.mxu0 0
    %241 = vmatpush.bf16.xpose.msra.mxu0 0
    %242 = vmatpush.bf16.xpose.msra.mxu0 0
    %243 = vmatpush.bf16.xpose.msra.mxu0 0
    %244 = vmatpush.bf16.xpose.msra.mxu0 0
    %245 = vmatpush.bf16.xpose.msra.mxu0 %v236
    %246 = vmatmul.bf16.gmra.mxu0 %v233
    %v247 = vpop.f32.mrf.mxu0
    %v248 = vadd.f32 0.0, %v247
    %v249 = vpop.f32.mrf.mxu0
    %250 = vdwg.mxu0
    %v252 = vunpack.c.l.b16 %v150
    %v253 = vpack.c.b16 %v252, %v252
    %254 = vrot.lane.b32.xlu0 %v253, 96
    %v255 = vpop.permute.xlu0 %254
    %v257 = vsel %vm159, %v150, 0
    %v260 = vsel %vm159, %v255, 0
    %262 = vmatpush.bf16.xpose.msra.mxu0 0
    %263 = vmatpush.bf16.xpose.msra.mxu0 0
    %264 = vmatpush.bf16.xpose.msra.mxu0 0
    %265 = vmatpush.bf16.xpose.msra.mxu0 0
    %266 = vmatpush.bf16.xpose.msra.mxu0 0
    %267 = vmatpush.bf16.xpose.msra.mxu0 0
    %268 = vmatpush.bf16.xpose.msra.mxu0 0
    %269 = vmatpush.bf16.xpose.msra.mxu0 %v260
    %270 = vmatmul.bf16.gmra.mxu0 %v257
    %v271 = vpop.f32.mrf.mxu0
    %v272 = vadd.f32 0.0, %v271
    %v273 = vpop.f32.mrf.mxu0
    %274 = vdwg.mxu0
    %v276 = vunpack.c.l.b16 %v151
    %v277 = vpack.c.b16 %v276, %v276
    %278 = vrot.lane.b32.xlu0 %v277, 96
    %v279 = vpop.permute.xlu0 %278
    %v281 = vsel %vm159, %v151, 0
    %v284 = vsel %vm159, %v279, 0
    %286 = vmatpush.bf16.xpose.msra.mxu0 0
    %287 = vmatpush.bf16.xpose.msra.mxu0 0
    %288 = vmatpush.bf16.xpose.msra.mxu0 0
    %289 = vmatpush.bf16.xpose.msra.mxu0 0
    %290 = vmatpush.bf16.xpose.msra.mxu0 0
    %291 = vmatpush.bf16.xpose.msra.mxu0 0
    %292 = vmatpush.bf16.xpose.msra.mxu0 0
    %293 = vmatpush.bf16.xpose.msra.mxu0 %v284
    %294 = vmatmul.bf16.gmra.mxu0 %v281
    %v295 = vpop.f32.mrf.mxu0
    %v296 = vadd.f32 0.0, %v295
    %v297 = vpop.f32.mrf.mxu0
    %298 = vdwg.mxu0
    %v300 = vunpack.c.l.b16 %v152
    %v301 = vpack.c.b16 %v300, %v300
    %302 = vrot.lane.b32.xlu0 %v301, 96
    %v303 = vpop.permute.xlu0 %302
    %v305 = vsel %vm159, %v152, 0
    %v308 = vsel %vm159, %v303, 0
    %310 = vmatpush.bf16.xpose.msra.mxu0 0
    %311 = vmatpush.bf16.xpose.msra.mxu0 0
    %312 = vmatpush.bf16.xpose.msra.mxu0 0
    %313 = vmatpush.bf16.xpose.msra.mxu0 0
    %314 = vmatpush.bf16.xpose.msra.mxu0 0
    %315 = vmatpush.bf16.xpose.msra.mxu0 0
    %316 = vmatpush.bf16.xpose.msra.mxu0 0
    %317 = vmatpush.bf16.xpose.msra.mxu0 %v308
    %318 = vmatmul.bf16.gmra.mxu0 %v305
    %v319 = vpop.f32.mrf.mxu0
    %v320 = vadd.f32 0.0, %v319
    %v321 = vpop.f32.mrf.mxu0
    %322 = vdwg.mxu0
    %v324 = vunpack.c.l.b16 %v153
    %v325 = vpack.c.b16 %v324, %v324
    %326 = vrot.lane.b32.xlu0 %v325, 96
    %v327 = vpop.permute.xlu0 %326
    %v329 = vsel %vm159, %v153, 0
    %v332 = vsel %vm159, %v327, 0
    %334 = vmatpush.bf16.xpose.msra.mxu0 0
    %335 = vmatpush.bf16.xpose.msra.mxu0 0
    %336 = vmatpush.bf16.xpose.msra.mxu0 0
    %337 = vmatpush.bf16.xpose.msra.mxu0 0
    %338 = vmatpush.bf16.xpose.msra.mxu0 0
    %339 = vmatpush.bf16.xpose.msra.mxu0 0
    %340 = vmatpush.bf16.xpose.msra.mxu0 0
    %341 = vmatpush.bf16.xpose.msra.mxu0 %v332
    %342 = vmatmul.bf16.gmra.mxu0 %v329
    %v343 = vpop.f32.mrf.mxu0
    %v344 = vadd.f32 0.0, %v343
    %v345 = vpop.f32.mrf.mxu0
    %346 = vdwg.mxu0
    %v347 = vmul.f32 %v176, 0.35355338
    %v348 = vmul.f32 %v200, 0.35355338
    %v349 = vmul.f32 %v224, 0.35355338
    %v350 = vmul.f32 %v248, 0.35355338
    %v351 = vmul.f32 %v272, 0.35355338
    %v352 = vmul.f32 %v296, 0.35355338
    %v353 = vmul.f32 %v320, 0.35355338
    %v354 = vmul.f32 %v344, 0.35355338
    %v355 = vsel %vm159, %v347, -inf
    %356 = vmax.xlane.f32.xlu0 %v355
    %v357 = vpop.xlane.xlu0 %356
    %v358 = vsel %vm159, %v348, -inf
    %359 = vmax.xlane.f32.xlu0 %v358
    %v360 = vpop.xlane.xlu0 %359
    %v361 = vsel %vm159, %v349, -inf
    %362 = vmax.xlane.f32.xlu0 %v361
    %v363 = vpop.xlane.xlu0 %362
    %v364 = vsel %vm159, %v350, -inf
    %365 = vmax.xlane.f32.xlu0 %v364
    %v366 = vpop.xlane.xlu0 %365
    %v367 = vsel %vm159, %v351, -inf
    %368 = vmax.xlane.f32.xlu0 %v367
    %v369 = vpop.xlane.xlu0 %368
    %v370 = vsel %vm159, %v352, -inf
    %371 = vmax.xlane.f32.xlu0 %v370
    %v372 = vpop.xlane.xlu0 %371
    %v373 = vsel %vm159, %v353, -inf
    %374 = vmax.xlane.f32.xlu0 %v373
    %v375 = vpop.xlane.xlu0 %374
    %v376 = vsel %vm159, %v354, -inf
    %377 = vmax.xlane.f32.xlu0 %v376
    %v378 = vpop.xlane.xlu0 %377
    %v379 = vsub.f32 %v347, %v357
    %v380 = vsub.f32 %v348, %v360
    %v381 = vsub.f32 %v349, %v363
    %v382 = vsub.f32 %v350, %v366
    %v383 = vsub.f32 %v351, %v369
    %v384 = vsub.f32 %v352, %v372
    %v385 = vsub.f32 %v353, %v375
    %v386 = vsub.f32 %v354, %v378
    %v387 = vmul.f32 %v379, 1.442695
    %v388 = vpow.pop %v387
    %v389 = vmul.f32 %v380, 1.442695
    %v390 = vpow.pop %v389
    %v391 = vmul.f32 %v381, 1.442695
    %v392 = vpow.pop %v391
    %v393 = vmul.f32 %v382, 1.442695
    %v394 = vpow.pop %v393
    %v395 = vmul.f32 %v383, 1.442695
    %v396 = vpow.pop %v395
    %v397 = vmul.f32 %v384, 1.442695
    %v398 = vpow.pop %v397
    %v399 = vmul.f32 %v385, 1.442695
    %v400 = vpow.pop %v399
    %v401 = vmul.f32 %v386, 1.442695
    %v402 = vpow.pop %v401
    %v403 = vsel %vm159, %v388, 0.0
    %404 = vadd.xlane.f32.xlu0 %v403
    %v405 = vpop.xlane.xlu0 %404
    %v406 = vsel %vm159, %v390, 0.0
    %407 = vadd.xlane.f32.xlu0 %v406
    %v408 = vpop.xlane.xlu0 %407
    %v409 = vsel %vm159, %v392, 0.0
    %410 = vadd.xlane.f32.xlu0 %v409
    %v411 = vpop.xlane.xlu0 %410
    %v412 = vsel %vm159, %v394, 0.0
    %413 = vadd.xlane.f32.xlu0 %v412
    %v414 = vpop.xlane.xlu0 %413
    %v415 = vsel %vm159, %v396, 0.0
    %416 = vadd.xlane.f32.xlu0 %v415
    %v417 = vpop.xlane.xlu0 %416
    %v418 = vsel %vm159, %v398, 0.0
    %419 = vadd.xlane.f32.xlu0 %v418
    %v420 = vpop.xlane.xlu0 %419
    %v421 = vsel %vm159, %v400, 0.0
    %422 = vadd.xlane.f32.xlu0 %v421
    %v423 = vpop.xlane.xlu0 %422
    %v424 = vsel %vm159, %v402, 0.0
    %425 = vadd.xlane.f32.xlu0 %v424
    %v426 = vpop.xlane.xlu0 %425
    %v427 = vrcp.pop %v405
    %v428 = vmul.f32 %v405, %v427
    %v429 = vsub.f32 1.0, %v428
    %v430 = vmul.f32 %v427, %v429
    %v431 = vadd.f32 %v427, %v430
    %vm432 = vweird.f32 %v405
    %vm433 = vweird.f32 %v427
    %vm434 = vmor %vm432, %vm433
    %v435 = vsel %vm434, %v427, %v431
    %v436 = vand.u32 2147483647, %v405
    %vm437 = vcmp.eq.f32.partialorder %v436, 8.507059e+37
    %v438 = vand.u32 %v405, 2147483648
    %v439 = vor.u32 1.1754944e-38, %v438
    %v440 = vsel %vm437, %v439, %v435
    %v441 = vmul.f32 %v388, %v440
    %v442 = vrcp.pop %v408
    %v443 = vmul.f32 %v408, %v442
    %v444 = vsub.f32 1.0, %v443
    %v445 = vmul.f32 %v442, %v444
    %v446 = vadd.f32 %v442, %v445
    %vm447 = vweird.f32 %v408
    %vm448 = vweird.f32 %v442
    %vm449 = vmor %vm447, %vm448
    %v450 = vsel %vm449, %v442, %v446
    %v451 = vand.u32 2147483647, %v408
    %vm452 = vcmp.eq.f32.partialorder %v451, 8.507059e+37
    %v453 = vand.u32 %v408, 2147483648
    %v454 = vor.u32 1.1754944e-38, %v453
    %v455 = vsel %vm452, %v454, %v450
    %v456 = vmul.f32 %v390, %v455
    %v457 = vrcp.pop %v411
    %v458 = vmul.f32 %v411, %v457
    %v459 = vsub.f32 1.0, %v458
    %v460 = vmul.f32 %v457, %v459
    %v461 = vadd.f32 %v457, %v460
    %vm462 = vweird.f32 %v411
    %vm463 = vweird.f32 %v457
    %vm464 = vmor %vm462, %vm463
    %v465 = vsel %vm464, %v457, %v461
    %v466 = vand.u32 2147483647, %v411
    %vm467 = vcmp.eq.f32.partialorder %v466, 8.507059e+37
    %v468 = vand.u32 %v411, 2147483648
    %v469 = vor.u32 1.1754944e-38, %v468
    %v470 = vsel %vm467, %v469, %v465
    %v471 = vmul.f32 %v392, %v470
    %v472 = vrcp.pop %v414
    %v473 = vmul.f32 %v414, %v472
    %v474 = vsub.f32 1.0, %v473
    %v475 = vmul.f32 %v472, %v474
    %v476 = vadd.f32 %v472, %v475
    %vm477 = vweird.f32 %v414
    %vm478 = vweird.f32 %v472
    %vm479 = vmor %vm477, %vm478
    %v480 = vsel %vm479, %v472, %v476
    %v481 = vand.u32 2147483647, %v414
    %vm482 = vcmp.eq.f32.partialorder %v481, 8.507059e+37
    %v483 = vand.u32 %v414, 2147483648
    %v484 = vor.u32 1.1754944e-38, %v483
    %v485 = vsel %vm482, %v484, %v480
    %v486 = vmul.f32 %v394, %v485
    %v487 = vrcp.pop %v417
    %v488 = vmul.f32 %v417, %v487
    %v489 = vsub.f32 1.0, %v488
    %v490 = vmul.f32 %v487, %v489
    %v491 = vadd.f32 %v487, %v490
    %vm492 = vweird.f32 %v417
    %vm493 = vweird.f32 %v487
    %vm494 = vmor %vm492, %vm493
    %v495 = vsel %vm494, %v487, %v491
    %v496 = vand.u32 2147483647, %v417
    %vm497 = vcmp.eq.f32.partialorder %v496, 8.507059e+37
    %v498 = vand.u32 %v417, 2147483648
    %v499 = vor.u32 1.1754944e-38, %v498
    %v500 = vsel %vm497, %v499, %v495
    %v501 = vmul.f32 %v396, %v500
    %v502 = vrcp.pop %v420
    %v503 = vmul.f32 %v420, %v502
    %v504 = vsub.f32 1.0, %v503
    %v505 = vmul.f32 %v502, %v504
    %v506 = vadd.f32 %v502, %v505
    %vm507 = vweird.f32 %v420
    %vm508 = vweird.f32 %v502
    %vm509 = vmor %vm507, %vm508
    %v510 = vsel %vm509, %v502, %v506
    %v511 = vand.u32 2147483647, %v420
    %vm512 = vcmp.eq.f32.partialorder %v511, 8.507059e+37
    %v513 = vand.u32 %v420, 2147483648
    %v514 = vor.u32 1.1754944e-38, %v513
    %v515 = vsel %vm512, %v514, %v510
    %v516 = vmul.f32 %v398, %v515
    %v517 = vrcp.pop %v423
    %v518 = vmul.f32 %v423, %v517
    %v519 = vsub.f32 1.0, %v518
    %v520 = vmul.f32 %v517, %v519
    %v521 = vadd.f32 %v517, %v520
    %vm522 = vweird.f32 %v423
    %vm523 = vweird.f32 %v517
    %vm524 = vmor %vm522, %vm523
    %v525 = vsel %vm524, %v517, %v521
    %v526 = vand.u32 2147483647, %v423
    %vm527 = vcmp.eq.f32.partialorder %v526, 8.507059e+37
    %v528 = vand.u32 %v423, 2147483648
    %v529 = vor.u32 1.1754944e-38, %v528
    %v530 = vsel %vm527, %v529, %v525
    %v531 = vmul.f32 %v400, %v530
    %v532 = vrcp.pop %v426
    %v533 = vmul.f32 %v426, %v532
    %v534 = vsub.f32 1.0, %v533
    %v535 = vmul.f32 %v532, %v534
    %v536 = vadd.f32 %v532, %v535
    %vm537 = vweird.f32 %v426
    %vm538 = vweird.f32 %v532
    %vm539 = vmor %vm537, %vm538
    %v540 = vsel %vm539, %v532, %v536
    %v541 = vand.u32 2147483647, %v426
    %vm542 = vcmp.eq.f32.partialorder %v541, 8.507059e+37
    %v543 = vand.u32 %v426, 2147483648
    %v544 = vor.u32 1.1754944e-38, %v543
    %v545 = vsel %vm542, %v544, %v540
    %v546 = vmul.f32 %v402, %v545
    %547 = vst.msk [vmem:[#allocation9] sm:$0xff] %vm159, %v441
    %548 = vst.msk [vmem:[#allocation9 + $0x8] sm:$0xff] %vm159, %v456
    %549 = vst.msk [vmem:[#allocation9 + $0x10] sm:$0xff] %vm159, %v471
    %550 = vst.msk [vmem:[#allocation9 + $0x18] sm:$0xff] %vm159, %v486
    %551 = vst.msk [vmem:[#allocation9 + $0x20] sm:$0xff] %vm159, %v501
    %552 = vst.msk [vmem:[#allocation9 + $0x28] sm:$0xff] %vm159, %v516
    %553 = vst.msk [vmem:[#allocation9 + $0x30] sm:$0xff] %vm159, %v531
    %554 = vst.msk [vmem:[#allocation9 + $0x38] sm:$0xff] %vm159, %v546
    %v555 = vpack.c.bf16 %v441, %v441
    %v556 = vpack.c.bf16 %v456, %v456
    %v557 = vpack.c.bf16 %v471, %v471
    %v558 = vpack.c.bf16 %v486, %v486
    %v559 = vpack.c.bf16 %v501, %v501
    %v560 = vpack.c.bf16 %v516, %v516
    %v561 = vpack.c.bf16 %v531, %v531
    %v562 = vpack.c.bf16 %v546, %v546
    %563 = vrot.lane.b32.xlu0 %v156, 64
    %v564 = vpop.permute.xlu0 %563
    %v566 = vsel %vm159, %v555, 0
    %vm568 = vcmask 1043456
    %v570 = vsel %vm568, %v564, 0
    %572 = vmatpush.bf16.msra.mxu0 0
    %573 = vmatpush.bf16.msra.mxu0 0
    %574 = vmatpush.bf16.msra.mxu0 0
    %575 = vmatpush.bf16.msra.mxu0 0
    %576 = vmatpush.bf16.msra.mxu0 0
    %577 = vmatpush.bf16.msra.mxu0 0
    %578 = vmatpush.bf16.msra.mxu0 0
    %579 = vmatpush.bf16.msra.mxu0 %v570
    %580 = vmatmul.bf16.gmra.mxu0 %v566
    %v581 = vpop.f32.mrf.mxu0
    %v582 = vadd.f32 0.0, %v581
    %v583 = vpop.f32.mrf.mxu0
    %584 = vdwg.mxu0
    %585 = vrot.lane.b32.xlu0 %v181, 64
    %v586 = vpop.permute.xlu0 %585
    %v588 = vsel %vm159, %v556, 0
    %v591 = vsel %vm568, %v586, 0
    %593 = vmatpush.bf16.msra.mxu0 0
    %594 = vmatpush.bf16.msra.mxu0 0
    %595 = vmatpush.bf16.msra.mxu0 0
    %596 = vmatpush.bf16.msra.mxu0 0
    %597 = vmatpush.bf16.msra.mxu0 0
    %598 = vmatpush.bf16.msra.mxu0 0
    %599 = vmatpush.bf16.msra.mxu0 0
    %600 = vmatpush.bf16.msra.mxu0 %v591
    %601 = vmatmul.bf16.gmra.mxu0 %v588
    %v602 = vpop.f32.mrf.mxu0
    %v603 = vadd.f32 0.0, %v602
    %v604 = vpop.f32.mrf.mxu0
    %605 = vdwg.mxu0
    %606 = vrot.lane.b32.xlu0 %v205, 64
    %v607 = vpop.permute.xlu0 %606
    %v609 = vsel %vm159, %v557, 0
    %v612 = vsel %vm568, %v607, 0
    %614 = vmatpush.bf16.msra.mxu0 0
    %615 = vmatpush.bf16.msra.mxu0 0
    %616 = vmatpush.bf16.msra.mxu0 0
    %617 = vmatpush.bf16.msra.mxu0 0
    %618 = vmatpush.bf16.msra.mxu0 0
    %619 = vmatpush.bf16.msra.mxu0 0
    %620 = vmatpush.bf16.msra.mxu0 0
    %621 = vmatpush.bf16.msra.mxu0 %v612
    %622 = vmatmul.bf16.gmra.mxu0 %v609
    %v623 = vpop.f32.mrf.mxu0
    %v624 = vadd.f32 0.0, %v623
    %v625 = vpop.f32.mrf.mxu0
    %626 = vdwg.mxu0
    %627 = vrot.lane.b32.xlu0 %v229, 64
    %v628 = vpop.permute.xlu0 %627
    %v630 = vsel %vm159, %v558, 0
    %v633 = vsel %vm568, %v628, 0
    %635 = vmatpush.bf16.msra.mxu0 0
    %636 = vmatpush.bf16.msra.mxu0 0
    %637 = vmatpush.bf16.msra.mxu0 0
    %638 = vmatpush.bf16.msra.mxu0 0
    %639 = vmatpush.bf16.msra.mxu0 0
    %640 = vmatpush.bf16.msra.mxu0 0
    %641 = vmatpush.bf16.msra.mxu0 0
    %642 = vmatpush.bf16.msra.mxu0 %v633
    %643 = vmatmul.bf16.gmra.mxu0 %v630
    %v644 = vpop.f32.mrf.mxu0
    %v645 = vadd.f32 0.0, %v644
    %v646 = vpop.f32.mrf.mxu0
    %647 = vdwg.mxu0
    %648 = vrot.lane.b32.xlu0 %v253, 64
    %v649 = vpop.permute.xlu0 %648
    %v651 = vsel %vm159, %v559, 0
    %v654 = vsel %vm568, %v649, 0
    %656 = vmatpush.bf16.msra.mxu0 0
    %657 = vmatpush.bf16.msra.mxu0 0
    %658 = vmatpush.bf16.msra.mxu0 0
    %659 = vmatpush.bf16.msra.mxu0 0
    %660 = vmatpush.bf16.msra.mxu0 0
    %661 = vmatpush.bf16.msra.mxu0 0
    %662 = vmatpush.bf16.msra.mxu0 0
    %663 = vmatpush.bf16.msra.mxu0 %v654
    %664 = vmatmul.bf16.gmra.mxu0 %v651
    %v665 = vpop.f32.mrf.mxu0
    %v666 = vadd.f32 0.0, %v665
    %v667 = vpop.f32.mrf.mxu0
    %668 = vdwg.mxu0
    %669 = vrot.lane.b32.xlu0 %v277, 64
    %v670 = vpop.permute.xlu0 %669
    %v672 = vsel %vm159, %v560, 0
    %v675 = vsel %vm568, %v670, 0
    %677 = vmatpush.bf16.msra.mxu0 0
    %678 = vmatpush.bf16.msra.mxu0 0
    %679 = vmatpush.bf16.msra.mxu0 0
    %680 = vmatpush.bf16.msra.mxu0 0
    %681 = vmatpush.bf16.msra.mxu0 0
    %682 = vmatpush.bf16.msra.mxu0 0
    %683 = vmatpush.bf16.msra.mxu0 0
    %684 = vmatpush.bf16.msra.mxu0 %v675
    %685 = vmatmul.bf16.gmra.mxu0 %v672
    %v686 = vpop.f32.mrf.mxu0
    %v687 = vadd.f32 0.0, %v686
    %v688 = vpop.f32.mrf.mxu0
    %689 = vdwg.mxu0
    %690 = vrot.lane.b32.xlu0 %v301, 64
    %v691 = vpop.permute.xlu0 %690
    %v693 = vsel %vm159, %v561, 0
    %v696 = vsel %vm568, %v691, 0
    %698 = vmatpush.bf16.msra.mxu0 0
    %699 = vmatpush.bf16.msra.mxu0 0
    %700 = vmatpush.bf16.msra.mxu0 0
    %701 = vmatpush.bf16.msra.mxu0 0
    %702 = vmatpush.bf16.msra.mxu0 0
    %703 = vmatpush.bf16.msra.mxu0 0
    %704 = vmatpush.bf16.msra.mxu0 0
    %705 = vmatpush.bf16.msra.mxu0 %v696
    %706 = vmatmul.bf16.gmra.mxu0 %v693
    %v707 = vpop.f32.mrf.mxu0
    %v708 = vadd.f32 0.0, %v707
    %v709 = vpop.f32.mrf.mxu0
    %710 = vdwg.mxu0
    %711 = vrot.lane.b32.xlu0 %v325, 64
    %v712 = vpop.permute.xlu0 %711
    %v714 = vsel %vm159, %v562, 0
    %v717 = vsel %vm568, %v712, 0
    %719 = vmatpush.bf16.msra.mxu0 0
    %720 = vmatpush.bf16.msra.mxu0 0
    %721 = vmatpush.bf16.msra.mxu0 0
    %722 = vmatpush.bf16.msra.mxu0 0
    %723 = vmatpush.bf16.msra.mxu0 0
    %724 = vmatpush.bf16.msra.mxu0 0
    %725 = vmatpush.bf16.msra.mxu0 0
    %726 = vmatpush.bf16.msra.mxu0 %v717
    %727 = vmatmul.bf16.gmra.mxu0 %v714
    %v728 = vpop.f32.mrf.mxu0
    %v729 = vadd.f32 0.0, %v728
    %v730 = vpop.f32.mrf.mxu0
    %731 = vdwg.mxu0
    %v732 = vld [vmem:[%s3] sm:$0xf]
    %v733 = vld [vmem:[%s3 + $0x4] sm:$0xf]
    %v734 = vld [vmem:[%s3 + $0x8] sm:$0xf]
    %v735 = vld [vmem:[%s3 + $0xc] sm:$0xf]
    %v736 = vpack.c.bf16 %v603, %v582
    %v737 = vpack.c.bf16 %v645, %v624
    %v739 = vsel %vm159, %v737, 0
    %v742 = vsel %vm568, %v733, 0
    %744 = vmatpush.bf16.msra.mxu0 0
    %745 = vmatpush.bf16.msra.mxu0 0
    %746 = vmatpush.bf16.msra.mxu0 0
    %747 = vmatpush.bf16.msra.mxu0 0
    %748 = vmatpush.bf16.msra.mxu0 0
    %749 = vmatpush.bf16.msra.mxu0 0
    %750 = vmatpush.bf16.msra.mxu0 0
    %751 = vmatpush.bf16.msra.mxu0 %v742
    %752 = vmatmul.bf16.gmra.mxu0 %v739
    %v753 = vpop.f32.mrf.mxu0
    %v754 = vadd.f32 0.0, %v753
    %v755 = vpop.f32.mrf.mxu0
    %v756 = vadd.f32 0.0, %v755
    %757 = vdwg.mxu0
    %v759 = vsel %vm159, %v736, 0
    %v762 = vsel %vm568, %v732, 0
    %764 = vmatpush.bf16.msra.mxu0 0
    %765 = vmatpush.bf16.msra.mxu0 0
    %766 = vmatpush.bf16.msra.mxu0 0
    %767 = vmatpush.bf16.msra.mxu0 0
    %768 = vmatpush.bf16.msra.mxu0 0
    %769 = vmatpush.bf16.msra.mxu0 0
    %770 = vmatpush.bf16.msra.mxu0 0
    %771 = vmatpush.bf16.msra.mxu0 %v762
    %772 = vmatmul.bf16.gmra.mxu0 %v759
    %v773 = vpop.f32.mrf.mxu0
    %v774 = vadd.f32 %v754, %v773
    %v775 = vpop.f32.mrf.mxu0
    %v776 = vadd.f32 %v756, %v775
    %777 = vdwg.mxu0
    %v778 = vpack.c.bf16 %v687, %v666
    %v780 = vsel %vm159, %v778, 0
    %v783 = vsel %vm568, %v734, 0
    %785 = vmatpush.bf16.msra.mxu0 0
    %786 = vmatpush.bf16.msra.mxu0 0
    %787 = vmatpush.bf16.msra.mxu0 0
    %788 = vmatpush.bf16.msra.mxu0 0
    %789 = vmatpush.bf16.msra.mxu0 0
    %790 = vmatpush.bf16.msra.mxu0 0
    %791 = vmatpush.bf16.msra.mxu0 0
    %792 = vmatpush.bf16.msra.mxu0 %v783
    %793 = vmatmul.bf16.gmra.mxu0 %v780
    %v794 = vpop.f32.mrf.mxu0
    %v795 = vadd.f32 0.0, %v794
    %v796 = vpop.f32.mrf.mxu0
    %v797 = vadd.f32 0.0, %v796
    %798 = vdwg.mxu0
    %v799 = vadd.f32 %v774, %v795
    %v800 = vadd.f32 %v776, %v797
    %v801 = vpack.c.bf16 %v729, %v708
    %v803 = vsel %vm159, %v801, 0
    %v806 = vsel %vm568, %v735, 0
    %808 = vmatpush.bf16.msra.mxu0 0
    %809 = vmatpush.bf16.msra.mxu0 0
    %810 = vmatpush.bf16.msra.mxu0 0
    %811 = vmatpush.bf16.msra.mxu0 0
    %812 = vmatpush.bf16.msra.mxu0 0
    %813 = vmatpush.bf16.msra.mxu0 0
    %814 = vmatpush.bf16.msra.mxu0 0
    %815 = vmatpush.bf16.msra.mxu0 %v806
    %816 = vmatmul.bf16.gmra.mxu0 %v803
    %v817 = vpop.f32.mrf.mxu0
    %v818 = vadd.f32 0.0, %v817
    %v819 = vpop.f32.mrf.mxu0
    %v820 = vadd.f32 0.0, %v819
    %821 = vdwg.mxu0
    %v822 = vadd.f32 %v799, %v818
    %v823 = vadd.f32 %v800, %v820
    %v824 = vadd.f32 %v84, %v822
    %v825 = vadd.f32 %v85, %v823
    %v826 = vperm.slane %v86, 0
    %v827 = vadd.f32 %v824, %v826
    %v828 = vadd.f32 %v825, %v826
    %v829 = vsel %vm108, %v827, 0.0
    %830 = vadd.xlane.f32.xlu0 %v829
    %v831 = vpop.xlane.xlu0 %830
    %v832 = vsel %vm108, %v828, 0.0
    %833 = vadd.xlane.f32.xlu0 %v832
    %v834 = vpop.xlane.xlu0 %833
    %v835 = vrcp.pop 32.0
    %v836 = vmul.f32 32.0, %v835
    %v837 = vsub.f32 1.0, %v836
    %v838 = vmul.f32 %v835, %v837
    %v839 = vadd.f32 %v835, %v838
    %vm840 = vweird.f32 %v835
    %v841 = vsel %vm840, %v835, %v839
    %v842 = vmul.f32 %v831, %v841
    %v843 = vmul.f32 %v834, %v841
    %v844 = vsub.f32 %v827, %v842
    %v845 = vsub.f32 %v828, %v843
    %v846 = vmul.f32 %v844, %v844
    %v847 = vmul.f32 %v845, %v845
    %v848 = vsel %vm108, %v846, 0.0
    %849 = vadd.xlane.f32.xlu0 %v848
    %v850 = vpop.xlane.xlu0 %849
    %v851 = vsel %vm108, %v847, 0.0
    %852 = vadd.xlane.f32.xlu0 %v851
    %v853 = vpop.xlane.xlu0 %852
    %v854 = vmul.f32 %v850, %v841
    %v855 = vmul.f32 %v853, %v841
    %v856 = vadd.f32 %v854, 1e-05
    %v857 = vadd.f32 %v855, 1e-05
    %v858 = vrsqrt.pop %v856
    %v859 = vmul.f32 %v858, %v856
    %v860 = vmul.f32 %v859, %v858
    %v861 = vmul.f32 0.5, %v860
    %v862 = vsub.f32 1.5, %v861
    %v863 = vmul.f32 %v858, %v862
    %vm864 = vweird.f32 %v856
    %vm865 = vweird.f32 %v858
    %vm866 = vmor %vm864, %vm865
    %v867 = vsel %vm866, %v858, %v863
    %v868 = vrsqrt.pop %v857
    %v869 = vmul.f32 %v868, %v857
    %v870 = vmul.f32 %v869, %v868
    %v871 = vmul.f32 0.5, %v870
    %v872 = vsub.f32 1.5, %v871
    %v873 = vmul.f32 %v868, %v872
    %vm874 = vweird.f32 %v857
    %vm875 = vweird.f32 %v868
    %vm876 = vmor %vm874, %vm875
    %v877 = vsel %vm876, %v868, %v873
    %v878 = vmul.f32 %v844, %v867
    %v879 = vmul.f32 %v845, %v877
    %v880 = vperm.slane %v86, 2
    %v881 = vmul.f32 %v878, %v880
    %v882 = vmul.f32 %v879, %v880
    %v883 = vperm.slane %v86, 3
    %v884 = vadd.f32 %v881, %v883
    %v885 = vadd.f32 %v882, %v883
    %v886 = vpack.c.bf16 %v885, %v884
    %v887 = vld [vmem:[%s4] sm:$0xf]
    %v888 = vld [vmem:[%s4 + $0x4] sm:$0xf]
    %v889 = vld [vmem:[%s4 + $0x8] sm:$0xf]
    %v890 = vld [vmem:[%s4 + $0xc] sm:$0xf]
    %v891 = vld [vmem:[#allocation7] sm:$0x1]
    %v893 = vperm.slane %v891, 0
    %v899 = vunpack.c.l.b16 %v887
    %v900 = vunpack.c.l.b16 %v888
    %v901 = vunpack.c.l.b16 %v889
    %v902 = vunpack.c.l.b16 %v890
    %v903 = vpack.c.b16 %v900, %v899
    %v904 = vpack.c.b16 %v902, %v901
    %v908 = vsel %vm108, %v886, 0
    %910 = vmatpush.bf16.msra.mxu0 0
    %911 = vmatpush.bf16.msra.mxu0 0
    %912 = vmatpush.bf16.msra.mxu0 0
    %913 = vmatpush.bf16.msra.mxu0 0
    %914 = vmatpush.bf16.msra.mxu0 0
    %915 = vmatpush.bf16.msra.mxu0 0
    %916 = vmatpush.bf16.msra.mxu0 %v904
    %917 = vmatpush.bf16.msra.mxu0 %v903
    %918 = vmatmul.bf16.gmra.mxu0 %v908
    %v919 = vpop.f32.mrf.mxu0
    %v920 = vadd.f32 %v893, %v919
    %v921 = vpop.f32.mrf.mxu0
    %v922 = vadd.f32 %v893, %v921
    %923 = vdwg.mxu0
    %v924 = vmax.f32 %v920, 0.0
    %v925 = vmax.f32 %v922, 0.0
    %v926 = vpack.c.bf16 %v925, %v924
    %v927 = vld [vmem:[%s6] sm:$0xf]
    %v928 = vld [vmem:[%s6 + $0x4] sm:$0xf]
    %v929 = vld [vmem:[%s6 + $0x8] sm:$0xf]
    %v930 = vld [vmem:[%s6 + $0xc] sm:$0xf]
    %v931 = vld [vmem:[%s6 + $0x10] sm:$0xf]
    %v932 = vld [vmem:[%s6 + $0x14] sm:$0xf]
    %v933 = vld [vmem:[%s6 + $0x18] sm:$0xf]
    %v934 = vld [vmem:[%s6 + $0x1c] sm:$0xf]
    %v935 = vperm.slane %v86, 1
    %v944 = vunpack.c.l.b16 %v927
    %v945 = vunpack.c.l.b16 %v928
    %v946 = vunpack.c.l.b16 %v929
    %v947 = vunpack.c.l.b16 %v930
    %v948 = vunpack.c.l.b16 %v931
    %v949 = vunpack.c.l.b16 %v932
    %v950 = vunpack.c.l.b16 %v933
    %v951 = vunpack.c.l.b16 %v934
    %v952 = vpack.c.b16 %v945, %v944
    %v953 = vpack.c.b16 %v947, %v946
    %v954 = vpack.c.b16 %v949, %v948
    %v955 = vpack.c.b16 %v951, %v950
    %vm960 = vcmask 523264
    %v962 = vsel %vm960, %v926, 0
    %964 = vmatpush.bf16.msra.mxu0 0
    %965 = vmatpush.bf16.msra.mxu0 0
    %966 = vmatpush.bf16.msra.mxu0 0
    %967 = vmatpush.bf16.msra.mxu0 0
    %968 = vmatpush.bf16.msra.mxu0 %v955
    %969 = vmatpush.bf16.msra.mxu0 %v954
    %970 = vmatpush.bf16.msra.mxu0 %v953
    %971 = vmatpush.bf16.msra.mxu0 %v952
    %972 = vmatmul.bf16.gmra.mxu0 %v962
    %v973 = vpop.f32.mrf.mxu0
    %v974 = vadd.f32 %v935, %v973
    %v975 = vpop.f32.mrf.mxu0
    %v976 = vadd.f32 %v935, %v975
    %977 = vdwg.mxu0
    %v978 = vadd.f32 %v884, %v974
    %v979 = vadd.f32 %v885, %v976
    %v980 = vsel %vm108, %v978, 0.0
    %981 = vadd.xlane.f32.xlu0 %v980
    %v982 = vpop.xlane.xlu0 %981
    %v983 = vsel %vm108, %v979, 0.0
    %984 = vadd.xlane.f32.xlu0 %v983
    %v985 = vpop.xlane.xlu0 %984
    %v986 = vmul.f32 %v982, %v841
    %v987 = vmul.f32 %v985, %v841
    %v988 = vsub.f32 %v978, %v986
    %v989 = vsub.f32 %v979, %v987
    %v990 = vmul.f32 %v988, %v988
    %v991 = vmul.f32 %v989, %v989
    %v992 = vsel %vm108, %v990, 0.0
    %993 = vadd.xlane.f32.xlu0 %v992
    %v994 = vpop.xlane.xlu0 %993
    %v995 = vsel %vm108, %v991, 0.0
    %996 = vadd.xlane.f32.xlu0 %v995
    %v997 = vpop.xlane.xlu0 %996
    %v998 = vmul.f32 %v994, %v841
    %v999 = vmul.f32 %v997, %v841
    %v1000 = vadd.f32 %v998, 1e-05
    %v1001 = vadd.f32 %v999, 1e-05
    %v1002 = vrsqrt.pop %v1000
    %v1003 = vmul.f32 %v1002, %v1000
    %v1004 = vmul.f32 %v1003, %v1002
    %v1005 = vmul.f32 0.5, %v1004
    %v1006 = vsub.f32 1.5, %v1005
    %v1007 = vmul.f32 %v1002, %v1006
    %vm1008 = vweird.f32 %v1000
    %vm1009 = vweird.f32 %v1002
    %vm1010 = vmor %vm1008, %vm1009
    %v1011 = vsel %vm1010, %v1002, %v1007
    %v1012 = vrsqrt.pop %v1001
    %v1013 = vmul.f32 %v1012, %v1001
    %v1014 = vmul.f32 %v1013, %v1012
    %v1015 = vmul.f32 0.5, %v1014
    %v1016 = vsub.f32 1.5, %v1015
    %v1017 = vmul.f32 %v1012, %v1016
    %vm1018 = vweird.f32 %v1001
    %vm1019 = vweird.f32 %v1012
    %vm1020 = vmor %vm1018, %vm1019
    %v1021 = vsel %vm1020, %v1012, %v1017
    %v1022 = vmul.f32 %v988, %v1011
    %v1023 = vmul.f32 %v989, %v1021
    %v1024 = vperm.slane %v86, 4
    %v1025 = vmul.f32 %v1022, %v1024
    %v1026 = vmul.f32 %v1023, %v1024
    %v1027 = vperm.slane %v86, 5
    %v1028 = vadd.f32 %v1025, %v1027
    %v1029 = vadd.f32 %v1026, %v1027
    %s1030 = scalar_lea.vmem %s7, 8
    %v1031 = vld [vmem:[%s1030] sm:$0x3f]
    %v1032 = vpack.c.bf16 %v1029, %v1028
    %s1033 = scalar_lea.vmem %s1, 16
    %v1034 = vld [vmem:[%s1033] sm:$0xf]
    %v1035 = vld [vmem:[%s1033 + $0x4] sm:$0xf]
    %v1036 = vld [vmem:[%s1033 + $0x8] sm:$0xf]
    %v1037 = vld [vmem:[%s1033 + $0xc] sm:$0xf]
    %s1038 = scalar_lea.vmem [#allocation5], 1
    %v1039 = vld [vmem:[%s1038] sm:$0x1]
    %v1041 = vperm.slane %v1039, 0
    %v1047 = vunpack.c.l.b16 %v1034
    %v1048 = vunpack.c.l.b16 %v1035
    %v1049 = vunpack.c.l.b16 %v1036
    %v1050 = vunpack.c.l.b16 %v1037
    %v1051 = vpack.c.b16 %v1048, %v1047
    %v1052 = vpack.c.b16 %v1050, %v1049
    %v1056 = vsel %vm108, %v1032, 0
    %1058 = vmatpush.bf16.msra.mxu0 0
    %1059 = vmatpush.bf16.msra.mxu0 0
    %1060 = vmatpush.bf16.msra.mxu0 0
    %1061 = vmatpush.bf16.msra.mxu0 0
    %1062 = vmatpush.bf16.msra.mxu0 0
    %1063 = vmatpush.bf16.msra.mxu0 0
    %1064 = vmatpush.bf16.msra.mxu0 %v1052
    %1065 = vmatpush.bf16.msra.mxu0 %v1051
    %1066 = vmatmul.bf16.gmra.mxu0 %v1056
    %v1067 = vpop.f32.mrf.mxu0
    %v1068 = vadd.f32 %v1041, %v1067
    %v1069 = vpop.f32.mrf.mxu0
    %v1070 = vadd.f32 %v1041, %v1069
    %1071 = vdwg.mxu0
    %1074 = vrot.lane.b32.xlu0 %v1068, 120
    %v1075 = vpop.permute.xlu0 %1074
    %1076 = vrot.lane.b32.xlu0 %v1070, 120
    %v1077 = vpop.permute.xlu0 %1076
    %1080 = vrot.lane.b32.xlu0 %v1068, 112
    %v1081 = vpop.permute.xlu0 %1080
    %1082 = vrot.lane.b32.xlu0 %v1070, 112
    %v1083 = vpop.permute.xlu0 %1082
    %1086 = vrot.lane.b32.xlu0 %v1068, 104
    %v1087 = vpop.permute.xlu0 %1086
    %1088 = vrot.lane.b32.xlu0 %v1070, 104
    %v1089 = vpop.permute.xlu0 %1088
    %v1092 = vpack.c.bf16 %v1068, %v1068
    %v1093 = vpack.c.bf16 %v1070, %v1070
    %v1094 = vpack.c.bf16 %v1075, %v1075
    %v1095 = vpack.c.bf16 %v1077, %v1077
    %v1096 = vpack.c.bf16 %v1081, %v1081
    %v1097 = vpack.c.bf16 %v1083, %v1083
    %v1098 = vpack.c.bf16 %v1087, %v1087
    %v1099 = vpack.c.bf16 %v1089, %v1089
    %v1101 = vunpack.c.l.b16 %v1092
    %v1102 = vpack.c.b16 %v1101, %v1101
    %1103 = vrot.lane.b32.xlu0 %v1102, 96
    %v1104 = vpop.permute.xlu0 %1103
    %v1106 = vsel %vm159, %v1092, 0
    %v1109 = vsel %vm159, %v1104, 0
    %1111 = vmatpush.bf16.xpose.msra.mxu0 0
    %1112 = vmatpush.bf16.xpose.msra.mxu0 0
    %1113 = vmatpush.bf16.xpose.msra.mxu0 0
    %1114 = vmatpush.bf16.xpose.msra.mxu0 0
    %1115 = vmatpush.bf16.xpose.msra.mxu0 0
    %1116 = vmatpush.bf16.xpose.msra.mxu0 0
    %1117 = vmatpush.bf16.xpose.msra.mxu0 0
    %1118 = vmatpush.bf16.xpose.msra.mxu0 %v1109
    %1119 = vmatmul.bf16.gmra.mxu0 %v1106
    %v1120 = vpop.f32.mrf.mxu0
    %v1121 = vadd.f32 0.0, %v1120
    %v1122 = vpop.f32.mrf.mxu0
    %1123 = vdwg.mxu0
    %v1125 = vunpack.c.l.b16 %v1093
    %v1126 = vpack.c.b16 %v1125, %v1125
    %1127 = vrot.lane.b32.xlu0 %v1126, 96
    %v1128 = vpop.permute.xlu0 %1127
    %v1130 = vsel %vm159, %v1093, 0
    %v1133 = vsel %vm159, %v1128, 0
    %1135 = vmatpush.bf16.xpose.msra.mxu0 0
    %1136 = vmatpush.bf16.xpose.msra.mxu0 0
    %1137 = vmatpush.bf16.xpose.msra.mxu0 0
    %1138 = vmatpush.bf16.xpose.msra.mxu0 0
    %1139 = vmatpush.bf16.xpose.msra.mxu0 0
    %1140 = vmatpush.bf16.xpose.msra.mxu0 0
    %1141 = vmatpush.bf16.xpose.msra.mxu0 0
    %1142 = vmatpush.bf16.xpose.msra.mxu0 %v1133
    %1143 = vmatmul.bf16.gmra.mxu0 %v1130
    %v1144 = vpop.f32.mrf.mxu0
    %v1145 = vadd.f32 0.0, %v1144
    %v1146 = vpop.f32.mrf.mxu0
    %1147 = vdwg.mxu0
    %v1149 = vunpack.c.l.b16 %v1094
    %v1150 = vpack.c.b16 %v1149, %v1149
    %1151 = vrot.lane.b32.xlu0 %v1150, 96
    %v1152 = vpop.permute.xlu0 %1151
    %v1154 = vsel %vm159, %v1094, 0
    %v1157 = vsel %vm159, %v1152, 0
    %1159 = vmatpush.bf16.xpose.msra.mxu0 0
    %1160 = vmatpush.bf16.xpose.msra.mxu0 0
    %1161 = vmatpush.bf16.xpose.msra.mxu0 0
    %1162 = vmatpush.bf16.xpose.msra.mxu0 0
    %1163 = vmatpush.bf16.xpose.msra.mxu0 0
    %1164 = vmatpush.bf16.xpose.msra.mxu0 0
    %1165 = vmatpush.bf16.xpose.msra.mxu0 0
    %1166 = vmatpush.bf16.xpose.msra.mxu0 %v1157
    %1167 = vmatmul.bf16.gmra.mxu0 %v1154
    %v1168 = vpop.f32.mrf.mxu0
    %v1169 = vadd.f32 0.0, %v1168
    %v1170 = vpop.f32.mrf.mxu0
    %1171 = vdwg.mxu0
    %v1173 = vunpack.c.l.b16 %v1095
    %v1174 = vpack.c.b16 %v1173, %v1173
    %1175 = vrot.lane.b32.xlu0 %v1174, 96
    %v1176 = vpop.permute.xlu0 %1175
    %v1178 = vsel %vm159, %v1095, 0
    %v1181 = vsel %vm159, %v1176, 0
    %1183 = vmatpush.bf16.xpose.msra.mxu0 0
    %1184 = vmatpush.bf16.xpose.msra.mxu0 0
    %1185 = vmatpush.bf16.xpose.msra.mxu0 0
    %1186 = vmatpush.bf16.xpose.msra.mxu0 0
    %1187 = vmatpush.bf16.xpose.msra.mxu0 0
    %1188 = vmatpush.bf16.xpose.msra.mxu0 0
    %1189 = vmatpush.bf16.xpose.msra.mxu0 0
    %1190 = vmatpush.bf16.xpose.msra.mxu0 %v1181
    %1191 = vmatmul.bf16.gmra.mxu0 %v1178
    %v1192 = vpop.f32.mrf.mxu0
    %v1193 = vadd.f32 0.0, %v1192
    %v1194 = vpop.f32.mrf.mxu0
    %1195 = vdwg.mxu0
    %v1197 = vunpack.c.l.b16 %v1096
    %v1198 = vpack.c.b16 %v1197, %v1197
    %1199 = vrot.lane.b32.xlu0 %v1198, 96
    %v1200 = vpop.permute.xlu0 %1199
    %v1202 = vsel %vm159, %v1096, 0
    %v1205 = vsel %vm159, %v1200, 0
    %1207 = vmatpush.bf16.xpose.msra.mxu0 0
    %1208 = vmatpush.bf16.xpose.msra.mxu0 0
    %1209 = vmatpush.bf16.xpose.msra.mxu0 0
    %1210 = vmatpush.bf16.xpose.msra.mxu0 0
    %1211 = vmatpush.bf16.xpose.msra.mxu0 0
    %1212 = vmatpush.bf16.xpose.msra.mxu0 0
    %1213 = vmatpush.bf16.xpose.msra.mxu0 0
    %1214 = vmatpush.bf16.xpose.msra.mxu0 %v1205
    %1215 = vmatmul.bf16.gmra.mxu0 %v1202
    %v1216 = vpop.f32.mrf.mxu0
    %v1217 = vadd.f32 0.0, %v1216
    %v1218 = vpop.f32.mrf.mxu0
    %1219 = vdwg.mxu0
    %v1221 = vunpack.c.l.b16 %v1097
    %v1222 = vpack.c.b16 %v1221, %v1221
    %1223 = vrot.lane.b32.xlu0 %v1222, 96
    %v1224 = vpop.permute.xlu0 %1223
    %v1226 = vsel %vm159, %v1097, 0
    %v1229 = vsel %vm159, %v1224, 0
    %1231 = vmatpush.bf16.xpose.msra.mxu0 0
    %1232 = vmatpush.bf16.xpose.msra.mxu0 0
    %1233 = vmatpush.bf16.xpose.msra.mxu0 0
    %1234 = vmatpush.bf16.xpose.msra.mxu0 0
    %1235 = vmatpush.bf16.xpose.msra.mxu0 0
    %1236 = vmatpush.bf16.xpose.msra.mxu0 0
    %1237 = vmatpush.bf16.xpose.msra.mxu0 0
    %1238 = vmatpush.bf16.xpose.msra.mxu0 %v1229
    %1239 = vmatmul.bf16.gmra.mxu0 %v1226
    %v1240 = vpop.f32.mrf.mxu0
    %v1241 = vadd.f32 0.0, %v1240
    %v1242 = vpop.f32.mrf.mxu0
    %1243 = vdwg.mxu0
    %v1245 = vunpack.c.l.b16 %v1098
    %v1246 = vpack.c.b16 %v1245, %v1245
    %1247 = vrot.lane.b32.xlu0 %v1246, 96
    %v1248 = vpop.permute.xlu0 %1247
    %v1250 = vsel %vm159, %v1098, 0
    %v1253 = vsel %vm159, %v1248, 0
    %1255 = vmatpush.bf16.xpose.msra.mxu0 0
    %1256 = vmatpush.bf16.xpose.msra.mxu0 0
    %1257 = vmatpush.bf16.xpose.msra.mxu0 0
    %1258 = vmatpush.bf16.xpose.msra.mxu0 0
    %1259 = vmatpush.bf16.xpose.msra.mxu0 0
    %1260 = vmatpush.bf16.xpose.msra.mxu0 0
    %1261 = vmatpush.bf16.xpose.msra.mxu0 0
    %1262 = vmatpush.bf16.xpose.msra.mxu0 %v1253
    %1263 = vmatmul.bf16.gmra.mxu0 %v1250
    %v1264 = vpop.f32.mrf.mxu0
    %v1265 = vadd.f32 0.0, %v1264
    %v1266 = vpop.f32.mrf.mxu0
    %1267 = vdwg.mxu0
    %v1269 = vunpack.c.l.b16 %v1099
    %v1270 = vpack.c.b16 %v1269, %v1269
    %1271 = vrot.lane.b32.xlu0 %v1270, 96
    %v1272 = vpop.permute.xlu0 %1271
    %v1274 = vsel %vm159, %v1099, 0
    %v1277 = vsel %vm159, %v1272, 0
    %1279 = vmatpush.bf16.xpose.msra.mxu0 0
    %1280 = vmatpush.bf16.xpose.msra.mxu0 0
    %1281 = vmatpush.bf16.xpose.msra.mxu0 0
    %1282 = vmatpush.bf16.xpose.msra.mxu0 0
    %1283 = vmatpush.bf16.xpose.msra.mxu0 0
    %1284 = vmatpush.bf16.xpose.msra.mxu0 0
    %1285 = vmatpush.bf16.xpose.msra.mxu0 0
    %1286 = vmatpush.bf16.xpose.msra.mxu0 %v1277
    %1287 = vmatmul.bf16.gmra.mxu0 %v1274
    %v1288 = vpop.f32.mrf.mxu0
    %v1289 = vadd.f32 0.0, %v1288
    %v1290 = vpop.f32.mrf.mxu0
    %1291 = vdwg.mxu0
    %v1292 = vmul.f32 %v1121, 0.35355338
    %v1293 = vmul.f32 %v1145, 0.35355338
    %v1294 = vmul.f32 %v1169, 0.35355338
    %v1295 = vmul.f32 %v1193, 0.35355338
    %v1296 = vmul.f32 %v1217, 0.35355338
    %v1297 = vmul.f32 %v1241, 0.35355338
    %v1298 = vmul.f32 %v1265, 0.35355338
    %v1299 = vmul.f32 %v1289, 0.35355338
    %v1300 = vsel %vm159, %v1292, -inf
    %1301 = vmax.xlane.f32.xlu0 %v1300
    %v1302 = vpop.xlane.xlu0 %1301
    %v1303 = vsel %vm159, %v1293, -inf
    %1304 = vmax.xlane.f32.xlu0 %v1303
    %v1305 = vpop.xlane.xlu0 %1304
    %v1306 = vsel %vm159, %v1294, -inf
    %1307 = vmax.xlane.f32.xlu0 %v1306
    %v1308 = vpop.xlane.xlu0 %1307
    %v1309 = vsel %vm159, %v1295, -inf
    %1310 = vmax.xlane.f32.xlu0 %v1309
    %v1311 = vpop.xlane.xlu0 %1310
    %v1312 = vsel %vm159, %v1296, -inf
    %1313 = vmax.xlane.f32.xlu0 %v1312
    %v1314 = vpop.xlane.xlu0 %1313
    %v1315 = vsel %vm159, %v1297, -inf
    %1316 = vmax.xlane.f32.xlu0 %v1315
    %v1317 = vpop.xlane.xlu0 %1316
    %v1318 = vsel %vm159, %v1298, -inf
    %1319 = vmax.xlane.f32.xlu0 %v1318
    %v1320 = vpop.xlane.xlu0 %1319
    %v1321 = vsel %vm159, %v1299, -inf
    %1322 = vmax.xlane.f32.xlu0 %v1321
    %v1323 = vpop.xlane.xlu0 %1322
    %v1324 = vsub.f32 %v1292, %v1302
    %v1325 = vsub.f32 %v1293, %v1305
    %v1326 = vsub.f32 %v1294, %v1308
    %v1327 = vsub.f32 %v1295, %v1311
    %v1328 = vsub.f32 %v1296, %v1314
    %v1329 = vsub.f32 %v1297, %v1317
    %v1330 = vsub.f32 %v1298, %v1320
    %v1331 = vsub.f32 %v1299, %v1323
    %v1332 = vmul.f32 %v1324, 1.442695
    %v1333 = vpow.pop %v1332
    %v1334 = vmul.f32 %v1325, 1.442695
    %v1335 = vpow.pop %v1334
    %v1336 = vmul.f32 %v1326, 1.442695
    %v1337 = vpow.pop %v1336
    %v1338 = vmul.f32 %v1327, 1.442695
    %v1339 = vpow.pop %v1338
    %v1340 = vmul.f32 %v1328, 1.442695
    %v1341 = vpow.pop %v1340
    %v1342 = vmul.f32 %v1329, 1.442695
    %v1343 = vpow.pop %v1342
    %v1344 = vmul.f32 %v1330, 1.442695
    %v1345 = vpow.pop %v1344
    %v1346 = vmul.f32 %v1331, 1.442695
    %v1347 = vpow.pop %v1346
    %v1348 = vsel %vm159, %v1333, 0.0
    %1349 = vadd.xlane.f32.xlu0 %v1348
    %v1350 = vpop.xlane.xlu0 %1349
    %v1351 = vsel %vm159, %v1335, 0.0
    %1352 = vadd.xlane.f32.xlu0 %v1351
    %v1353 = vpop.xlane.xlu0 %1352
    %v1354 = vsel %vm159, %v1337, 0.0
    %1355 = vadd.xlane.f32.xlu0 %v1354
    %v1356 = vpop.xlane.xlu0 %1355
    %v1357 = vsel %vm159, %v1339, 0.0
    %1358 = vadd.xlane.f32.xlu0 %v1357
    %v1359 = vpop.xlane.xlu0 %1358
    %v1360 = vsel %vm159, %v1341, 0.0
    %1361 = vadd.xlane.f32.xlu0 %v1360
    %v1362 = vpop.xlane.xlu0 %1361
    %v1363 = vsel %vm159, %v1343, 0.0
    %1364 = vadd.xlane.f32.xlu0 %v1363
    %v1365 = vpop.xlane.xlu0 %1364
    %v1366 = vsel %vm159, %v1345, 0.0
    %1367 = vadd.xlane.f32.xlu0 %v1366
    %v1368 = vpop.xlane.xlu0 %1367
    %v1369 = vsel %vm159, %v1347, 0.0
    %1370 = vadd.xlane.f32.xlu0 %v1369
    %v1371 = vpop.xlane.xlu0 %1370
    %v1372 = vrcp.pop %v1350
    %v1373 = vmul.f32 %v1350, %v1372
    %v1374 = vsub.f32 1.0, %v1373
    %v1375 = vmul.f32 %v1372, %v1374
    %v1376 = vadd.f32 %v1372, %v1375
    %vm1377 = vweird.f32 %v1350
    %vm1378 = vweird.f32 %v1372
    %vm1379 = vmor %vm1377, %vm1378
    %v1380 = vsel %vm1379, %v1372, %v1376
    %v1381 = vand.u32 2147483647, %v1350
    %vm1382 = vcmp.eq.f32.partialorder %v1381, 8.507059e+37
    %v1383 = vand.u32 %v1350, 2147483648
    %v1384 = vor.u32 1.1754944e-38, %v1383
    %v1385 = vsel %vm1382, %v1384, %v1380
    %v1386 = vmul.f32 %v1333, %v1385
    %v1387 = vrcp.pop %v1353
    %v1388 = vmul.f32 %v1353, %v1387
    %v1389 = vsub.f32 1.0, %v1388
    %v1390 = vmul.f32 %v1387, %v1389
    %v1391 = vadd.f32 %v1387, %v1390
    %vm1392 = vweird.f32 %v1353
    %vm1393 = vweird.f32 %v1387
    %vm1394 = vmor %vm1392, %vm1393
    %v1395 = vsel %vm1394, %v1387, %v1391
    %v1396 = vand.u32 2147483647, %v1353
    %vm1397 = vcmp.eq.f32.partialorder %v1396, 8.507059e+37
    %v1398 = vand.u32 %v1353, 2147483648
    %v1399 = vor.u32 1.1754944e-38, %v1398
    %v1400 = vsel %vm1397, %v1399, %v1395
    %v1401 = vmul.f32 %v1335, %v1400
    %v1402 = vrcp.pop %v1356
    %v1403 = vmul.f32 %v1356, %v1402
    %v1404 = vsub.f32 1.0, %v1403
    %v1405 = vmul.f32 %v1402, %v1404
    %v1406 = vadd.f32 %v1402, %v1405
    %vm1407 = vweird.f32 %v1356
    %vm1408 = vweird.f32 %v1402
    %vm1409 = vmor %vm1407, %vm1408
    %v1410 = vsel %vm1409, %v1402, %v1406
    %v1411 = vand.u32 2147483647, %v1356
    %vm1412 = vcmp.eq.f32.partialorder %v1411, 8.507059e+37
    %v1413 = vand.u32 %v1356, 2147483648
    %v1414 = vor.u32 1.1754944e-38, %v1413
    %v1415 = vsel %vm1412, %v1414, %v1410
    %v1416 = vmul.f32 %v1337, %v1415
    %v1417 = vrcp.pop %v1359
    %v1418 = vmul.f32 %v1359, %v1417
    %v1419 = vsub.f32 1.0, %v1418
    %v1420 = vmul.f32 %v1417, %v1419
    %v1421 = vadd.f32 %v1417, %v1420
    %vm1422 = vweird.f32 %v1359
    %vm1423 = vweird.f32 %v1417
    %vm1424 = vmor %vm1422, %vm1423
    %v1425 = vsel %vm1424, %v1417, %v1421
    %v1426 = vand.u32 2147483647, %v1359
    %vm1427 = vcmp.eq.f32.partialorder %v1426, 8.507059e+37
    %v1428 = vand.u32 %v1359, 2147483648
    %v1429 = vor.u32 1.1754944e-38, %v1428
    %v1430 = vsel %vm1427, %v1429, %v1425
    %v1431 = vmul.f32 %v1339, %v1430
    %v1432 = vrcp.pop %v1362
    %v1433 = vmul.f32 %v1362, %v1432
    %v1434 = vsub.f32 1.0, %v1433
    %v1435 = vmul.f32 %v1432, %v1434
    %v1436 = vadd.f32 %v1432, %v1435
    %vm1437 = vweird.f32 %v1362
    %vm1438 = vweird.f32 %v1432
    %vm1439 = vmor %vm1437, %vm1438
    %v1440 = vsel %vm1439, %v1432, %v1436
    %v1441 = vand.u32 2147483647, %v1362
    %vm1442 = vcmp.eq.f32.partialorder %v1441, 8.507059e+37
    %v1443 = vand.u32 %v1362, 2147483648
    %v1444 = vor.u32 1.1754944e-38, %v1443
    %v1445 = vsel %vm1442, %v1444, %v1440
    %v1446 = vmul.f32 %v1341, %v1445
    %v1447 = vrcp.pop %v1365
    %v1448 = vmul.f32 %v1365, %v1447
    %v1449 = vsub.f32 1.0, %v1448
    %v1450 = vmul.f32 %v1447, %v1449
    %v1451 = vadd.f32 %v1447, %v1450
    %vm1452 = vweird.f32 %v1365
    %vm1453 = vweird.f32 %v1447
    %vm1454 = vmor %vm1452, %vm1453
    %v1455 = vsel %vm1454, %v1447, %v1451
    %v1456 = vand.u32 2147483647, %v1365
    %vm1457 = vcmp.eq.f32.partialorder %v1456, 8.507059e+37
    %v1458 = vand.u32 %v1365, 2147483648
    %v1459 = vor.u32 1.1754944e-38, %v1458
    %v1460 = vsel %vm1457, %v1459, %v1455
    %v1461 = vmul.f32 %v1343, %v1460
    %v1462 = vrcp.pop %v1368
    %v1463 = vmul.f32 %v1368, %v1462
    %v1464 = vsub.f32 1.0, %v1463
    %v1465 = vmul.f32 %v1462, %v1464
    %v1466 = vadd.f32 %v1462, %v1465
    %vm1467 = vweird.f32 %v1368
    %vm1468 = vweird.f32 %v1462
    %vm1469 = vmor %vm1467, %vm1468
    %v1470 = vsel %vm1469, %v1462, %v1466
    %v1471 = vand.u32 2147483647, %v1368
    %vm1472 = vcmp.eq.f32.partialorder %v1471, 8.507059e+37
    %v1473 = vand.u32 %v1368, 2147483648
    %v1474 = vor.u32 1.1754944e-38, %v1473
    %v1475 = vsel %vm1472, %v1474, %v1470
    %v1476 = vmul.f32 %v1345, %v1475
    %v1477 = vrcp.pop %v1371
    %v1478 = vmul.f32 %v1371, %v1477
    %v1479 = vsub.f32 1.0, %v1478
    %v1480 = vmul.f32 %v1477, %v1479
    %v1481 = vadd.f32 %v1477, %v1480
    %vm1482 = vweird.f32 %v1371
    %vm1483 = vweird.f32 %v1477
    %vm1484 = vmor %vm1482, %vm1483
    %v1485 = vsel %vm1484, %v1477, %v1481
    %v1486 = vand.u32 2147483647, %v1371
    %vm1487 = vcmp.eq.f32.partialorder %v1486, 8.507059e+37
    %v1488 = vand.u32 %v1371, 2147483648
    %v1489 = vor.u32 1.1754944e-38, %v1488
    %v1490 = vsel %vm1487, %v1489, %v1485
    %v1491 = vmul.f32 %v1347, %v1490
    %s1492 = scalar_lea.vmem [#allocation9], 64
    %1493 = vst.msk [vmem:[%s1492] sm:$0xff] %vm159, %v1386
    %1494 = vst.msk [vmem:[%s1492 + $0x8] sm:$0xff] %vm159, %v1401
    %1495 = vst.msk [vmem:[%s1492 + $0x10] sm:$0xff] %vm159, %v1416
    %1496 = vst.msk [vmem:[%s1492 + $0x18] sm:$0xff] %vm159, %v1431
    %1497 = vst.msk [vmem:[%s1492 + $0x20] sm:$0xff] %vm159, %v1446
    %1498 = vst.msk [vmem:[%s1492 + $0x28] sm:$0xff] %vm159, %v1461
    %1499 = vst.msk [vmem:[%s1492 + $0x30] sm:$0xff] %vm159, %v1476
    %1500 = vst.msk [vmem:[%s1492 + $0x38] sm:$0xff] %vm159, %v1491
    %v1501 = vpack.c.bf16 %v1386, %v1386
    %v1502 = vpack.c.bf16 %v1401, %v1401
    %v1503 = vpack.c.bf16 %v1416, %v1416
    %v1504 = vpack.c.bf16 %v1431, %v1431
    %v1505 = vpack.c.bf16 %v1446, %v1446
    %v1506 = vpack.c.bf16 %v1461, %v1461
    %v1507 = vpack.c.bf16 %v1476, %v1476
    %v1508 = vpack.c.bf16 %v1491, %v1491
    %1509 = vrot.lane.b32.xlu0 %v1102, 64
    %v1510 = vpop.permute.xlu0 %1509
    %v1512 = vsel %vm159, %v1501, 0
    %v1515 = vsel %vm568, %v1510, 0
    %1517 = vmatpush.bf16.msra.mxu0 0
    %1518 = vmatpush.bf16.msra.mxu0 0
    %1519 = vmatpush.bf16.msra.mxu0 0
    %1520 = vmatpush.bf16.msra.mxu0 0
    %1521 = vmatpush.bf16.msra.mxu0 0
    %1522 = vmatpush.bf16.msra.mxu0 0
    %1523 = vmatpush.bf16.msra.mxu0 0
    %1524 = vmatpush.bf16.msra.mxu0 %v1515
    %1525 = vmatmul.bf16.gmra.mxu0 %v1512
    %v1526 = vpop.f32.mrf.mxu0
    %v1527 = vadd.f32 0.0, %v1526
    %v1528 = vpop.f32.mrf.mxu0
    %1529 = vdwg.mxu0
    %1530 = vrot.lane.b32.xlu0 %v1126, 64
    %v1531 = vpop.permute.xlu0 %1530
    %v1533 = vsel %vm159, %v1502, 0
    %v1536 = vsel %vm568, %v1531, 0
    %1538 = vmatpush.bf16.msra.mxu0 0
    %1539 = vmatpush.bf16.msra.mxu0 0
    %1540 = vmatpush.bf16.msra.mxu0 0
    %1541 = vmatpush.bf16.msra.mxu0 0
    %1542 = vmatpush.bf16.msra.mxu0 0
    %1543 = vmatpush.bf16.msra.mxu0 0
    %1544 = vmatpush.bf16.msra.mxu0 0
    %1545 = vmatpush.bf16.msra.mxu0 %v1536
    %1546 = vmatmul.bf16.gmra.mxu0 %v1533
    %v1547 = vpop.f32.mrf.mxu0
    %v1548 = vadd.f32 0.0, %v1547
    %v1549 = vpop.f32.mrf.mxu0
    %1550 = vdwg.mxu0
    %1551 = vrot.lane.b32.xlu0 %v1150, 64
    %v1552 = vpop.permute.xlu0 %1551
    %v1554 = vsel %vm159, %v1503, 0
    %v1557 = vsel %vm568, %v1552, 0
    %1559 = vmatpush.bf16.msra.mxu0 0
    %1560 = vmatpush.bf16.msra.mxu0 0
    %1561 = vmatpush.bf16.msra.mxu0 0
    %1562 = vmatpush.bf16.msra.mxu0 0
    %1563 = vmatpush.bf16.msra.mxu0 0
    %1564 = vmatpush.bf16.msra.mxu0 0
    %1565 = vmatpush.bf16.msra.mxu0 0
    %1566 = vmatpush.bf16.msra.mxu0 %v1557
    %1567 = vmatmul.bf16.gmra.mxu0 %v1554
    %v1568 = vpop.f32.mrf.mxu0
    %v1569 = vadd.f32 0.0, %v1568
    %v1570 = vpop.f32.mrf.mxu0
    %1571 = vdwg.mxu0
    %1572 = vrot.lane.b32.xlu0 %v1174, 64
    %v1573 = vpop.permute.xlu0 %1572
    %v1575 = vsel %vm159, %v1504, 0
    %v1578 = vsel %vm568, %v1573, 0
    %1580 = vmatpush.bf16.msra.mxu0 0
    %1581 = vmatpush.bf16.msra.mxu0 0
    %1582 = vmatpush.bf16.msra.mxu0 0
    %1583 = vmatpush.bf16.msra.mxu0 0
    %1584 = vmatpush.bf16.msra.mxu0 0
    %1585 = vmatpush.bf16.msra.mxu0 0
    %1586 = vmatpush.bf16.msra.mxu0 0
    %1587 = vmatpush.bf16.msra.mxu0 %v1578
    %1588 = vmatmul.bf16.gmra.mxu0 %v1575
    %v1589 = vpop.f32.mrf.mxu0
    %v1590 = vadd.f32 0.0, %v1589
    %v1591 = vpop.f32.mrf.mxu0
    %1592 = vdwg.mxu0
    %1593 = vrot.lane.b32.xlu0 %v1198, 64
    %v1594 = vpop.permute.xlu0 %1593
    %v1596 = vsel %vm159, %v1505, 0
    %v1599 = vsel %vm568, %v1594, 0
    %1601 = vmatpush.bf16.msra.mxu0 0
    %1602 = vmatpush.bf16.msra.mxu0 0
    %1603 = vmatpush.bf16.msra.mxu0 0
    %1604 = vmatpush.bf16.msra.mxu0 0
    %1605 = vmatpush.bf16.msra.mxu0 0
    %1606 = vmatpush.bf16.msra.mxu0 0
    %1607 = vmatpush.bf16.msra.mxu0 0
    %1608 = vmatpush.bf16.msra.mxu0 %v1599
    %1609 = vmatmul.bf16.gmra.mxu0 %v1596
    %v1610 = vpop.f32.mrf.mxu0
    %v1611 = vadd.f32 0.0, %v1610
    %v1612 = vpop.f32.mrf.mxu0
    %1613 = vdwg.mxu0
    %1614 = vrot.lane.b32.xlu0 %v1222, 64
    %v1615 = vpop.permute.xlu0 %1614
    %v1617 = vsel %vm159, %v1506, 0
    %v1620 = vsel %vm568, %v1615, 0
    %1622 = vmatpush.bf16.msra.mxu0 0
    %1623 = vmatpush.bf16.msra.mxu0 0
    %1624 = vmatpush.bf16.msra.mxu0 0
    %1625 = vmatpush.bf16.msra.mxu0 0
    %1626 = vmatpush.bf16.msra.mxu0 0
    %1627 = vmatpush.bf16.msra.mxu0 0
    %1628 = vmatpush.bf16.msra.mxu0 0
    %1629 = vmatpush.bf16.msra.mxu0 %v1620
    %1630 = vmatmul.bf16.gmra.mxu0 %v1617
    %v1631 = vpop.f32.mrf.mxu0
    %v1632 = vadd.f32 0.0, %v1631
    %v1633 = vpop.f32.mrf.mxu0
    %1634 = vdwg.mxu0
    %1635 = vrot.lane.b32.xlu0 %v1246, 64
    %v1636 = vpop.permute.xlu0 %1635
    %v1638 = vsel %vm159, %v1507, 0
    %v1641 = vsel %vm568, %v1636, 0
    %1643 = vmatpush.bf16.msra.mxu0 0
    %1644 = vmatpush.bf16.msra.mxu0 0
    %1645 = vmatpush.bf16.msra.mxu0 0
    %1646 = vmatpush.bf16.msra.mxu0 0
    %1647 = vmatpush.bf16.msra.mxu0 0
    %1648 = vmatpush.bf16.msra.mxu0 0
    %1649 = vmatpush.bf16.msra.mxu0 0
    %1650 = vmatpush.bf16.msra.mxu0 %v1641
    %1651 = vmatmul.bf16.gmra.mxu0 %v1638
    %v1652 = vpop.f32.mrf.mxu0
    %v1653 = vadd.f32 0.0, %v1652
    %v1654 = vpop.f32.mrf.mxu0
    %1655 = vdwg.mxu0
    %1656 = vrot.lane.b32.xlu0 %v1270, 64
    %v1657 = vpop.permute.xlu0 %1656
    %v1659 = vsel %vm159, %v1508, 0
    %v1662 = vsel %vm568, %v1657, 0
    %1664 = vmatpush.bf16.msra.mxu0 0
    %1665 = vmatpush.bf16.msra.mxu0 0
    %1666 = vmatpush.bf16.msra.mxu0 0
    %1667 = vmatpush.bf16.msra.mxu0 0
    %1668 = vmatpush.bf16.msra.mxu0 0
    %1669 = vmatpush.bf16.msra.mxu0 0
    %1670 = vmatpush.bf16.msra.mxu0 0
    %1671 = vmatpush.bf16.msra.mxu0 %v1662
    %1672 = vmatmul.bf16.gmra.mxu0 %v1659
    %v1673 = vpop.f32.mrf.mxu0
    %v1674 = vadd.f32 0.0, %v1673
    %v1675 = vpop.f32.mrf.mxu0
    %1676 = vdwg.mxu0
    %s1677 = scalar_lea.vmem %s3, 16
    %v1678 = vld [vmem:[%s1677] sm:$0xf]
    %v1679 = vld [vmem:[%s1677 + $0x4] sm:$0xf]
    %v1680 = vld [vmem:[%s1677 + $0x8] sm:$0xf]
    %v1681 = vld [vmem:[%s1677 + $0xc] sm:$0xf]
    %v1682 = vpack.c.bf16 %v1548, %v1527
    %v1683 = vpack.c.bf16 %v1590, %v1569
    %v1685 = vsel %vm159, %v1683, 0
    %v1688 = vsel %vm568, %v1679, 0
    %1690 = vmatpush.bf16.msra.mxu0 0
    %1691 = vmatpush.bf16.msra.mxu0 0
    %1692 = vmatpush.bf16.msra.mxu0 0
    %1693 = vmatpush.bf16.msra.mxu0 0
    %1694 = vmatpush.bf16.msra.mxu0 0
    %1695 = vmatpush.bf16.msra.mxu0 0
    %1696 = vmatpush.bf16.msra.mxu0 0
    %1697 = vmatpush.bf16.msra.mxu0 %v1688
    %1698 = vmatmul.bf16.gmra.mxu0 %v1685
    %v1699 = vpop.f32.mrf.mxu0
    %v1700 = vadd.f32 0.0, %v1699
    %v1701 = vpop.f32.mrf.mxu0
    %v1702 = vadd.f32 0.0, %v1701
    %1703 = vdwg.mxu0
    %v1705 = vsel %vm159, %v1682, 0
    %v1708 = vsel %vm568, %v1678, 0
    %1710 = vmatpush.bf16.msra.mxu0 0
    %1711 = vmatpush.bf16.msra.mxu0 0
    %1712 = vmatpush.bf16.msra.mxu0 0
    %1713 = vmatpush.bf16.msra.mxu0 0
    %1714 = vmatpush.bf16.msra.mxu0 0
    %1715 = vmatpush.bf16.msra.mxu0 0
    %1716 = vmatpush.bf16.msra.mxu0 0
    %1717 = vmatpush.bf16.msra.mxu0 %v1708
    %1718 = vmatmul.bf16.gmra.mxu0 %v1705
    %v1719 = vpop.f32.mrf.mxu0
    %v1720 = vadd.f32 %v1700, %v1719
    %v1721 = vpop.f32.mrf.mxu0
    %v1722 = vadd.f32 %v1702, %v1721
    %1723 = vdwg.mxu0
    %v1724 = vpack.c.bf16 %v1632, %v1611
    %v1726 = vsel %vm159, %v1724, 0
    %v1729 = vsel %vm568, %v1680, 0
    %1731 = vmatpush.bf16.msra.mxu0 0
    %1732 = vmatpush.bf16.msra.mxu0 0
    %1733 = vmatpush.bf16.msra.mxu0 0
    %1734 = vmatpush.bf16.msra.mxu0 0
    %1735 = vmatpush.bf16.msra.mxu0 0
    %1736 = vmatpush.bf16.msra.mxu0 0
    %1737 = vmatpush.bf16.msra.mxu0 0
    %1738 = vmatpush.bf16.msra.mxu0 %v1729
    %1739 = vmatmul.bf16.gmra.mxu0 %v1726
    %v1740 = vpop.f32.mrf.mxu0
    %v1741 = vadd.f32 0.0, %v1740
    %v1742 = vpop.f32.mrf.mxu0
    %v1743 = vadd.f32 0.0, %v1742
    %1744 = vdwg.mxu0
    %v1745 = vadd.f32 %v1720, %v1741
    %v1746 = vadd.f32 %v1722, %v1743
    %v1747 = vpack.c.bf16 %v1674, %v1653
    %v1749 = vsel %vm159, %v1747, 0
    %v1752 = vsel %vm568, %v1681, 0
    %1754 = vmatpush.bf16.msra.mxu0 0
    %1755 = vmatpush.bf16.msra.mxu0 0
    %1756 = vmatpush.bf16.msra.mxu0 0
    %1757 = vmatpush.bf16.msra.mxu0 0
    %1758 = vmatpush.bf16.msra.mxu0 0
    %1759 = vmatpush.bf16.msra.mxu0 0
    %1760 = vmatpush.bf16.msra.mxu0 0
    %1761 = vmatpush.bf16.msra.mxu0 %v1752
    %1762 = vmatmul.bf16.gmra.mxu0 %v1749
    %v1763 = vpop.f32.mrf.mxu0
    %v1764 = vadd.f32 0.0, %v1763
    %v1765 = vpop.f32.mrf.mxu0
    %v1766 = vadd.f32 0.0, %v1765
    %1767 = vdwg.mxu0
    %v1768 = vadd.f32 %v1745, %v1764
    %v1769 = vadd.f32 %v1746, %v1766
    %v1770 = vadd.f32 %v1028, %v1768
    %v1771 = vadd.f32 %v1029, %v1769
    %v1772 = vperm.slane %v1031, 0
    %v1773 = vadd.f32 %v1770, %v1772
    %v1774 = vadd.f32 %v1771, %v1772
    %v1775 = vsel %vm108, %v1773, 0.0
    %1776 = vadd.xlane.f32.xlu0 %v1775
    %v1777 = vpop.xlane.xlu0 %1776
    %v1778 = vsel %vm108, %v1774, 0.0
    %1779 = vadd.xlane.f32.xlu0 %v1778
    %v1780 = vpop.xlane.xlu0 %1779
    %v1781 = vmul.f32 %v1777, %v841
    %v1782 = vmul.f32 %v1780, %v841
    %v1783 = vsub.f32 %v1773, %v1781
    %v1784 = vsub.f32 %v1774, %v1782
    %v1785 = vmul.f32 %v1783, %v1783
    %v1786 = vmul.f32 %v1784, %v1784
    %v1787 = vsel %vm108, %v1785, 0.0
    %1788 = vadd.xlane.f32.xlu0 %v1787
    %v1789 = vpop.xlane.xlu0 %1788
    %v1790 = vsel %vm108, %v1786, 0.0
    %1791 = vadd.xlane.f32.xlu0 %v1790
    %v1792 = vpop.xlane.xlu0 %1791
    %v1793 = vmul.f32 %v1789, %v841
    %v1794 = vmul.f32 %v1792, %v841
    %v1795 = vadd.f32 %v1793, 1e-05
    %v1796 = vadd.f32 %v1794, 1e-05
    %v1797 = vrsqrt.pop %v1795
    %v1798 = vmul.f32 %v1797, %v1795
    %v1799 = vmul.f32 %v1798, %v1797
    %v1800 = vmul.f32 0.5, %v1799
    %v1801 = vsub.f32 1.5, %v1800
    %v1802 = vmul.f32 %v1797, %v1801
    %vm1803 = vweird.f32 %v1795
    %vm1804 = vweird.f32 %v1797
    %vm1805 = vmor %vm1803, %vm1804
    %v1806 = vsel %vm1805, %v1797, %v1802
    %v1807 = vrsqrt.pop %v1796
    %v1808 = vmul.f32 %v1807, %v1796
    %v1809 = vmul.f32 %v1808, %v1807
    %v1810 = vmul.f32 0.5, %v1809
    %v1811 = vsub.f32 1.5, %v1810
    %v1812 = vmul.f32 %v1807, %v1811
    %vm1813 = vweird.f32 %v1796
    %vm1814 = vweird.f32 %v1807
    %vm1815 = vmor %vm1813, %vm1814
    %v1816 = vsel %vm1815, %v1807, %v1812
    %v1817 = vmul.f32 %v1783, %v1806
    %v1818 = vmul.f32 %v1784, %v1816
    %v1819 = vperm.slane %v1031, 2
    %v1820 = vmul.f32 %v1817, %v1819
    %v1821 = vmul.f32 %v1818, %v1819
    %v1822 = vperm.slane %v1031, 3
    %v1823 = vadd.f32 %v1820, %v1822
    %v1824 = vadd.f32 %v1821, %v1822
    %v1825 = vpack.c.bf16 %v1824, %v1823
    %s1826 = scalar_lea.vmem %s4, 16
    %v1827 = vld [vmem:[%s1826] sm:$0xf]
    %v1828 = vld [vmem:[%s1826 + $0x4] sm:$0xf]
    %v1829 = vld [vmem:[%s1826 + $0x8] sm:$0xf]
    %v1830 = vld [vmem:[%s1826 + $0xc] sm:$0xf]
    %s1831 = scalar_lea.vmem [#allocation7], 1
    %v1832 = vld [vmem:[%s1831] sm:$0x1]
    %v1834 = vperm.slane %v1832, 0
    %v1840 = vunpack.c.l.b16 %v1827
    %v1841 = vunpack.c.l.b16 %v1828
    %v1842 = vunpack.c.l.b16 %v1829
    %v1843 = vunpack.c.l.b16 %v1830
    %v1844 = vpack.c.b16 %v1841, %v1840
    %v1845 = vpack.c.b16 %v1843, %v1842
    %v1849 = vsel %vm108, %v1825, 0
    %1851 = vmatpush.bf16.msra.mxu0 0
    %1852 = vmatpush.bf16.msra.mxu0 0
    %1853 = vmatpush.bf16.msra.mxu0 0
    %1854 = vmatpush.bf16.msra.mxu0 0
    %1855 = vmatpush.bf16.msra.mxu0 0
    %1856 = vmatpush.bf16.msra.mxu0 0
    %1857 = vmatpush.bf16.msra.mxu0 %v1845
    %1858 = vmatpush.bf16.msra.mxu0 %v1844
    %1859 = vmatmul.bf16.gmra.mxu0 %v1849
    %v1860 = vpop.f32.mrf.mxu0
    %v1861 = vadd.f32 %v1834, %v1860
    %v1862 = vpop.f32.mrf.mxu0
    %v1863 = vadd.f32 %v1834, %v1862
    %1864 = vdwg.mxu0
    %v1865 = vmax.f32 %v1861, 0.0
    %v1866 = vmax.f32 %v1863, 0.0
    %v1867 = vpack.c.bf16 %v1866, %v1865
    %s1868 = scalar_lea.vmem %s6, 32
    %v1869 = vld [vmem:[%s1868] sm:$0xf]
    %v1870 = vld [vmem:[%s1868 + $0x4] sm:$0xf]
    %v1871 = vld [vmem:[%s1868 + $0x8] sm:$0xf]
    %v1872 = vld [vmem:[%s1868 + $0xc] sm:$0xf]
    %v1873 = vld [vmem:[%s1868 + $0x10] sm:$0xf]
    %v1874 = vld [vmem:[%s1868 + $0x14] sm:$0xf]
    %v1875 = vld [vmem:[%s1868 + $0x18] sm:$0xf]
    %v1876 = vld [vmem:[%s1868 + $0x1c] sm:$0xf]
    %v1877 = vperm.slane %v1031, 1
    %v1886 = vunpack.c.l.b16 %v1869
    %v1887 = vunpack.c.l.b16 %v1870
    %v1888 = vunpack.c.l.b16 %v1871
    %v1889 = vunpack.c.l.b16 %v1872
    %v1890 = vunpack.c.l.b16 %v1873
    %v1891 = vunpack.c.l.b16 %v1874
    %v1892 = vunpack.c.l.b16 %v1875
    %v1893 = vunpack.c.l.b16 %v1876
    %v1894 = vpack.c.b16 %v1887, %v1886
    %v1895 = vpack.c.b16 %v1889, %v1888
    %v1896 = vpack.c.b16 %v1891, %v1890
    %v1897 = vpack.c.b16 %v1893, %v1892
    %v1903 = vsel %vm960, %v1867, 0
    %1905 = vmatpush.bf16.msra.mxu0 0
    %1906 = vmatpush.bf16.msra.mxu0 0
    %1907 = vmatpush.bf16.msra.mxu0 0
    %1908 = vmatpush.bf16.msra.mxu0 0
    %1909 = vmatpush.bf16.msra.mxu0 %v1897
    %1910 = vmatpush.bf16.msra.mxu0 %v1896
    %1911 = vmatpush.bf16.msra.mxu0 %v1895
    %1912 = vmatpush.bf16.msra.mxu0 %v1894
    %1913 = vmatmul.bf16.gmra.mxu0 %v1903
    %v1914 = vpop.f32.mrf.mxu0
    %v1915 = vadd.f32 %v1877, %v1914
    %v1916 = vpop.f32.mrf.mxu0
    %v1917 = vadd.f32 %v1877, %v1916
    %1918 = vdwg.mxu0
    %v1919 = vadd.f32 %v1823, %v1915
    %v1920 = vadd.f32 %v1824, %v1917
    %v1921 = vsel %vm108, %v1919, 0.0
    %1922 = vadd.xlane.f32.xlu0 %v1921
    %v1923 = vpop.xlane.xlu0 %1922
    %v1924 = vsel %vm108, %v1920, 0.0
    %1925 = vadd.xlane.f32.xlu0 %v1924
    %v1926 = vpop.xlane.xlu0 %1925
    %v1927 = vmul.f32 %v1923, %v841
    %v1928 = vmul.f32 %v1926, %v841
    %v1929 = vsub.f32 %v1919, %v1927
    %v1930 = vsub.f32 %v1920, %v1928
    %v1931 = vmul.f32 %v1929, %v1929
    %v1932 = vmul.f32 %v1930, %v1930
    %v1933 = vsel %vm108, %v1931, 0.0
    %1934 = vadd.xlane.f32.xlu0 %v1933
    %v1935 = vpop.xlane.xlu0 %1934
    %v1936 = vsel %vm108, %v1932, 0.0
    %1937 = vadd.xlane.f32.xlu0 %v1936
    %v1938 = vpop.xlane.xlu0 %1937
    %v1939 = vmul.f32 %v1935, %v841
    %v1940 = vmul.f32 %v1938, %v841
    %v1941 = vadd.f32 %v1939, 1e-05
    %v1942 = vadd.f32 %v1940, 1e-05
    %v1943 = vrsqrt.pop %v1941
    %v1944 = vmul.f32 %v1943, %v1941
    %v1945 = vmul.f32 %v1944, %v1943
    %v1946 = vmul.f32 0.5, %v1945
    %v1947 = vsub.f32 1.5, %v1946
    %v1948 = vmul.f32 %v1943, %v1947
    %vm1949 = vweird.f32 %v1941
    %vm1950 = vweird.f32 %v1943
    %vm1951 = vmor %vm1949, %vm1950
    %v1952 = vsel %vm1951, %v1943, %v1948
    %v1953 = vrsqrt.pop %v1942
    %v1954 = vmul.f32 %v1953, %v1942
    %v1955 = vmul.f32 %v1954, %v1953
    %v1956 = vmul.f32 0.5, %v1955
    %v1957 = vsub.f32 1.5, %v1956
    %v1958 = vmul.f32 %v1953, %v1957
    %vm1959 = vweird.f32 %v1942
    %vm1960 = vweird.f32 %v1953
    %vm1961 = vmor %vm1959, %vm1960
    %v1962 = vsel %vm1961, %v1953, %v1958
    %v1963 = vmul.f32 %v1929, %v1952
    %v1964 = vmul.f32 %v1930, %v1962
    %v1965 = vperm.slane %v1031, 4
    %v1966 = vmul.f32 %v1963, %v1965
    %v1967 = vmul.f32 %v1964, %v1965
    %v1968 = vperm.slane %v1031, 5
    %v1969 = vadd.f32 %v1966, %v1968
    %v1970 = vadd.f32 %v1967, %v1968
    %v1971 = vld [vmem:[%s8] sm:$0x1]
    %v1972 = vld [vmem:[%s8 + $0x1] sm:$0x1]
    %v1973 = vsel %vm108, %v1969, 0.0
    %1974 = vadd.xlane.f32.xlu0 %v1973
    %v1975 = vpop.xlane.xlu0 %1974
    %v1976 = vsel %vm108, %v1970, 0.0
    %1977 = vadd.xlane.f32.xlu0 %v1976
    %v1978 = vpop.xlane.xlu0 %1977
    %v1979 = vmul.f32 %v1975, %v841
    %v1980 = vmul.f32 %v1978, %v841
    %v1981 = vsub.f32 %v1969, %v1979
    %v1982 = vsub.f32 %v1970, %v1980
    %v1983 = vmul.f32 %v1981, %v1981
    %v1984 = vmul.f32 %v1982, %v1982
    %v1985 = vsel %vm108, %v1983, 0.0
    %1986 = vadd.xlane.f32.xlu0 %v1985
    %v1987 = vpop.xlane.xlu0 %1986
    %v1988 = vsel %vm108, %v1984, 0.0
    %1989 = vadd.xlane.f32.xlu0 %v1988
    %v1990 = vpop.xlane.xlu0 %1989
    %v1991 = vmul.f32 %v1987, %v841
    %v1992 = vmul.f32 %v1990, %v841
    %v1993 = vadd.f32 %v1991, 1e-05
    %v1994 = vadd.f32 %v1992, 1e-05
    %v1995 = vrsqrt.pop %v1993
    %v1996 = vmul.f32 %v1995, %v1993
    %v1997 = vmul.f32 %v1996, %v1995
    %v1998 = vmul.f32 0.5, %v1997
    %v1999 = vsub.f32 1.5, %v1998
    %v2000 = vmul.f32 %v1995, %v1999
    %vm2001 = vweird.f32 %v1993
    %vm2002 = vweird.f32 %v1995
    %vm2003 = vmor %vm2001, %vm2002
    %v2004 = vsel %vm2003, %v1995, %v2000
    %v2005 = vrsqrt.pop %v1994
    %v2006 = vmul.f32 %v2005, %v1994
    %v2007 = vmul.f32 %v2006, %v2005
    %v2008 = vmul.f32 0.5, %v2007
    %v2009 = vsub.f32 1.5, %v2008
    %v2010 = vmul.f32 %v2005, %v2009
    %vm2011 = vweird.f32 %v1994
    %vm2012 = vweird.f32 %v2005
    %vm2013 = vmor %vm2011, %vm2012
    %v2014 = vsel %vm2013, %v2005, %v2010
    %v2015 = vmul.f32 %v1981, %v2004
    %v2016 = vmul.f32 %v1982, %v2014
    %v2017 = vperm.slane %v1971, 0
    %v2018 = vmul.f32 %v2015, %v2017
    %v2019 = vmul.f32 %v2016, %v2017
    %v2020 = vperm.slane %v1972, 0
    %v2021 = vadd.f32 %v2018, %v2020
    %v2022 = vadd.f32 %v2019, %v2020
    %2023 = vst.msk [vmem:[#allocation8] sm:$0xff] %vm108, %v2021
    %2024 = vst.msk [vmem:[#allocation8 + $0x8] sm:$0xff] %vm108, %v2022
    // Predicated region
    $region50: #{tpu_custom_call.1} parent=1 // pred_check
      _
    $region51: #{tpu_custom_call.1} parent=1 // pred_check_branch
      %2026 = sbr.rel (0) target = $region53
    $region52: #{tpu_custom_call.1} parent=1 // pred_region
      %2028 = vsyncadd [#allocation4], 0
      %s2029 = sshll.u32 [#allocation8], 4
      %s2030 = int_to_ptr.vmem [resolvable:$true] %s2029
      %s2031 = sshll.u32 %s9, 4
      %s2032 = int_to_ptr.hbm [resolvable:$true] %s2031
      %2037 = dma.vmem_to_hbm [thread:$0]  %s2030, 256, %s2032, [#allocation4], 128, 128, 8
    $region53: #{tpu_custom_call.1} parent=1 // pred_fallthru
      _
    // Predicated region
    $region54: #{tpu_custom_call.1} parent=1 // pred_check
      _
    $region55: #{tpu_custom_call.1} parent=1 // pred_check_branch
      %2039 = sbr.rel (0) target = $region57
    $region56: #{tpu_custom_call.1} parent=1 // pred_region
      %2041 = vsyncadd [#allocation10], 0
      %s2042 = sshll.u32 [#allocation9], 4
      %s2043 = int_to_ptr.vmem [resolvable:$true] %s2042
      %s2044 = sshll.u32 %s10, 4
      %s2045 = int_to_ptr.hbm [resolvable:$true] %s2044
      %2050 = dma.vmem_to_hbm [thread:$0]  %s2043, 2048, %s2045, [#allocation10], 128, 128, 8
    $region57: #{tpu_custom_call.1} parent=1 // pred_fallthru
      _
    // Predicated region
    $region58: #{tpu_custom_call.1} parent=1 // pred_check
      _
    $region59: #{tpu_custom_call.1} parent=1 // pred_check_branch
      %2052 = sbr.rel (0) target = $region61
    $region60: #{tpu_custom_call.1} parent=1 // pred_region
      %2054 = dma.done [#allocation4], 256
    $region61: #{tpu_custom_call.1} parent=1 // pred_fallthru
      _
    // Predicated region
    $region62: #{tpu_custom_call.1} parent=1 // pred_check
      _
    $region63: #{tpu_custom_call.1} parent=1 // pred_check_branch
      %2056 = sbr.rel (0) target = $region65
    $region64: #{tpu_custom_call.1} parent=1 // pred_region
      %2058 = dma.done [#allocation10], 2048
    $region65: #{tpu_custom_call.1} parent=1 // pred_fallthru
      _
    %2059 = vsyncpa [#allocation3], 1
    %2060 = vsyncpa [#allocation6], 1
    %2061 = vsyncpa [#allocation4], 1
    %2062 = vsyncpa [#allocation10], 1

</llo_original>
